<compile_context>
chip_gen: v6e
topology: v6e:2x2x1
jax: 0.10.0
libtpu: 0.0.40
codegen_flags: <defaults>
</compile_context>

<pallas_src>
import functools
import math

import jax
import jax.numpy as jnp
import numpy as np
from jax import lax
from jax.experimental import pallas as pl
from jax.experimental.pallas import tpu as pltpu

K = 7                 # conv kernel size (module default)
PAD = (K - 1) // 2    # = 3, "same" padding


def _spatial_attention_kernel(w2_ref, mh_ref, mw_ref, x_ref, o_ref,
                              bases_ref, taps_ref, *, W):
    """One batch element, lane-dense (H, W) -> HW layout.

    w2_ref   : (K*K*D, Kdim) bf16 kron-expanded conv weights (hi | lo | hi)
    mh_ref   : (K, 1, HW) f32 {0,1} H-edge masks (one row per kh)
    mw_ref   : (K, 1, HW) f32 {0,1} W-edge masks (one row per kw)
    x_ref    : (1, C, D, HW) input block in VMEM
    o_ref    : (1, C, D, HW) output block in VMEM
    bases_ref: (Kdim, HW) bf16 scratch - rhs of the MXU contraction
    taps_ref : (K*K*D, HW) f32 scratch - per-(kh, kw) partial conv planes
    """
    x = x_ref[0]                                   # (C, D, HW)
    C, D, HW = x.shape
    NB = 2 * K * D                                 # rows per hi/lo block

    # --- channel pooling (torch.max / torch.mean over dim=1) ----------------
    max_pool = jnp.max(x, axis=0)                  # (D, HW)
    avg_pool = jnp.sum(x, axis=0) * (1.0 / C)      # (D, HW)
    pools = (max_pool, avg_pool)

    # --- bases matrix: 14 kd-shifted pooling planes, bf16 hi/lo split -------
    # Row layout (must match the column layout of w2 built in the wrapper):
    #   [0,    NB)   hi(base_j)                     x  hi(weight) columns
    #   [NB,  2NB)   hi(base_j) (same data again)   x  lo(weight) columns
    #   [2NB, 3NB)   lo(base_j)                     x  hi(weight) columns
    #   [3NB,  end)  zeros (matching zero-pad columns in w2)
    # The kd shift is a sublane roll; rows whose source depth falls outside
    # [0, D) wrap around, but the matching w2 columns are zero, so no masking
    # is needed here.  All stores land at multiples of 8 sublanes.
    for c in range(2):
        for kd in range(K):
            shift = (PAD - kd) % D
            base = pools[c] if shift == 0 else pltpu.roll(pools[c], shift, axis=0)
            hi = base.astype(jnp.bfloat16)
            lo = (base - hi.astype(jnp.float32)).astype(jnp.bfloat16)
            r = (c * K + kd) * D
            bases_ref[r:r + D, :] = hi
            bases_ref[NB + r:NB + r + D, :] = hi
            bases_ref[2 * NB + r:2 * NB + r + D, :] = lo
    pad_rows = bases_ref.shape[0] - 3 * NB
    if pad_rows:
        bases_ref[3 * NB:, :] = jnp.zeros((pad_rows, HW), jnp.bfloat16)

    # --- one MXU matmul: all 49 per-(kh, kw) conv partial planes at once ----
    taps_ref[...] = jnp.dot(w2_ref[...], bases_ref[...],
                            preferred_element_type=jnp.float32)

    # --- 49 taps: aligned tap read, lane roll over flattened HW, edge mask --
    acc = jnp.zeros((D, HW), jnp.float32)
    for kh in range(K):
        mrow = mh_ref[kh]                          # (1, HW)
        for kw in range(K):
            t = kh * K + kw
            tap = taps_ref[t * D:(t + 1) * D, :]   # aligned (D, HW) read
            s = (kh - PAD) * W + (kw - PAD)        # shift on flattened HW axis
            if s == 0:
                acc = acc + tap                    # center tap: mask all-ones
            else:
                # rolled[:, p] = tap[:, (p + s) mod HW]; wrapped / OOB lanes
                # are zeroed by the separable edge masks.
                rolled = pltpu.roll(tap, (-s) % HW, axis=1)
                acc = acc + rolled * (mrow * mw_ref[kw])

    # --- sigmoid gate (EUP tanh form) + channel-broadcast modulation --------
    attn = 0.5 * jnp.tanh(0.5 * acc) + 0.5         # == sigmoid(acc), exact
    o_ref[0] = (attn[None, :, :] * x).astype(o_ref.dtype)


def _conv_weight_matrix(weight, D):
    """bf16 LHS of the MXU contraction, shape (K*K*D, Kdim).

    Column block layout (matches the bases scratch built in the kernel):
      [0,    NB)   hi(w)  -> multiplies hi(base)
      [NB,  2NB)   lo(w)  -> multiplies hi(base)
      [2NB, 3NB)   hi(w)  -> multiplies lo(base)
      [3NB,  end)  zero padding up to a multiple of 128 lanes
    The dropped lo(w)*lo(base) term is ~2^-18 relative - far below the 2e-4
    comparison tolerance.  The D-edge validity of the kd-shifted bases is
    folded into the columns (invalid (kd, d) columns are zeroed).
    """
    Wt = weight.reshape(2 * K, K * K).T.astype(jnp.float32)            # (49, 14)
    kd = jnp.arange(K)[:, None]
    d = jnp.arange(D)[None, :]
    dvalid = ((d + kd - PAD >= 0) & (d + kd - PAD < D)).astype(jnp.float32)  # (K, D)
    colmask = jnp.tile(dvalid, (2, 1)).reshape(-1)                     # (2*K*D,)
    w2 = jnp.kron(Wt, jnp.eye(D, dtype=jnp.float32)) * colmask[None, :]
    w2_hi = w2.astype(jnp.bfloat16)
    w2_lo = (w2 - w2_hi.astype(jnp.float32)).astype(jnp.bfloat16)
    lhs = jnp.concatenate([w2_hi, w2_lo, w2_hi], axis=1)               # (49*D, 3*2*K*D)
    kdim = ((lhs.shape[1] + 127) // 128) * 128
    return jnp.pad(lhs, ((0, 0), (0, kdim - lhs.shape[1])))


def _edge_masks(H, W):
    """Separable {0,1} H/W edge masks over the flattened HW lane axis."""
    hh = np.arange(H * W, dtype=np.int64) // W
    ww = np.arange(H * W, dtype=np.int64) % W
    mh = np.zeros((K, 1, H * W), np.float32)
    mw = np.zeros((K, 1, H * W), np.float32)
    for kk in range(K):
        dd = kk - PAD
        mh[kk, 0] = ((hh + dd >= 0) & (hh + dd < H)).astype(np.float32)
        mw[kk, 0] = ((ww + dd >= 0) & (ww + dd < W)).astype(np.float32)
    return mh, mw


def spatial_attention(x, weight):
    """x: (N, C, D, H, W) float32; weight: (1, 2, K, K, K) float32."""
    N, C, D, H, W = x.shape
    HW = H * W
    MM = K * K * D                                 # rows of the tap-plane matrix

    # Lane-dense layout: flatten (H, W) so the trailing dim is a multiple of
    # 128 lanes (16*16 = 256) instead of W = 16.
    x_flat = x.reshape(N, C, D, HW)
    w2 = _conv_weight_matrix(weight, D)            # (MM, kdim) bf16
    kdim = w2.shape[1]
    mask_h, mask_w = _edge_masks(H, W)             # (K, 1, HW) f32 each

    # VMEM budget derived from the actual block / scratch sizes (+ headroom),
    # instead of a blanket 32 MiB.
    in_block_bytes = (w2.size * 2 + (mask_h.size + mask_w.size) * 4
                      + C * D * HW * 4)
    out_block_bytes = C * D * HW * 4
    scratch_bytes = kdim * HW * 2 + MM * HW * 4
    vmem_limit = int(min(128 << 20,
                         2 * (2 * in_block_bytes + 2 * out_block_bytes
                              + scratch_bytes) + (4 << 20)))

    cost = pl.CostEstimate(
        flops=int(N * (2 * MM * kdim * HW + 6 * MM * HW + 10 * C * D * HW)),
        transcendentals=int(N * D * HW),
        bytes_accessed=int(8 * N * C * D * HW
                           + N * (w2.size * 2
                                  + (mask_h.size + mask_w.size) * 4)),
    )

    kernel = functools.partial(_spatial_attention_kernel, W=W)
    out = pl.pallas_call(
        kernel,
        out_shape=jax.ShapeDtypeStruct((N, C, D, HW), x.dtype),
        grid=(N,),
        in_specs=[
            pl.BlockSpec((MM, kdim), lambda n: (0, 0)),            # conv weights
            pl.BlockSpec((K, 1, HW), lambda n: (0, 0, 0)),         # H edge masks
            pl.BlockSpec((K, 1, HW), lambda n: (0, 0, 0)),         # W edge masks
            pl.BlockSpec((1, C, D, HW), lambda n: (n, 0, 0, 0)),   # x
        ],
        out_specs=pl.BlockSpec((1, C, D, HW), lambda n: (n, 0, 0, 0)),
        scratch_shapes=[
            pltpu.VMEM((kdim, HW), jnp.bfloat16),                  # bases (rhs)
            pltpu.VMEM((MM, HW), jnp.float32),                     # tap planes
        ],
        # Batch elements are independent -> "parallel" lets v7x shard the grid
        # over its two TensorCores; harmless on single-core v5e/v6e.
        # TODO(synk): for production-sized (C, D, H, W), add a D-tile grid axis
        # with a +/-PAD halo (v7x 64 MiB VMEM) and pack several batch elements
        # per block on v5e/v6e to amortize the ~0.35us per-step overhead.
        compiler_params=pltpu.CompilerParams(
            dimension_semantics=("parallel",),
            vmem_limit_bytes=vmem_limit,
        ),
        cost_estimate=cost,
    )(w2, jnp.asarray(mask_h), jnp.asarray(mask_w), x_flat)
    return out.reshape(N, C, D, H, W)


def _reference(x, weight):
    """Pure-JAX reference matching the PyTorch forward exactly."""
    max_pool = jnp.max(x, axis=1, keepdims=True)
    avg_pool = jnp.mean(x, axis=1, keepdims=True)
    cat = jnp.concatenate([max_pool, avg_pool], axis=1)
    conv = lax.conv_general_dilated(
        cat, weight,
        window_strides=(1, 1, 1),
        padding=[(PAD, PAD)] * 3,
        dimension_numbers=("NCDHW", "OIDHW", "NCDHW"),
        precision=lax.Precision.HIGHEST)
    return jax.nn.sigmoid(conv) * x


if __name__ == "__main__":
    key = jax.random.PRNGKey(0)
    kx, kw = jax.random.split(key)

    # Small shapes consistent with a 5-D (N, C, D, H, W) Conv3d input.
    N, C, D, H, W = 2, 4, 8, 16, 16
    x = jax.random.normal(kx, (N, C, D, H, W), dtype=jnp.float32)

    # Deterministic init mirroring nn.Conv3d default (kaiming-uniform bound
    # = 1/sqrt(fan_in), fan_in = 2*K*K*K), no bias.
    fan_in = 2 * K * K * K
    bound = 1.0 / math.sqrt(fan_in)
    weight = jax.random.uniform(kw, (1, 2, K, K, K),
                                minval=-bound, maxval=bound, dtype=jnp.float32)

    out = spatial_attention(x, weight)
    out = jax.block_until_ready(out)

    ref = _reference(x, weight)
    np.testing.assert_allclose(np.asarray(out), np.asarray(ref),
                               rtol=2e-4, atol=2e-4)
    print("KERNEL_OK")
</pallas_src>

<mosaic_0001>
module attributes {stable_mosaic.version = 11 : i64} {
  func.func @_spatial_attention_kernel(%arg0: i32, %arg1: memref<392x384xbf16, #tpu.memory_space<vmem>>, %arg2: memref<7x1x256xf32, #tpu.memory_space<vmem>>, %arg3: memref<7x1x256xf32, #tpu.memory_space<vmem>>, %arg4: memref<1x4x8x256xf32, #tpu.memory_space<vmem>>, %arg5: memref<1x4x8x256xf32, #tpu.memory_space<vmem>>, %arg6: memref<384x256xbf16, #tpu.memory_space<vmem>>, %arg7: memref<392x256xf32, #tpu.memory_space<vmem>>) attributes {dimension_semantics = [#tpu.dimension_semantics<parallel>], iteration_bounds = array<i64: 2>, scalar_prefetch = 0 : i64, scratch_operands = 2 : i64, tpu.core_type = #tpu.core_type<tc>, window_params = [{pipeline_mode = #tpu.pipeline_mode<synchronous>, transform_indices = @transform_0, window_bounds = array<i64: 392, 384>}, {pipeline_mode = #tpu.pipeline_mode<synchronous>, transform_indices = @transform_1, window_bounds = array<i64: 7, 1, 256>}, {pipeline_mode = #tpu.pipeline_mode<synchronous>, transform_indices = @transform_2, window_bounds = array<i64: 7, 1, 256>}, {transform_indices = @transform_3, window_bounds = array<i64: 1, 4, 8, 256>}, {transform_indices = @transform_4, window_bounds = array<i64: 1, 4, 8, 256>}]} {
    %c0 = arith.constant 0 : index
    %c0_0 = arith.constant 0 : index
    %c0_1 = arith.constant 0 : index
    %c0_2 = arith.constant 0 : index
    %0 = vector.load %arg4[%c0, %c0_0, %c0_1, %c0_2] : memref<1x4x8x256xf32, #tpu.memory_space<vmem>>, vector<1x4x8x256xf32>
    %1 = vector.shape_cast %0 : vector<1x4x8x256xf32> to vector<4x8x256xf32>
    %cst = arith.constant dense<0xFF800000> : vector<8x256xf32>
    %2 = vector.multi_reduction <maximumf>, %1, %cst [0] : vector<4x8x256xf32> to vector<8x256xf32>
    %cst_3 = arith.constant dense<0.000000e+00> : vector<8x256xf32>
    %3 = vector.multi_reduction <add>, %1, %cst_3 [0] : vector<4x8x256xf32> to vector<8x256xf32>
    %cst_4 = arith.constant 2.500000e-01 : f32
    %4 = vector.broadcast %cst_4 : f32 to vector<8x256xf32>
    %5 = arith.mulf %3, %4 : vector<8x256xf32>
    %c3_i32 = arith.constant 3 : i32
    %6 = tpu.dynamic_rotate %2 by %c3_i32 dim 0 : vector<8x256xf32>, i32 -> vector<8x256xf32>
    %7 = arith.truncf %6 : vector<8x256xf32> to vector<8x256xbf16>
    %8 = arith.extf %7 : vector<8x256xbf16> to vector<8x256xf32>
    %9 = arith.subf %6, %8 : vector<8x256xf32>
    %10 = arith.truncf %9 : vector<8x256xf32> to vector<8x256xbf16>
    %c0_5 = arith.constant 0 : index
    %c0_6 = arith.constant 0 : index
    %11 = vector.load %arg6[%c0_5, %c0_6] : memref<384x256xbf16, #tpu.memory_space<vmem>>, vector<8x256xbf16>
    tpu.vector_store %arg6[%c0_5, %c0_6], %7 {strides = array<i32>} : memref<384x256xbf16, #tpu.memory_space<vmem>>, vector<8x256xbf16>,
    %c112 = arith.constant 112 : index
    %c0_7 = arith.constant 0 : index
    %12 = vector.load %arg6[%c112, %c0_7] : memref<384x256xbf16, #tpu.memory_space<vmem>>, vector<8x256xbf16>
    tpu.vector_store %arg6[%c112, %c0_7], %7 {strides = array<i32>} : memref<384x256xbf16, #tpu.memory_space<vmem>>, vector<8x256xbf16>,
    %c224 = arith.constant 224 : index
    %c0_8 = arith.constant 0 : index
    %13 = vector.load %arg6[%c224, %c0_8] : memref<384x256xbf16, #tpu.memory_space<vmem>>, vector<8x256xbf16>
    tpu.vector_store %arg6[%c224, %c0_8], %10 {strides = array<i32>} : memref<384x256xbf16, #tpu.memory_space<vmem>>, vector<8x256xbf16>,
    %c2_i32 = arith.constant 2 : i32
    %14 = tpu.dynamic_rotate %2 by %c2_i32 dim 0 : vector<8x256xf32>, i32 -> vector<8x256xf32>
    %15 = arith.truncf %14 : vector<8x256xf32> to vector<8x256xbf16>
    %16 = arith.extf %15 : vector<8x256xbf16> to vector<8x256xf32>
    %17 = arith.subf %14, %16 : vector<8x256xf32>
    %18 = arith.truncf %17 : vector<8x256xf32> to vector<8x256xbf16>
    %c8 = arith.constant 8 : index
    %c0_9 = arith.constant 0 : index
    %19 = vector.load %arg6[%c8, %c0_9] : memref<384x256xbf16, #tpu.memory_space<vmem>>, vector<8x256xbf16>
    tpu.vector_store %arg6[%c8, %c0_9], %15 {strides = array<i32>} : memref<384x256xbf16, #tpu.memory_space<vmem>>, vector<8x256xbf16>,
    %c120 = arith.constant 120 : index
    %c0_10 = arith.constant 0 : index
    %20 = vector.load %arg6[%c120, %c0_10] : memref<384x256xbf16, #tpu.memory_space<vmem>>, vector<8x256xbf16>
    tpu.vector_store %arg6[%c120, %c0_10], %15 {strides = array<i32>} : memref<384x256xbf16, #tpu.memory_space<vmem>>, vector<8x256xbf16>,
    %c232 = arith.constant 232 : index
    %c0_11 = arith.constant 0 : index
    %21 = vector.load %arg6[%c232, %c0_11] : memref<384x256xbf16, #tpu.memory_space<vmem>>, vector<8x256xbf16>
    tpu.vector_store %arg6[%c232, %c0_11], %18 {strides = array<i32>} : memref<384x256xbf16, #tpu.memory_space<vmem>>, vector<8x256xbf16>,
    %c1_i32 = arith.constant 1 : i32
    %22 = tpu.dynamic_rotate %2 by %c1_i32 dim 0 : vector<8x256xf32>, i32 -> vector<8x256xf32>
    %23 = arith.truncf %22 : vector<8x256xf32> to vector<8x256xbf16>
    %24 = arith.extf %23 : vector<8x256xbf16> to vector<8x256xf32>
    %25 = arith.subf %22, %24 : vector<8x256xf32>
    %26 = arith.truncf %25 : vector<8x256xf32> to vector<8x256xbf16>
    %c16 = arith.constant 16 : index
    %c0_12 = arith.constant 0 : index
    %27 = vector.load %arg6[%c16, %c0_12] : memref<384x256xbf16, #tpu.memory_space<vmem>>, vector<8x256xbf16>
    tpu.vector_store %arg6[%c16, %c0_12], %23 {strides = array<i32>} : memref<384x256xbf16, #tpu.memory_space<vmem>>, vector<8x256xbf16>,
    %c128 = arith.constant 128 : index
    %c0_13 = arith.constant 0 : index
    %28 = vector.load %arg6[%c128, %c0_13] : memref<384x256xbf16, #tpu.memory_space<vmem>>, vector<8x256xbf16>
    tpu.vector_store %arg6[%c128, %c0_13], %23 {strides = array<i32>} : memref<384x256xbf16, #tpu.memory_space<vmem>>, vector<8x256xbf16>,
    %c240 = arith.constant 240 : index
    %c0_14 = arith.constant 0 : index
    %29 = vector.load %arg6[%c240, %c0_14] : memref<384x256xbf16, #tpu.memory_space<vmem>>, vector<8x256xbf16>
    tpu.vector_store %arg6[%c240, %c0_14], %26 {strides = array<i32>} : memref<384x256xbf16, #tpu.memory_space<vmem>>, vector<8x256xbf16>,
    %30 = arith.truncf %2 : vector<8x256xf32> to vector<8x256xbf16>
    %31 = arith.extf %30 : vector<8x256xbf16> to vector<8x256xf32>
    %32 = arith.subf %2, %31 : vector<8x256xf32>
    %33 = arith.truncf %32 : vector<8x256xf32> to vector<8x256xbf16>
    %c24 = arith.constant 24 : index
    %c0_15 = arith.constant 0 : index
    %34 = vector.load %arg6[%c24, %c0_15] : memref<384x256xbf16, #tpu.memory_space<vmem>>, vector<8x256xbf16>
    tpu.vector_store %arg6[%c24, %c0_15], %30 {strides = array<i32>} : memref<384x256xbf16, #tpu.memory_space<vmem>>, vector<8x256xbf16>,
    %c136 = arith.constant 136 : index
    %c0_16 = arith.constant 0 : index
    %35 = vector.load %arg6[%c136, %c0_16] : memref<384x256xbf16, #tpu.memory_space<vmem>>, vector<8x256xbf16>
    tpu.vector_store %arg6[%c136, %c0_16], %30 {strides = array<i32>} : memref<384x256xbf16, #tpu.memory_space<vmem>>, vector<8x256xbf16>,
    %c248 = arith.constant 248 : index
    %c0_17 = arith.constant 0 : index
    %36 = vector.load %arg6[%c248, %c0_17] : memref<384x256xbf16, #tpu.memory_space<vmem>>, vector<8x256xbf16>
    tpu.vector_store %arg6[%c248, %c0_17], %33 {strides = array<i32>} : memref<384x256xbf16, #tpu.memory_space<vmem>>, vector<8x256xbf16>,
    %c7_i32 = arith.constant 7 : i32
    %37 = tpu.dynamic_rotate %2 by %c7_i32 dim 0 : vector<8x256xf32>, i32 -> vector<8x256xf32>
    %38 = arith.truncf %37 : vector<8x256xf32> to vector<8x256xbf16>
    %39 = arith.extf %38 : vector<8x256xbf16> to vector<8x256xf32>
    %40 = arith.subf %37, %39 : vector<8x256xf32>
    %41 = arith.truncf %40 : vector<8x256xf32> to vector<8x256xbf16>
    %c32 = arith.constant 32 : index
    %c0_18 = arith.constant 0 : index
    %42 = vector.load %arg6[%c32, %c0_18] : memref<384x256xbf16, #tpu.memory_space<vmem>>, vector<8x256xbf16>
    tpu.vector_store %arg6[%c32, %c0_18], %38 {strides = array<i32>} : memref<384x256xbf16, #tpu.memory_space<vmem>>, vector<8x256xbf16>,
    %c144 = arith.constant 144 : index
    %c0_19 = arith.constant 0 : index
    %43 = vector.load %arg6[%c144, %c0_19] : memref<384x256xbf16, #tpu.memory_space<vmem>>, vector<8x256xbf16>
    tpu.vector_store %arg6[%c144, %c0_19], %38 {strides = array<i32>} : memref<384x256xbf16, #tpu.memory_space<vmem>>, vector<8x256xbf16>,
    %c256 = arith.constant 256 : index
    %c0_20 = arith.constant 0 : index
    %44 = vector.load %arg6[%c256, %c0_20] : memref<384x256xbf16, #tpu.memory_space<vmem>>, vector<8x256xbf16>
    tpu.vector_store %arg6[%c256, %c0_20], %41 {strides = array<i32>} : memref<384x256xbf16, #tpu.memory_space<vmem>>, vector<8x256xbf16>,
    %c6_i32 = arith.constant 6 : i32
    %45 = tpu.dynamic_rotate %2 by %c6_i32 dim 0 : vector<8x256xf32>, i32 -> vector<8x256xf32>
    %46 = arith.truncf %45 : vector<8x256xf32> to vector<8x256xbf16>
    %47 = arith.extf %46 : vector<8x256xbf16> to vector<8x256xf32>
    %48 = arith.subf %45, %47 : vector<8x256xf32>
    %49 = arith.truncf %48 : vector<8x256xf32> to vector<8x256xbf16>
    %c40 = arith.constant 40 : index
    %c0_21 = arith.constant 0 : index
    %50 = vector.load %arg6[%c40, %c0_21] : memref<384x256xbf16, #tpu.memory_space<vmem>>, vector<8x256xbf16>
    tpu.vector_store %arg6[%c40, %c0_21], %46 {strides = array<i32>} : memref<384x256xbf16, #tpu.memory_space<vmem>>, vector<8x256xbf16>,
    %c152 = arith.constant 152 : index
    %c0_22 = arith.constant 0 : index
    %51 = vector.load %arg6[%c152, %c0_22] : memref<384x256xbf16, #tpu.memory_space<vmem>>, vector<8x256xbf16>
    tpu.vector_store %arg6[%c152, %c0_22], %46 {strides = array<i32>} : memref<384x256xbf16, #tpu.memory_space<vmem>>, vector<8x256xbf16>,
    %c264 = arith.constant 264 : index
    %c0_23 = arith.constant 0 : index
    %52 = vector.load %arg6[%c264, %c0_23] : memref<384x256xbf16, #tpu.memory_space<vmem>>, vector<8x256xbf16>
    tpu.vector_store %arg6[%c264, %c0_23], %49 {strides = array<i32>} : memref<384x256xbf16, #tpu.memory_space<vmem>>, vector<8x256xbf16>,
    %c5_i32 = arith.constant 5 : i32
    %53 = tpu.dynamic_rotate %2 by %c5_i32 dim 0 : vector<8x256xf32>, i32 -> vector<8x256xf32>
    %54 = arith.truncf %53 : vector<8x256xf32> to vector<8x256xbf16>
    %55 = arith.extf %54 : vector<8x256xbf16> to vector<8x256xf32>
    %56 = arith.subf %53, %55 : vector<8x256xf32>
    %57 = arith.truncf %56 : vector<8x256xf32> to vector<8x256xbf16>
    %c48 = arith.constant 48 : index
    %c0_24 = arith.constant 0 : index
    %58 = vector.load %arg6[%c48, %c0_24] : memref<384x256xbf16, #tpu.memory_space<vmem>>, vector<8x256xbf16>
    tpu.vector_store %arg6[%c48, %c0_24], %54 {strides = array<i32>} : memref<384x256xbf16, #tpu.memory_space<vmem>>, vector<8x256xbf16>,
    %c160 = arith.constant 160 : index
    %c0_25 = arith.constant 0 : index
    %59 = vector.load %arg6[%c160, %c0_25] : memref<384x256xbf16, #tpu.memory_space<vmem>>, vector<8x256xbf16>
    tpu.vector_store %arg6[%c160, %c0_25], %54 {strides = array<i32>} : memref<384x256xbf16, #tpu.memory_space<vmem>>, vector<8x256xbf16>,
    %c272 = arith.constant 272 : index
    %c0_26 = arith.constant 0 : index
    %60 = vector.load %arg6[%c272, %c0_26] : memref<384x256xbf16, #tpu.memory_space<vmem>>, vector<8x256xbf16>
    tpu.vector_store %arg6[%c272, %c0_26], %57 {strides = array<i32>} : memref<384x256xbf16, #tpu.memory_space<vmem>>, vector<8x256xbf16>,
    %c3_i32_27 = arith.constant 3 : i32
    %61 = tpu.dynamic_rotate %5 by %c3_i32_27 dim 0 : vector<8x256xf32>, i32 -> vector<8x256xf32>
    %62 = arith.truncf %61 : vector<8x256xf32> to vector<8x256xbf16>
    %63 = arith.extf %62 : vector<8x256xbf16> to vector<8x256xf32>
    %64 = arith.subf %61, %63 : vector<8x256xf32>
    %65 = arith.truncf %64 : vector<8x256xf32> to vector<8x256xbf16>
    %c56 = arith.constant 56 : index
    %c0_28 = arith.constant 0 : index
    %66 = vector.load %arg6[%c56, %c0_28] : memref<384x256xbf16, #tpu.memory_space<vmem>>, vector<8x256xbf16>
    tpu.vector_store %arg6[%c56, %c0_28], %62 {strides = array<i32>} : memref<384x256xbf16, #tpu.memory_space<vmem>>, vector<8x256xbf16>,
    %c168 = arith.constant 168 : index
    %c0_29 = arith.constant 0 : index
    %67 = vector.load %arg6[%c168, %c0_29] : memref<384x256xbf16, #tpu.memory_space<vmem>>, vector<8x256xbf16>
    tpu.vector_store %arg6[%c168, %c0_29], %62 {strides = array<i32>} : memref<384x256xbf16, #tpu.memory_space<vmem>>, vector<8x256xbf16>,
    %c280 = arith.constant 280 : index
    %c0_30 = arith.constant 0 : index
    %68 = vector.load %arg6[%c280, %c0_30] : memref<384x256xbf16, #tpu.memory_space<vmem>>, vector<8x256xbf16>
    tpu.vector_store %arg6[%c280, %c0_30], %65 {strides = array<i32>} : memref<384x256xbf16, #tpu.memory_space<vmem>>, vector<8x256xbf16>,
    %c2_i32_31 = arith.constant 2 : i32
    %69 = tpu.dynamic_rotate %5 by %c2_i32_31 dim 0 : vector<8x256xf32>, i32 -> vector<8x256xf32>
    %70 = arith.truncf %69 : vector<8x256xf32> to vector<8x256xbf16>
    %71 = arith.extf %70 : vector<8x256xbf16> to vector<8x256xf32>
    %72 = arith.subf %69, %71 : vector<8x256xf32>
    %73 = arith.truncf %72 : vector<8x256xf32> to vector<8x256xbf16>
    %c64 = arith.constant 64 : index
    %c0_32 = arith.constant 0 : index
    %74 = vector.load %arg6[%c64, %c0_32] : memref<384x256xbf16, #tpu.memory_space<vmem>>, vector<8x256xbf16>
    tpu.vector_store %arg6[%c64, %c0_32], %70 {strides = array<i32>} : memref<384x256xbf16, #tpu.memory_space<vmem>>, vector<8x256xbf16>,
    %c176 = arith.constant 176 : index
    %c0_33 = arith.constant 0 : index
    %75 = vector.load %arg6[%c176, %c0_33] : memref<384x256xbf16, #tpu.memory_space<vmem>>, vector<8x256xbf16>
    tpu.vector_store %arg6[%c176, %c0_33], %70 {strides = array<i32>} : memref<384x256xbf16, #tpu.memory_space<vmem>>, vector<8x256xbf16>,
    %c288 = arith.constant 288 : index
    %c0_34 = arith.constant 0 : index
    %76 = vector.load %arg6[%c288, %c0_34] : memref<384x256xbf16, #tpu.memory_space<vmem>>, vector<8x256xbf16>
    tpu.vector_store %arg6[%c288, %c0_34], %73 {strides = array<i32>} : memref<384x256xbf16, #tpu.memory_space<vmem>>, vector<8x256xbf16>,
    %c1_i32_35 = arith.constant 1 : i32
    %77 = tpu.dynamic_rotate %5 by %c1_i32_35 dim 0 : vector<8x256xf32>, i32 -> vector<8x256xf32>
    %78 = arith.truncf %77 : vector<8x256xf32> to vector<8x256xbf16>
    %79 = arith.extf %78 : vector<8x256xbf16> to vector<8x256xf32>
    %80 = arith.subf %77, %79 : vector<8x256xf32>
    %81 = arith.truncf %80 : vector<8x256xf32> to vector<8x256xbf16>
    %c72 = arith.constant 72 : index
    %c0_36 = arith.constant 0 : index
    %82 = vector.load %arg6[%c72, %c0_36] : memref<384x256xbf16, #tpu.memory_space<vmem>>, vector<8x256xbf16>
    tpu.vector_store %arg6[%c72, %c0_36], %78 {strides = array<i32>} : memref<384x256xbf16, #tpu.memory_space<vmem>>, vector<8x256xbf16>,
    %c184 = arith.constant 184 : index
    %c0_37 = arith.constant 0 : index
    %83 = vector.load %arg6[%c184, %c0_37] : memref<384x256xbf16, #tpu.memory_space<vmem>>, vector<8x256xbf16>
    tpu.vector_store %arg6[%c184, %c0_37], %78 {strides = array<i32>} : memref<384x256xbf16, #tpu.memory_space<vmem>>, vector<8x256xbf16>,
    %c296 = arith.constant 296 : index
    %c0_38 = arith.constant 0 : index
    %84 = vector.load %arg6[%c296, %c0_38] : memref<384x256xbf16, #tpu.memory_space<vmem>>, vector<8x256xbf16>
    tpu.vector_store %arg6[%c296, %c0_38], %81 {strides = array<i32>} : memref<384x256xbf16, #tpu.memory_space<vmem>>, vector<8x256xbf16>,
    %85 = arith.truncf %5 : vector<8x256xf32> to vector<8x256xbf16>
    %86 = arith.extf %85 : vector<8x256xbf16> to vector<8x256xf32>
    %87 = arith.subf %5, %86 : vector<8x256xf32>
    %88 = arith.truncf %87 : vector<8x256xf32> to vector<8x256xbf16>
    %c80 = arith.constant 80 : index
    %c0_39 = arith.constant 0 : index
    %89 = vector.load %arg6[%c80, %c0_39] : memref<384x256xbf16, #tpu.memory_space<vmem>>, vector<8x256xbf16>
    tpu.vector_store %arg6[%c80, %c0_39], %85 {strides = array<i32>} : memref<384x256xbf16, #tpu.memory_space<vmem>>, vector<8x256xbf16>,
    %c192 = arith.constant 192 : index
    %c0_40 = arith.constant 0 : index
    %90 = vector.load %arg6[%c192, %c0_40] : memref<384x256xbf16, #tpu.memory_space<vmem>>, vector<8x256xbf16>
    tpu.vector_store %arg6[%c192, %c0_40], %85 {strides = array<i32>} : memref<384x256xbf16, #tpu.memory_space<vmem>>, vector<8x256xbf16>,
    %c304 = arith.constant 304 : index
    %c0_41 = arith.constant 0 : index
    %91 = vector.load %arg6[%c304, %c0_41] : memref<384x256xbf16, #tpu.memory_space<vmem>>, vector<8x256xbf16>
    tpu.vector_store %arg6[%c304, %c0_41], %88 {strides = array<i32>} : memref<384x256xbf16, #tpu.memory_space<vmem>>, vector<8x256xbf16>,
    %c7_i32_42 = arith.constant 7 : i32
    %92 = tpu.dynamic_rotate %5 by %c7_i32_42 dim 0 : vector<8x256xf32>, i32 -> vector<8x256xf32>
    %93 = arith.truncf %92 : vector<8x256xf32> to vector<8x256xbf16>
    %94 = arith.extf %93 : vector<8x256xbf16> to vector<8x256xf32>
    %95 = arith.subf %92, %94 : vector<8x256xf32>
    %96 = arith.truncf %95 : vector<8x256xf32> to vector<8x256xbf16>
    %c88 = arith.constant 88 : index
    %c0_43 = arith.constant 0 : index
    %97 = vector.load %arg6[%c88, %c0_43] : memref<384x256xbf16, #tpu.memory_space<vmem>>, vector<8x256xbf16>
    tpu.vector_store %arg6[%c88, %c0_43], %93 {strides = array<i32>} : memref<384x256xbf16, #tpu.memory_space<vmem>>, vector<8x256xbf16>,
    %c200 = arith.constant 200 : index
    %c0_44 = arith.constant 0 : index
    %98 = vector.load %arg6[%c200, %c0_44] : memref<384x256xbf16, #tpu.memory_space<vmem>>, vector<8x256xbf16>
    tpu.vector_store %arg6[%c200, %c0_44], %93 {strides = array<i32>} : memref<384x256xbf16, #tpu.memory_space<vmem>>, vector<8x256xbf16>,
    %c312 = arith.constant 312 : index
    %c0_45 = arith.constant 0 : index
    %99 = vector.load %arg6[%c312, %c0_45] : memref<384x256xbf16, #tpu.memory_space<vmem>>, vector<8x256xbf16>
    tpu.vector_store %arg6[%c312, %c0_45], %96 {strides = array<i32>} : memref<384x256xbf16, #tpu.memory_space<vmem>>, vector<8x256xbf16>,
    %c6_i32_46 = arith.constant 6 : i32
    %100 = tpu.dynamic_rotate %5 by %c6_i32_46 dim 0 : vector<8x256xf32>, i32 -> vector<8x256xf32>
    %101 = arith.truncf %100 : vector<8x256xf32> to vector<8x256xbf16>
    %102 = arith.extf %101 : vector<8x256xbf16> to vector<8x256xf32>
    %103 = arith.subf %100, %102 : vector<8x256xf32>
    %104 = arith.truncf %103 : vector<8x256xf32> to vector<8x256xbf16>
    %c96 = arith.constant 96 : index
    %c0_47 = arith.constant 0 : index
    %105 = vector.load %arg6[%c96, %c0_47] : memref<384x256xbf16, #tpu.memory_space<vmem>>, vector<8x256xbf16>
    tpu.vector_store %arg6[%c96, %c0_47], %101 {strides = array<i32>} : memref<384x256xbf16, #tpu.memory_space<vmem>>, vector<8x256xbf16>,
    %c208 = arith.constant 208 : index
    %c0_48 = arith.constant 0 : index
    %106 = vector.load %arg6[%c208, %c0_48] : memref<384x256xbf16, #tpu.memory_space<vmem>>, vector<8x256xbf16>
    tpu.vector_store %arg6[%c208, %c0_48], %101 {strides = array<i32>} : memref<384x256xbf16, #tpu.memory_space<vmem>>, vector<8x256xbf16>,
    %c320 = arith.constant 320 : index
    %c0_49 = arith.constant 0 : index
    %107 = vector.load %arg6[%c320, %c0_49] : memref<384x256xbf16, #tpu.memory_space<vmem>>, vector<8x256xbf16>
    tpu.vector_store %arg6[%c320, %c0_49], %104 {strides = array<i32>} : memref<384x256xbf16, #tpu.memory_space<vmem>>, vector<8x256xbf16>,
    %c5_i32_50 = arith.constant 5 : i32
    %108 = tpu.dynamic_rotate %5 by %c5_i32_50 dim 0 : vector<8x256xf32>, i32 -> vector<8x256xf32>
    %109 = arith.truncf %108 : vector<8x256xf32> to vector<8x256xbf16>
    %110 = arith.extf %109 : vector<8x256xbf16> to vector<8x256xf32>
    %111 = arith.subf %108, %110 : vector<8x256xf32>
    %112 = arith.truncf %111 : vector<8x256xf32> to vector<8x256xbf16>
    %c104 = arith.constant 104 : index
    %c0_51 = arith.constant 0 : index
    %113 = vector.load %arg6[%c104, %c0_51] : memref<384x256xbf16, #tpu.memory_space<vmem>>, vector<8x256xbf16>
    tpu.vector_store %arg6[%c104, %c0_51], %109 {strides = array<i32>} : memref<384x256xbf16, #tpu.memory_space<vmem>>, vector<8x256xbf16>,
    %c216 = arith.constant 216 : index
    %c0_52 = arith.constant 0 : index
    %114 = vector.load %arg6[%c216, %c0_52] : memref<384x256xbf16, #tpu.memory_space<vmem>>, vector<8x256xbf16>
    tpu.vector_store %arg6[%c216, %c0_52], %109 {strides = array<i32>} : memref<384x256xbf16, #tpu.memory_space<vmem>>, vector<8x256xbf16>,
    %c328 = arith.constant 328 : index
    %c0_53 = arith.constant 0 : index
    %115 = vector.load %arg6[%c328, %c0_53] : memref<384x256xbf16, #tpu.memory_space<vmem>>, vector<8x256xbf16>
    tpu.vector_store %arg6[%c328, %c0_53], %112 {strides = array<i32>} : memref<384x256xbf16, #tpu.memory_space<vmem>>, vector<8x256xbf16>,
    %cst_54 = arith.constant 0.000000e+00 : bf16
    %116 = vector.broadcast %cst_54 : bf16 to vector<48x256xbf16>
    %c336 = arith.constant 336 : index
    %c0_55 = arith.constant 0 : index
    %117 = vector.load %arg6[%c336, %c0_55] : memref<384x256xbf16, #tpu.memory_space<vmem>>, vector<48x256xbf16>
    tpu.vector_store %arg6[%c336, %c0_55], %116 {strides = array<i32>} : memref<384x256xbf16, #tpu.memory_space<vmem>>, vector<48x256xbf16>,
    %c0_56 = arith.constant 0 : index
    %c0_57 = arith.constant 0 : index
    %118 = vector.load %arg1[%c0_56, %c0_57] : memref<392x384xbf16, #tpu.memory_space<vmem>>, vector<392x384xbf16>
    %c0_58 = arith.constant 0 : index
    %c0_59 = arith.constant 0 : index
    %119 = vector.load %arg6[%c0_58, %c0_59] : memref<384x256xbf16, #tpu.memory_space<vmem>>, vector<384x256xbf16>
    %cst_60 = arith.constant dense<0.000000e+00> : vector<392x256xf32>
    %120 = tpu.matmul %118, %119, %cst_60 {dimension_numbers = #tpu.dot_dimension_numbers<[1], [0], [0], [1], [0, 0, 1, 1], [], []>} : vector<392x384xbf16>, vector<384x256xbf16>, vector<392x256xf32> -> vector<392x256xf32>
    %c0_61 = arith.constant 0 : index
    %c0_62 = arith.constant 0 : index
    %121 = vector.load %arg7[%c0_61, %c0_62] : memref<392x256xf32, #tpu.memory_space<vmem>>, vector<392x256xf32>
    tpu.vector_store %arg7[%c0_61, %c0_62], %120 {strides = array<i32>} : memref<392x256xf32, #tpu.memory_space<vmem>>, vector<392x256xf32>,
    %cst_63 = arith.constant 0.000000e+00 : f32
    %122 = vector.broadcast %cst_63 : f32 to vector<8x256xf32>
    %c0_64 = arith.constant 0 : index
    %c0_65 = arith.constant 0 : index
    %c0_66 = arith.constant 0 : index
    %123 = vector.load %arg2[%c0_64, %c0_65, %c0_66] : memref<7x1x256xf32, #tpu.memory_space<vmem>>, vector<1x1x256xf32>
    %124 = vector.shape_cast %123 : vector<1x1x256xf32> to vector<1x256xf32>
    %c0_67 = arith.constant 0 : index
    %c0_68 = arith.constant 0 : index
    %125 = vector.load %arg7[%c0_67, %c0_68] : memref<392x256xf32, #tpu.memory_space<vmem>>, vector<8x256xf32>
    %c51_i32 = arith.constant 51 : i32
    %126 = tpu.dynamic_rotate %125 by %c51_i32 dim 1 : vector<8x256xf32>, i32 -> vector<8x256xf32>
    %c0_69 = arith.constant 0 : index
    %c0_70 = arith.constant 0 : index
    %c0_71 = arith.constant 0 : index
    %127 = vector.load %arg3[%c0_69, %c0_70, %c0_71] : memref<7x1x256xf32, #tpu.memory_space<vmem>>, vector<1x1x256xf32>
    %128 = vector.shape_cast %127 : vector<1x1x256xf32> to vector<1x256xf32>
    %129 = arith.mulf %124, %128 : vector<1x256xf32>
    %130 = vector.broadcast %129 : vector<1x256xf32> to vector<8x256xf32>
    %131 = arith.mulf %126, %130 : vector<8x256xf32>
    %132 = arith.addf %122, %131 : vector<8x256xf32>
    %c8_72 = arith.constant 8 : index
    %c0_73 = arith.constant 0 : index
    %133 = vector.load %arg7[%c8_72, %c0_73] : memref<392x256xf32, #tpu.memory_space<vmem>>, vector<8x256xf32>
    %c50_i32 = arith.constant 50 : i32
    %134 = tpu.dynamic_rotate %133 by %c50_i32 dim 1 : vector<8x256xf32>, i32 -> vector<8x256xf32>
    %c1 = arith.constant 1 : index
    %c0_74 = arith.constant 0 : index
    %c0_75 = arith.constant 0 : index
    %135 = vector.load %arg3[%c1, %c0_74, %c0_75] : memref<7x1x256xf32, #tpu.memory_space<vmem>>, vector<1x1x256xf32>
    %136 = vector.shape_cast %135 : vector<1x1x256xf32> to vector<1x256xf32>
    %137 = arith.mulf %124, %136 : vector<1x256xf32>
    %138 = vector.broadcast %137 : vector<1x256xf32> to vector<8x256xf32>
    %139 = arith.mulf %134, %138 : vector<8x256xf32>
    %140 = arith.addf %132, %139 : vector<8x256xf32>
    %c16_76 = arith.constant 16 : index
    %c0_77 = arith.constant 0 : index
    %141 = vector.load %arg7[%c16_76, %c0_77] : memref<392x256xf32, #tpu.memory_space<vmem>>, vector<8x256xf32>
    %c49_i32 = arith.constant 49 : i32
    %142 = tpu.dynamic_rotate %141 by %c49_i32 dim 1 : vector<8x256xf32>, i32 -> vector<8x256xf32>
    %c2 = arith.constant 2 : index
    %c0_78 = arith.constant 0 : index
    %c0_79 = arith.constant 0 : index
    %143 = vector.load %arg3[%c2, %c0_78, %c0_79] : memref<7x1x256xf32, #tpu.memory_space<vmem>>, vector<1x1x256xf32>
    %144 = vector.shape_cast %143 : vector<1x1x256xf32> to vector<1x256xf32>
    %145 = arith.mulf %124, %144 : vector<1x256xf32>
    %146 = vector.broadcast %145 : vector<1x256xf32> to vector<8x256xf32>
    %147 = arith.mulf %142, %146 : vector<8x256xf32>
    %148 = arith.addf %140, %147 : vector<8x256xf32>
    %c24_80 = arith.constant 24 : index
    %c0_81 = arith.constant 0 : index
    %149 = vector.load %arg7[%c24_80, %c0_81] : memref<392x256xf32, #tpu.memory_space<vmem>>, vector<8x256xf32>
    %c48_i32 = arith.constant 48 : i32
    %150 = tpu.dynamic_rotate %149 by %c48_i32 dim 1 : vector<8x256xf32>, i32 -> vector<8x256xf32>
    %c3 = arith.constant 3 : index
    %c0_82 = arith.constant 0 : index
    %c0_83 = arith.constant 0 : index
    %151 = vector.load %arg3[%c3, %c0_82, %c0_83] : memref<7x1x256xf32, #tpu.memory_space<vmem>>, vector<1x1x256xf32>
    %152 = vector.shape_cast %151 : vector<1x1x256xf32> to vector<1x256xf32>
    %153 = arith.mulf %124, %152 : vector<1x256xf32>
    %154 = vector.broadcast %153 : vector<1x256xf32> to vector<8x256xf32>
    %155 = arith.mulf %150, %154 : vector<8x256xf32>
    %156 = arith.addf %148, %155 : vector<8x256xf32>
    %c32_84 = arith.constant 32 : index
    %c0_85 = arith.constant 0 : index
    %157 = vector.load %arg7[%c32_84, %c0_85] : memref<392x256xf32, #tpu.memory_space<vmem>>, vector<8x256xf32>
    %c47_i32 = arith.constant 47 : i32
    %158 = tpu.dynamic_rotate %157 by %c47_i32 dim 1 : vector<8x256xf32>, i32 -> vector<8x256xf32>
    %c4 = arith.constant 4 : index
    %c0_86 = arith.constant 0 : index
    %c0_87 = arith.constant 0 : index
    %159 = vector.load %arg3[%c4, %c0_86, %c0_87] : memref<7x1x256xf32, #tpu.memory_space<vmem>>, vector<1x1x256xf32>
    %160 = vector.shape_cast %159 : vector<1x1x256xf32> to vector<1x256xf32>
    %161 = arith.mulf %124, %160 : vector<1x256xf32>
    %162 = vector.broadcast %161 : vector<1x256xf32> to vector<8x256xf32>
    %163 = arith.mulf %158, %162 : vector<8x256xf32>
    %164 = arith.addf %156, %163 : vector<8x256xf32>
    %c40_88 = arith.constant 40 : index
    %c0_89 = arith.constant 0 : index
    %165 = vector.load %arg7[%c40_88, %c0_89] : memref<392x256xf32, #tpu.memory_space<vmem>>, vector<8x256xf32>
    %c46_i32 = arith.constant 46 : i32
    %166 = tpu.dynamic_rotate %165 by %c46_i32 dim 1 : vector<8x256xf32>, i32 -> vector<8x256xf32>
    %c5 = arith.constant 5 : index
    %c0_90 = arith.constant 0 : index
    %c0_91 = arith.constant 0 : index
    %167 = vector.load %arg3[%c5, %c0_90, %c0_91] : memref<7x1x256xf32, #tpu.memory_space<vmem>>, vector<1x1x256xf32>
    %168 = vector.shape_cast %167 : vector<1x1x256xf32> to vector<1x256xf32>
    %169 = arith.mulf %124, %168 : vector<1x256xf32>
    %170 = vector.broadcast %169 : vector<1x256xf32> to vector<8x256xf32>
    %171 = arith.mulf %166, %170 : vector<8x256xf32>
    %172 = arith.addf %164, %171 : vector<8x256xf32>
    %c48_92 = arith.constant 48 : index
    %c0_93 = arith.constant 0 : index
    %173 = vector.load %arg7[%c48_92, %c0_93] : memref<392x256xf32, #tpu.memory_space<vmem>>, vector<8x256xf32>
    %c45_i32 = arith.constant 45 : i32
    %174 = tpu.dynamic_rotate %173 by %c45_i32 dim 1 : vector<8x256xf32>, i32 -> vector<8x256xf32>
    %c6 = arith.constant 6 : index
    %c0_94 = arith.constant 0 : index
    %c0_95 = arith.constant 0 : index
    %175 = vector.load %arg3[%c6, %c0_94, %c0_95] : memref<7x1x256xf32, #tpu.memory_space<vmem>>, vector<1x1x256xf32>
    %176 = vector.shape_cast %175 : vector<1x1x256xf32> to vector<1x256xf32>
    %177 = arith.mulf %124, %176 : vector<1x256xf32>
    %178 = vector.broadcast %177 : vector<1x256xf32> to vector<8x256xf32>
    %179 = arith.mulf %174, %178 : vector<8x256xf32>
    %180 = arith.addf %172, %179 : vector<8x256xf32>
    %c1_96 = arith.constant 1 : index
    %c0_97 = arith.constant 0 : index
    %c0_98 = arith.constant 0 : index
    %181 = vector.load %arg2[%c1_96, %c0_97, %c0_98] : memref<7x1x256xf32, #tpu.memory_space<vmem>>, vector<1x1x256xf32>
    %182 = vector.shape_cast %181 : vector<1x1x256xf32> to vector<1x256xf32>
    %c56_99 = arith.constant 56 : index
    %c0_100 = arith.constant 0 : index
    %183 = vector.load %arg7[%c56_99, %c0_100] : memref<392x256xf32, #tpu.memory_space<vmem>>, vector<8x256xf32>
    %c35_i32 = arith.constant 35 : i32
    %184 = tpu.dynamic_rotate %183 by %c35_i32 dim 1 : vector<8x256xf32>, i32 -> vector<8x256xf32>
    %c0_101 = arith.constant 0 : index
    %c0_102 = arith.constant 0 : index
    %c0_103 = arith.constant 0 : index
    %185 = vector.load %arg3[%c0_101, %c0_102, %c0_103] : memref<7x1x256xf32, #tpu.memory_space<vmem>>, vector<1x1x256xf32>
    %186 = vector.shape_cast %185 : vector<1x1x256xf32> to vector<1x256xf32>
    %187 = arith.mulf %182, %186 : vector<1x256xf32>
    %188 = vector.broadcast %187 : vector<1x256xf32> to vector<8x256xf32>
    %189 = arith.mulf %184, %188 : vector<8x256xf32>
    %190 = arith.addf %180, %189 : vector<8x256xf32>
    %c64_104 = arith.constant 64 : index
    %c0_105 = arith.constant 0 : index
    %191 = vector.load %arg7[%c64_104, %c0_105] : memref<392x256xf32, #tpu.memory_space<vmem>>, vector<8x256xf32>
    %c34_i32 = arith.constant 34 : i32
    %192 = tpu.dynamic_rotate %191 by %c34_i32 dim 1 : vector<8x256xf32>, i32 -> vector<8x256xf32>
    %c1_106 = arith.constant 1 : index
    %c0_107 = arith.constant 0 : index
    %c0_108 = arith.constant 0 : index
    %193 = vector.load %arg3[%c1_106, %c0_107, %c0_108] : memref<7x1x256xf32, #tpu.memory_space<vmem>>, vector<1x1x256xf32>
    %194 = vector.shape_cast %193 : vector<1x1x256xf32> to vector<1x256xf32>
    %195 = arith.mulf %182, %194 : vector<1x256xf32>
    %196 = vector.broadcast %195 : vector<1x256xf32> to vector<8x256xf32>
    %197 = arith.mulf %192, %196 : vector<8x256xf32>
    %198 = arith.addf %190, %197 : vector<8x256xf32>
    %c72_109 = arith.constant 72 : index
    %c0_110 = arith.constant 0 : index
    %199 = vector.load %arg7[%c72_109, %c0_110] : memref<392x256xf32, #tpu.memory_space<vmem>>, vector<8x256xf32>
    %c33_i32 = arith.constant 33 : i32
    %200 = tpu.dynamic_rotate %199 by %c33_i32 dim 1 : vector<8x256xf32>, i32 -> vector<8x256xf32>
    %c2_111 = arith.constant 2 : index
    %c0_112 = arith.constant 0 : index
    %c0_113 = arith.constant 0 : index
    %201 = vector.load %arg3[%c2_111, %c0_112, %c0_113] : memref<7x1x256xf32, #tpu.memory_space<vmem>>, vector<1x1x256xf32>
    %202 = vector.shape_cast %201 : vector<1x1x256xf32> to vector<1x256xf32>
    %203 = arith.mulf %182, %202 : vector<1x256xf32>
    %204 = vector.broadcast %203 : vector<1x256xf32> to vector<8x256xf32>
    %205 = arith.mulf %200, %204 : vector<8x256xf32>
    %206 = arith.addf %198, %205 : vector<8x256xf32>
    %c80_114 = arith.constant 80 : index
    %c0_115 = arith.constant 0 : index
    %207 = vector.load %arg7[%c80_114, %c0_115] : memref<392x256xf32, #tpu.memory_space<vmem>>, vector<8x256xf32>
    %c32_i32 = arith.constant 32 : i32
    %208 = tpu.dynamic_rotate %207 by %c32_i32 dim 1 : vector<8x256xf32>, i32 -> vector<8x256xf32>
    %c3_116 = arith.constant 3 : index
    %c0_117 = arith.constant 0 : index
    %c0_118 = arith.constant 0 : index
    %209 = vector.load %arg3[%c3_116, %c0_117, %c0_118] : memref<7x1x256xf32, #tpu.memory_space<vmem>>, vector<1x1x256xf32>
    %210 = vector.shape_cast %209 : vector<1x1x256xf32> to vector<1x256xf32>
    %211 = arith.mulf %182, %210 : vector<1x256xf32>
    %212 = vector.broadcast %211 : vector<1x256xf32> to vector<8x256xf32>
    %213 = arith.mulf %208, %212 : vector<8x256xf32>
    %214 = arith.addf %206, %213 : vector<8x256xf32>
    %c88_119 = arith.constant 88 : index
    %c0_120 = arith.constant 0 : index
    %215 = vector.load %arg7[%c88_119, %c0_120] : memref<392x256xf32, #tpu.memory_space<vmem>>, vector<8x256xf32>
    %c31_i32 = arith.constant 31 : i32
    %216 = tpu.dynamic_rotate %215 by %c31_i32 dim 1 : vector<8x256xf32>, i32 -> vector<8x256xf32>
    %c4_121 = arith.constant 4 : index
    %c0_122 = arith.constant 0 : index
    %c0_123 = arith.constant 0 : index
    %217 = vector.load %arg3[%c4_121, %c0_122, %c0_123] : memref<7x1x256xf32, #tpu.memory_space<vmem>>, vector<1x1x256xf32>
    %218 = vector.shape_cast %217 : vector<1x1x256xf32> to vector<1x256xf32>
    %219 = arith.mulf %182, %218 : vector<1x256xf32>
    %220 = vector.broadcast %219 : vector<1x256xf32> to vector<8x256xf32>
    %221 = arith.mulf %216, %220 : vector<8x256xf32>
    %222 = arith.addf %214, %221 : vector<8x256xf32>
    %c96_124 = arith.constant 96 : index
    %c0_125 = arith.constant 0 : index
    %223 = vector.load %arg7[%c96_124, %c0_125] : memref<392x256xf32, #tpu.memory_space<vmem>>, vector<8x256xf32>
    %c30_i32 = arith.constant 30 : i32
    %224 = tpu.dynamic_rotate %223 by %c30_i32 dim 1 : vector<8x256xf32>, i32 -> vector<8x256xf32>
    %c5_126 = arith.constant 5 : index
    %c0_127 = arith.constant 0 : index
    %c0_128 = arith.constant 0 : index
    %225 = vector.load %arg3[%c5_126, %c0_127, %c0_128] : memref<7x1x256xf32, #tpu.memory_space<vmem>>, vector<1x1x256xf32>
    %226 = vector.shape_cast %225 : vector<1x1x256xf32> to vector<1x256xf32>
    %227 = arith.mulf %182, %226 : vector<1x256xf32>
    %228 = vector.broadcast %227 : vector<1x256xf32> to vector<8x256xf32>
    %229 = arith.mulf %224, %228 : vector<8x256xf32>
    %230 = arith.addf %222, %229 : vector<8x256xf32>
    %c104_129 = arith.constant 104 : index
    %c0_130 = arith.constant 0 : index
    %231 = vector.load %arg7[%c104_129, %c0_130] : memref<392x256xf32, #tpu.memory_space<vmem>>, vector<8x256xf32>
    %c29_i32 = arith.constant 29 : i32
    %232 = tpu.dynamic_rotate %231 by %c29_i32 dim 1 : vector<8x256xf32>, i32 -> vector<8x256xf32>
    %c6_131 = arith.constant 6 : index
    %c0_132 = arith.constant 0 : index
    %c0_133 = arith.constant 0 : index
    %233 = vector.load %arg3[%c6_131, %c0_132, %c0_133] : memref<7x1x256xf32, #tpu.memory_space<vmem>>, vector<1x1x256xf32>
    %234 = vector.shape_cast %233 : vector<1x1x256xf32> to vector<1x256xf32>
    %235 = arith.mulf %182, %234 : vector<1x256xf32>
    %236 = vector.broadcast %235 : vector<1x256xf32> to vector<8x256xf32>
    %237 = arith.mulf %232, %236 : vector<8x256xf32>
    %238 = arith.addf %230, %237 : vector<8x256xf32>
    %c2_134 = arith.constant 2 : index
    %c0_135 = arith.constant 0 : index
    %c0_136 = arith.constant 0 : index
    %239 = vector.load %arg2[%c2_134, %c0_135, %c0_136] : memref<7x1x256xf32, #tpu.memory_space<vmem>>, vector<1x1x256xf32>
    %240 = vector.shape_cast %239 : vector<1x1x256xf32> to vector<1x256xf32>
    %c112_137 = arith.constant 112 : index
    %c0_138 = arith.constant 0 : index
    %241 = vector.load %arg7[%c112_137, %c0_138] : memref<392x256xf32, #tpu.memory_space<vmem>>, vector<8x256xf32>
    %c19_i32 = arith.constant 19 : i32
    %242 = tpu.dynamic_rotate %241 by %c19_i32 dim 1 : vector<8x256xf32>, i32 -> vector<8x256xf32>
    %c0_139 = arith.constant 0 : index
    %c0_140 = arith.constant 0 : index
    %c0_141 = arith.constant 0 : index
    %243 = vector.load %arg3[%c0_139, %c0_140, %c0_141] : memref<7x1x256xf32, #tpu.memory_space<vmem>>, vector<1x1x256xf32>
    %244 = vector.shape_cast %243 : vector<1x1x256xf32> to vector<1x256xf32>
    %245 = arith.mulf %240, %244 : vector<1x256xf32>
    %246 = vector.broadcast %245 : vector<1x256xf32> to vector<8x256xf32>
    %247 = arith.mulf %242, %246 : vector<8x256xf32>
    %248 = arith.addf %238, %247 : vector<8x256xf32>
    %c120_142 = arith.constant 120 : index
    %c0_143 = arith.constant 0 : index
    %249 = vector.load %arg7[%c120_142, %c0_143] : memref<392x256xf32, #tpu.memory_space<vmem>>, vector<8x256xf32>
    %c18_i32 = arith.constant 18 : i32
    %250 = tpu.dynamic_rotate %249 by %c18_i32 dim 1 : vector<8x256xf32>, i32 -> vector<8x256xf32>
    %c1_144 = arith.constant 1 : index
    %c0_145 = arith.constant 0 : index
    %c0_146 = arith.constant 0 : index
    %251 = vector.load %arg3[%c1_144, %c0_145, %c0_146] : memref<7x1x256xf32, #tpu.memory_space<vmem>>, vector<1x1x256xf32>
    %252 = vector.shape_cast %251 : vector<1x1x256xf32> to vector<1x256xf32>
    %253 = arith.mulf %240, %252 : vector<1x256xf32>
    %254 = vector.broadcast %253 : vector<1x256xf32> to vector<8x256xf32>
    %255 = arith.mulf %250, %254 : vector<8x256xf32>
    %256 = arith.addf %248, %255 : vector<8x256xf32>
    %c128_147 = arith.constant 128 : index
    %c0_148 = arith.constant 0 : index
    %257 = vector.load %arg7[%c128_147, %c0_148] : memref<392x256xf32, #tpu.memory_space<vmem>>, vector<8x256xf32>
    %c17_i32 = arith.constant 17 : i32
    %258 = tpu.dynamic_rotate %257 by %c17_i32 dim 1 : vector<8x256xf32>, i32 -> vector<8x256xf32>
    %c2_149 = arith.constant 2 : index
    %c0_150 = arith.constant 0 : index
    %c0_151 = arith.constant 0 : index
    %259 = vector.load %arg3[%c2_149, %c0_150, %c0_151] : memref<7x1x256xf32, #tpu.memory_space<vmem>>, vector<1x1x256xf32>
    %260 = vector.shape_cast %259 : vector<1x1x256xf32> to vector<1x256xf32>
    %261 = arith.mulf %240, %260 : vector<1x256xf32>
    %262 = vector.broadcast %261 : vector<1x256xf32> to vector<8x256xf32>
    %263 = arith.mulf %258, %262 : vector<8x256xf32>
    %264 = arith.addf %256, %263 : vector<8x256xf32>
    %c136_152 = arith.constant 136 : index
    %c0_153 = arith.constant 0 : index
    %265 = vector.load %arg7[%c136_152, %c0_153] : memref<392x256xf32, #tpu.memory_space<vmem>>, vector<8x256xf32>
    %c16_i32 = arith.constant 16 : i32
    %266 = tpu.dynamic_rotate %265 by %c16_i32 dim 1 : vector<8x256xf32>, i32 -> vector<8x256xf32>
    %c3_154 = arith.constant 3 : index
    %c0_155 = arith.constant 0 : index
    %c0_156 = arith.constant 0 : index
    %267 = vector.load %arg3[%c3_154, %c0_155, %c0_156] : memref<7x1x256xf32, #tpu.memory_space<vmem>>, vector<1x1x256xf32>
    %268 = vector.shape_cast %267 : vector<1x1x256xf32> to vector<1x256xf32>
    %269 = arith.mulf %240, %268 : vector<1x256xf32>
    %270 = vector.broadcast %269 : vector<1x256xf32> to vector<8x256xf32>
    %271 = arith.mulf %266, %270 : vector<8x256xf32>
    %272 = arith.addf %264, %271 : vector<8x256xf32>
    %c144_157 = arith.constant 144 : index
    %c0_158 = arith.constant 0 : index
    %273 = vector.load %arg7[%c144_157, %c0_158] : memref<392x256xf32, #tpu.memory_space<vmem>>, vector<8x256xf32>
    %c15_i32 = arith.constant 15 : i32
    %274 = tpu.dynamic_rotate %273 by %c15_i32 dim 1 : vector<8x256xf32>, i32 -> vector<8x256xf32>
    %c4_159 = arith.constant 4 : index
    %c0_160 = arith.constant 0 : index
    %c0_161 = arith.constant 0 : index
    %275 = vector.load %arg3[%c4_159, %c0_160, %c0_161] : memref<7x1x256xf32, #tpu.memory_space<vmem>>, vector<1x1x256xf32>
    %276 = vector.shape_cast %275 : vector<1x1x256xf32> to vector<1x256xf32>
    %277 = arith.mulf %240, %276 : vector<1x256xf32>
    %278 = vector.broadcast %277 : vector<1x256xf32> to vector<8x256xf32>
    %279 = arith.mulf %274, %278 : vector<8x256xf32>
    %280 = arith.addf %272, %279 : vector<8x256xf32>
    %c152_162 = arith.constant 152 : index
    %c0_163 = arith.constant 0 : index
    %281 = vector.load %arg7[%c152_162, %c0_163] : memref<392x256xf32, #tpu.memory_space<vmem>>, vector<8x256xf32>
    %c14_i32 = arith.constant 14 : i32
    %282 = tpu.dynamic_rotate %281 by %c14_i32 dim 1 : vector<8x256xf32>, i32 -> vector<8x256xf32>
    %c5_164 = arith.constant 5 : index
    %c0_165 = arith.constant 0 : index
    %c0_166 = arith.constant 0 : index
    %283 = vector.load %arg3[%c5_164, %c0_165, %c0_166] : memref<7x1x256xf32, #tpu.memory_space<vmem>>, vector<1x1x256xf32>
    %284 = vector.shape_cast %283 : vector<1x1x256xf32> to vector<1x256xf32>
    %285 = arith.mulf %240, %284 : vector<1x256xf32>
    %286 = vector.broadcast %285 : vector<1x256xf32> to vector<8x256xf32>
    %287 = arith.mulf %282, %286 : vector<8x256xf32>
    %288 = arith.addf %280, %287 : vector<8x256xf32>
    %c160_167 = arith.constant 160 : index
    %c0_168 = arith.constant 0 : index
    %289 = vector.load %arg7[%c160_167, %c0_168] : memref<392x256xf32, #tpu.memory_space<vmem>>, vector<8x256xf32>
    %c13_i32 = arith.constant 13 : i32
    %290 = tpu.dynamic_rotate %289 by %c13_i32 dim 1 : vector<8x256xf32>, i32 -> vector<8x256xf32>
    %c6_169 = arith.constant 6 : index
    %c0_170 = arith.constant 0 : index
    %c0_171 = arith.constant 0 : index
    %291 = vector.load %arg3[%c6_169, %c0_170, %c0_171] : memref<7x1x256xf32, #tpu.memory_space<vmem>>, vector<1x1x256xf32>
    %292 = vector.shape_cast %291 : vector<1x1x256xf32> to vector<1x256xf32>
    %293 = arith.mulf %240, %292 : vector<1x256xf32>
    %294 = vector.broadcast %293 : vector<1x256xf32> to vector<8x256xf32>
    %295 = arith.mulf %290, %294 : vector<8x256xf32>
    %296 = arith.addf %288, %295 : vector<8x256xf32>
    %c3_172 = arith.constant 3 : index
    %c0_173 = arith.constant 0 : index
    %c0_174 = arith.constant 0 : index
    %297 = vector.load %arg2[%c3_172, %c0_173, %c0_174] : memref<7x1x256xf32, #tpu.memory_space<vmem>>, vector<1x1x256xf32>
    %298 = vector.shape_cast %297 : vector<1x1x256xf32> to vector<1x256xf32>
    %c168_175 = arith.constant 168 : index
    %c0_176 = arith.constant 0 : index
    %299 = vector.load %arg7[%c168_175, %c0_176] : memref<392x256xf32, #tpu.memory_space<vmem>>, vector<8x256xf32>
    %c3_i32_177 = arith.constant 3 : i32
    %300 = tpu.dynamic_rotate %299 by %c3_i32_177 dim 1 : vector<8x256xf32>, i32 -> vector<8x256xf32>
    %c0_178 = arith.constant 0 : index
    %c0_179 = arith.constant 0 : index
    %c0_180 = arith.constant 0 : index
    %301 = vector.load %arg3[%c0_178, %c0_179, %c0_180] : memref<7x1x256xf32, #tpu.memory_space<vmem>>, vector<1x1x256xf32>
    %302 = vector.shape_cast %301 : vector<1x1x256xf32> to vector<1x256xf32>
    %303 = arith.mulf %298, %302 : vector<1x256xf32>
    %304 = vector.broadcast %303 : vector<1x256xf32> to vector<8x256xf32>
    %305 = arith.mulf %300, %304 : vector<8x256xf32>
    %306 = arith.addf %296, %305 : vector<8x256xf32>
    %c176_181 = arith.constant 176 : index
    %c0_182 = arith.constant 0 : index
    %307 = vector.load %arg7[%c176_181, %c0_182] : memref<392x256xf32, #tpu.memory_space<vmem>>, vector<8x256xf32>
    %c2_i32_183 = arith.constant 2 : i32
    %308 = tpu.dynamic_rotate %307 by %c2_i32_183 dim 1 : vector<8x256xf32>, i32 -> vector<8x256xf32>
    %c1_184 = arith.constant 1 : index
    %c0_185 = arith.constant 0 : index
    %c0_186 = arith.constant 0 : index
    %309 = vector.load %arg3[%c1_184, %c0_185, %c0_186] : memref<7x1x256xf32, #tpu.memory_space<vmem>>, vector<1x1x256xf32>
    %310 = vector.shape_cast %309 : vector<1x1x256xf32> to vector<1x256xf32>
    %311 = arith.mulf %298, %310 : vector<1x256xf32>
    %312 = vector.broadcast %311 : vector<1x256xf32> to vector<8x256xf32>
    %313 = arith.mulf %308, %312 : vector<8x256xf32>
    %314 = arith.addf %306, %313 : vector<8x256xf32>
    %c184_187 = arith.constant 184 : index
    %c0_188 = arith.constant 0 : index
    %315 = vector.load %arg7[%c184_187, %c0_188] : memref<392x256xf32, #tpu.memory_space<vmem>>, vector<8x256xf32>
    %c1_i32_189 = arith.constant 1 : i32
    %316 = tpu.dynamic_rotate %315 by %c1_i32_189 dim 1 : vector<8x256xf32>, i32 -> vector<8x256xf32>
    %c2_190 = arith.constant 2 : index
    %c0_191 = arith.constant 0 : index
    %c0_192 = arith.constant 0 : index
    %317 = vector.load %arg3[%c2_190, %c0_191, %c0_192] : memref<7x1x256xf32, #tpu.memory_space<vmem>>, vector<1x1x256xf32>
    %318 = vector.shape_cast %317 : vector<1x1x256xf32> to vector<1x256xf32>
    %319 = arith.mulf %298, %318 : vector<1x256xf32>
    %320 = vector.broadcast %319 : vector<1x256xf32> to vector<8x256xf32>
    %321 = arith.mulf %316, %320 : vector<8x256xf32>
    %322 = arith.addf %314, %321 : vector<8x256xf32>
    %c192_193 = arith.constant 192 : index
    %c0_194 = arith.constant 0 : index
    %323 = vector.load %arg7[%c192_193, %c0_194] : memref<392x256xf32, #tpu.memory_space<vmem>>, vector<8x256xf32>
    %324 = arith.addf %322, %323 : vector<8x256xf32>
    %c200_195 = arith.constant 200 : index
    %c0_196 = arith.constant 0 : index
    %325 = vector.load %arg7[%c200_195, %c0_196] : memref<392x256xf32, #tpu.memory_space<vmem>>, vector<8x256xf32>
    %c255_i32 = arith.constant 255 : i32
    %326 = tpu.dynamic_rotate %325 by %c255_i32 dim 1 : vector<8x256xf32>, i32 -> vector<8x256xf32>
    %c4_197 = arith.constant 4 : index
    %c0_198 = arith.constant 0 : index
    %c0_199 = arith.constant 0 : index
    %327 = vector.load %arg3[%c4_197, %c0_198, %c0_199] : memref<7x1x256xf32, #tpu.memory_space<vmem>>, vector<1x1x256xf32>
    %328 = vector.shape_cast %327 : vector<1x1x256xf32> to vector<1x256xf32>
    %329 = arith.mulf %298, %328 : vector<1x256xf32>
    %330 = vector.broadcast %329 : vector<1x256xf32> to vector<8x256xf32>
    %331 = arith.mulf %326, %330 : vector<8x256xf32>
    %332 = arith.addf %324, %331 : vector<8x256xf32>
    %c208_200 = arith.constant 208 : index
    %c0_201 = arith.constant 0 : index
    %333 = vector.load %arg7[%c208_200, %c0_201] : memref<392x256xf32, #tpu.memory_space<vmem>>, vector<8x256xf32>
    %c254_i32 = arith.constant 254 : i32
    %334 = tpu.dynamic_rotate %333 by %c254_i32 dim 1 : vector<8x256xf32>, i32 -> vector<8x256xf32>
    %c5_202 = arith.constant 5 : index
    %c0_203 = arith.constant 0 : index
    %c0_204 = arith.constant 0 : index
    %335 = vector.load %arg3[%c5_202, %c0_203, %c0_204] : memref<7x1x256xf32, #tpu.memory_space<vmem>>, vector<1x1x256xf32>
    %336 = vector.shape_cast %335 : vector<1x1x256xf32> to vector<1x256xf32>
    %337 = arith.mulf %298, %336 : vector<1x256xf32>
    %338 = vector.broadcast %337 : vector<1x256xf32> to vector<8x256xf32>
    %339 = arith.mulf %334, %338 : vector<8x256xf32>
    %340 = arith.addf %332, %339 : vector<8x256xf32>
    %c216_205 = arith.constant 216 : index
    %c0_206 = arith.constant 0 : index
    %341 = vector.load %arg7[%c216_205, %c0_206] : memref<392x256xf32, #tpu.memory_space<vmem>>, vector<8x256xf32>
    %c253_i32 = arith.constant 253 : i32
    %342 = tpu.dynamic_rotate %341 by %c253_i32 dim 1 : vector<8x256xf32>, i32 -> vector<8x256xf32>
    %c6_207 = arith.constant 6 : index
    %c0_208 = arith.constant 0 : index
    %c0_209 = arith.constant 0 : index
    %343 = vector.load %arg3[%c6_207, %c0_208, %c0_209] : memref<7x1x256xf32, #tpu.memory_space<vmem>>, vector<1x1x256xf32>
    %344 = vector.shape_cast %343 : vector<1x1x256xf32> to vector<1x256xf32>
    %345 = arith.mulf %298, %344 : vector<1x256xf32>
    %346 = vector.broadcast %345 : vector<1x256xf32> to vector<8x256xf32>
    %347 = arith.mulf %342, %346 : vector<8x256xf32>
    %348 = arith.addf %340, %347 : vector<8x256xf32>
    %c4_210 = arith.constant 4 : index
    %c0_211 = arith.constant 0 : index
    %c0_212 = arith.constant 0 : index
    %349 = vector.load %arg2[%c4_210, %c0_211, %c0_212] : memref<7x1x256xf32, #tpu.memory_space<vmem>>, vector<1x1x256xf32>
    %350 = vector.shape_cast %349 : vector<1x1x256xf32> to vector<1x256xf32>
    %c224_213 = arith.constant 224 : index
    %c0_214 = arith.constant 0 : index
    %351 = vector.load %arg7[%c224_213, %c0_214] : memref<392x256xf32, #tpu.memory_space<vmem>>, vector<8x256xf32>
    %c243_i32 = arith.constant 243 : i32
    %352 = tpu.dynamic_rotate %351 by %c243_i32 dim 1 : vector<8x256xf32>, i32 -> vector<8x256xf32>
    %c0_215 = arith.constant 0 : index
    %c0_216 = arith.constant 0 : index
    %c0_217 = arith.constant 0 : index
    %353 = vector.load %arg3[%c0_215, %c0_216, %c0_217] : memref<7x1x256xf32, #tpu.memory_space<vmem>>, vector<1x1x256xf32>
    %354 = vector.shape_cast %353 : vector<1x1x256xf32> to vector<1x256xf32>
    %355 = arith.mulf %350, %354 : vector<1x256xf32>
    %356 = vector.broadcast %355 : vector<1x256xf32> to vector<8x256xf32>
    %357 = arith.mulf %352, %356 : vector<8x256xf32>
    %358 = arith.addf %348, %357 : vector<8x256xf32>
    %c232_218 = arith.constant 232 : index
    %c0_219 = arith.constant 0 : index
    %359 = vector.load %arg7[%c232_218, %c0_219] : memref<392x256xf32, #tpu.memory_space<vmem>>, vector<8x256xf32>
    %c242_i32 = arith.constant 242 : i32
    %360 = tpu.dynamic_rotate %359 by %c242_i32 dim 1 : vector<8x256xf32>, i32 -> vector<8x256xf32>
    %c1_220 = arith.constant 1 : index
    %c0_221 = arith.constant 0 : index
    %c0_222 = arith.constant 0 : index
    %361 = vector.load %arg3[%c1_220, %c0_221, %c0_222] : memref<7x1x256xf32, #tpu.memory_space<vmem>>, vector<1x1x256xf32>
    %362 = vector.shape_cast %361 : vector<1x1x256xf32> to vector<1x256xf32>
    %363 = arith.mulf %350, %362 : vector<1x256xf32>
    %364 = vector.broadcast %363 : vector<1x256xf32> to vector<8x256xf32>
    %365 = arith.mulf %360, %364 : vector<8x256xf32>
    %366 = arith.addf %358, %365 : vector<8x256xf32>
    %c240_223 = arith.constant 240 : index
    %c0_224 = arith.constant 0 : index
    %367 = vector.load %arg7[%c240_223, %c0_224] : memref<392x256xf32, #tpu.memory_space<vmem>>, vector<8x256xf32>
    %c241_i32 = arith.constant 241 : i32
    %368 = tpu.dynamic_rotate %367 by %c241_i32 dim 1 : vector<8x256xf32>, i32 -> vector<8x256xf32>
    %c2_225 = arith.constant 2 : index
    %c0_226 = arith.constant 0 : index
    %c0_227 = arith.constant 0 : index
    %369 = vector.load %arg3[%c2_225, %c0_226, %c0_227] : memref<7x1x256xf32, #tpu.memory_space<vmem>>, vector<1x1x256xf32>
    %370 = vector.shape_cast %369 : vector<1x1x256xf32> to vector<1x256xf32>
    %371 = arith.mulf %350, %370 : vector<1x256xf32>
    %372 = vector.broadcast %371 : vector<1x256xf32> to vector<8x256xf32>
    %373 = arith.mulf %368, %372 : vector<8x256xf32>
    %374 = arith.addf %366, %373 : vector<8x256xf32>
    %c248_228 = arith.constant 248 : index
    %c0_229 = arith.constant 0 : index
    %375 = vector.load %arg7[%c248_228, %c0_229] : memref<392x256xf32, #tpu.memory_space<vmem>>, vector<8x256xf32>
    %c240_i32 = arith.constant 240 : i32
    %376 = tpu.dynamic_rotate %375 by %c240_i32 dim 1 : vector<8x256xf32>, i32 -> vector<8x256xf32>
    %c3_230 = arith.constant 3 : index
    %c0_231 = arith.constant 0 : index
    %c0_232 = arith.constant 0 : index
    %377 = vector.load %arg3[%c3_230, %c0_231, %c0_232] : memref<7x1x256xf32, #tpu.memory_space<vmem>>, vector<1x1x256xf32>
    %378 = vector.shape_cast %377 : vector<1x1x256xf32> to vector<1x256xf32>
    %379 = arith.mulf %350, %378 : vector<1x256xf32>
    %380 = vector.broadcast %379 : vector<1x256xf32> to vector<8x256xf32>
    %381 = arith.mulf %376, %380 : vector<8x256xf32>
    %382 = arith.addf %374, %381 : vector<8x256xf32>
    %c256_233 = arith.constant 256 : index
    %c0_234 = arith.constant 0 : index
    %383 = vector.load %arg7[%c256_233, %c0_234] : memref<392x256xf32, #tpu.memory_space<vmem>>, vector<8x256xf32>
    %c239_i32 = arith.constant 239 : i32
    %384 = tpu.dynamic_rotate %383 by %c239_i32 dim 1 : vector<8x256xf32>, i32 -> vector<8x256xf32>
    %c4_235 = arith.constant 4 : index
    %c0_236 = arith.constant 0 : index
    %c0_237 = arith.constant 0 : index
    %385 = vector.load %arg3[%c4_235, %c0_236, %c0_237] : memref<7x1x256xf32, #tpu.memory_space<vmem>>, vector<1x1x256xf32>
    %386 = vector.shape_cast %385 : vector<1x1x256xf32> to vector<1x256xf32>
    %387 = arith.mulf %350, %386 : vector<1x256xf32>
    %388 = vector.broadcast %387 : vector<1x256xf32> to vector<8x256xf32>
    %389 = arith.mulf %384, %388 : vector<8x256xf32>
    %390 = arith.addf %382, %389 : vector<8x256xf32>
    %c264_238 = arith.constant 264 : index
    %c0_239 = arith.constant 0 : index
    %391 = vector.load %arg7[%c264_238, %c0_239] : memref<392x256xf32, #tpu.memory_space<vmem>>, vector<8x256xf32>
    %c238_i32 = arith.constant 238 : i32
    %392 = tpu.dynamic_rotate %391 by %c238_i32 dim 1 : vector<8x256xf32>, i32 -> vector<8x256xf32>
    %c5_240 = arith.constant 5 : index
    %c0_241 = arith.constant 0 : index
    %c0_242 = arith.constant 0 : index
    %393 = vector.load %arg3[%c5_240, %c0_241, %c0_242] : memref<7x1x256xf32, #tpu.memory_space<vmem>>, vector<1x1x256xf32>
    %394 = vector.shape_cast %393 : vector<1x1x256xf32> to vector<1x256xf32>
    %395 = arith.mulf %350, %394 : vector<1x256xf32>
    %396 = vector.broadcast %395 : vector<1x256xf32> to vector<8x256xf32>
    %397 = arith.mulf %392, %396 : vector<8x256xf32>
    %398 = arith.addf %390, %397 : vector<8x256xf32>
    %c272_243 = arith.constant 272 : index
    %c0_244 = arith.constant 0 : index
    %399 = vector.load %arg7[%c272_243, %c0_244] : memref<392x256xf32, #tpu.memory_space<vmem>>, vector<8x256xf32>
    %c237_i32 = arith.constant 237 : i32
    %400 = tpu.dynamic_rotate %399 by %c237_i32 dim 1 : vector<8x256xf32>, i32 -> vector<8x256xf32>
    %c6_245 = arith.constant 6 : index
    %c0_246 = arith.constant 0 : index
    %c0_247 = arith.constant 0 : index
    %401 = vector.load %arg3[%c6_245, %c0_246, %c0_247] : memref<7x1x256xf32, #tpu.memory_space<vmem>>, vector<1x1x256xf32>
    %402 = vector.shape_cast %401 : vector<1x1x256xf32> to vector<1x256xf32>
    %403 = arith.mulf %350, %402 : vector<1x256xf32>
    %404 = vector.broadcast %403 : vector<1x256xf32> to vector<8x256xf32>
    %405 = arith.mulf %400, %404 : vector<8x256xf32>
    %406 = arith.addf %398, %405 : vector<8x256xf32>
    %c5_248 = arith.constant 5 : index
    %c0_249 = arith.constant 0 : index
    %c0_250 = arith.constant 0 : index
    %407 = vector.load %arg2[%c5_248, %c0_249, %c0_250] : memref<7x1x256xf32, #tpu.memory_space<vmem>>, vector<1x1x256xf32>
    %408 = vector.shape_cast %407 : vector<1x1x256xf32> to vector<1x256xf32>
    %c280_251 = arith.constant 280 : index
    %c0_252 = arith.constant 0 : index
    %409 = vector.load %arg7[%c280_251, %c0_252] : memref<392x256xf32, #tpu.memory_space<vmem>>, vector<8x256xf32>
    %c227_i32 = arith.constant 227 : i32
    %410 = tpu.dynamic_rotate %409 by %c227_i32 dim 1 : vector<8x256xf32>, i32 -> vector<8x256xf32>
    %c0_253 = arith.constant 0 : index
    %c0_254 = arith.constant 0 : index
    %c0_255 = arith.constant 0 : index
    %411 = vector.load %arg3[%c0_253, %c0_254, %c0_255] : memref<7x1x256xf32, #tpu.memory_space<vmem>>, vector<1x1x256xf32>
    %412 = vector.shape_cast %411 : vector<1x1x256xf32> to vector<1x256xf32>
    %413 = arith.mulf %408, %412 : vector<1x256xf32>
    %414 = vector.broadcast %413 : vector<1x256xf32> to vector<8x256xf32>
    %415 = arith.mulf %410, %414 : vector<8x256xf32>
    %416 = arith.addf %406, %415 : vector<8x256xf32>
    %c288_256 = arith.constant 288 : index
    %c0_257 = arith.constant 0 : index
    %417 = vector.load %arg7[%c288_256, %c0_257] : memref<392x256xf32, #tpu.memory_space<vmem>>, vector<8x256xf32>
    %c226_i32 = arith.constant 226 : i32
    %418 = tpu.dynamic_rotate %417 by %c226_i32 dim 1 : vector<8x256xf32>, i32 -> vector<8x256xf32>
    %c1_258 = arith.constant 1 : index
    %c0_259 = arith.constant 0 : index
    %c0_260 = arith.constant 0 : index
    %419 = vector.load %arg3[%c1_258, %c0_259, %c0_260] : memref<7x1x256xf32, #tpu.memory_space<vmem>>, vector<1x1x256xf32>
    %420 = vector.shape_cast %419 : vector<1x1x256xf32> to vector<1x256xf32>
    %421 = arith.mulf %408, %420 : vector<1x256xf32>
    %422 = vector.broadcast %421 : vector<1x256xf32> to vector<8x256xf32>
    %423 = arith.mulf %418, %422 : vector<8x256xf32>
    %424 = arith.addf %416, %423 : vector<8x256xf32>
    %c296_261 = arith.constant 296 : index
    %c0_262 = arith.constant 0 : index
    %425 = vector.load %arg7[%c296_261, %c0_262] : memref<392x256xf32, #tpu.memory_space<vmem>>, vector<8x256xf32>
    %c225_i32 = arith.constant 225 : i32
    %426 = tpu.dynamic_rotate %425 by %c225_i32 dim 1 : vector<8x256xf32>, i32 -> vector<8x256xf32>
    %c2_263 = arith.constant 2 : index
    %c0_264 = arith.constant 0 : index
    %c0_265 = arith.constant 0 : index
    %427 = vector.load %arg3[%c2_263, %c0_264, %c0_265] : memref<7x1x256xf32, #tpu.memory_space<vmem>>, vector<1x1x256xf32>
    %428 = vector.shape_cast %427 : vector<1x1x256xf32> to vector<1x256xf32>
    %429 = arith.mulf %408, %428 : vector<1x256xf32>
    %430 = vector.broadcast %429 : vector<1x256xf32> to vector<8x256xf32>
    %431 = arith.mulf %426, %430 : vector<8x256xf32>
    %432 = arith.addf %424, %431 : vector<8x256xf32>
    %c304_266 = arith.constant 304 : index
    %c0_267 = arith.constant 0 : index
    %433 = vector.load %arg7[%c304_266, %c0_267] : memref<392x256xf32, #tpu.memory_space<vmem>>, vector<8x256xf32>
    %c224_i32 = arith.constant 224 : i32
    %434 = tpu.dynamic_rotate %433 by %c224_i32 dim 1 : vector<8x256xf32>, i32 -> vector<8x256xf32>
    %c3_268 = arith.constant 3 : index
    %c0_269 = arith.constant 0 : index
    %c0_270 = arith.constant 0 : index
    %435 = vector.load %arg3[%c3_268, %c0_269, %c0_270] : memref<7x1x256xf32, #tpu.memory_space<vmem>>, vector<1x1x256xf32>
    %436 = vector.shape_cast %435 : vector<1x1x256xf32> to vector<1x256xf32>
    %437 = arith.mulf %408, %436 : vector<1x256xf32>
    %438 = vector.broadcast %437 : vector<1x256xf32> to vector<8x256xf32>
    %439 = arith.mulf %434, %438 : vector<8x256xf32>
    %440 = arith.addf %432, %439 : vector<8x256xf32>
    %c312_271 = arith.constant 312 : index
    %c0_272 = arith.constant 0 : index
    %441 = vector.load %arg7[%c312_271, %c0_272] : memref<392x256xf32, #tpu.memory_space<vmem>>, vector<8x256xf32>
    %c223_i32 = arith.constant 223 : i32
    %442 = tpu.dynamic_rotate %441 by %c223_i32 dim 1 : vector<8x256xf32>, i32 -> vector<8x256xf32>
    %c4_273 = arith.constant 4 : index
    %c0_274 = arith.constant 0 : index
    %c0_275 = arith.constant 0 : index
    %443 = vector.load %arg3[%c4_273, %c0_274, %c0_275] : memref<7x1x256xf32, #tpu.memory_space<vmem>>, vector<1x1x256xf32>
    %444 = vector.shape_cast %443 : vector<1x1x256xf32> to vector<1x256xf32>
    %445 = arith.mulf %408, %444 : vector<1x256xf32>
    %446 = vector.broadcast %445 : vector<1x256xf32> to vector<8x256xf32>
    %447 = arith.mulf %442, %446 : vector<8x256xf32>
    %448 = arith.addf %440, %447 : vector<8x256xf32>
    %c320_276 = arith.constant 320 : index
    %c0_277 = arith.constant 0 : index
    %449 = vector.load %arg7[%c320_276, %c0_277] : memref<392x256xf32, #tpu.memory_space<vmem>>, vector<8x256xf32>
    %c222_i32 = arith.constant 222 : i32
    %450 = tpu.dynamic_rotate %449 by %c222_i32 dim 1 : vector<8x256xf32>, i32 -> vector<8x256xf32>
    %c5_278 = arith.constant 5 : index
    %c0_279 = arith.constant 0 : index
    %c0_280 = arith.constant 0 : index
    %451 = vector.load %arg3[%c5_278, %c0_279, %c0_280] : memref<7x1x256xf32, #tpu.memory_space<vmem>>, vector<1x1x256xf32>
    %452 = vector.shape_cast %451 : vector<1x1x256xf32> to vector<1x256xf32>
    %453 = arith.mulf %408, %452 : vector<1x256xf32>
    %454 = vector.broadcast %453 : vector<1x256xf32> to vector<8x256xf32>
    %455 = arith.mulf %450, %454 : vector<8x256xf32>
    %456 = arith.addf %448, %455 : vector<8x256xf32>
    %c328_281 = arith.constant 328 : index
    %c0_282 = arith.constant 0 : index
    %457 = vector.load %arg7[%c328_281, %c0_282] : memref<392x256xf32, #tpu.memory_space<vmem>>, vector<8x256xf32>
    %c221_i32 = arith.constant 221 : i32
    %458 = tpu.dynamic_rotate %457 by %c221_i32 dim 1 : vector<8x256xf32>, i32 -> vector<8x256xf32>
    %c6_283 = arith.constant 6 : index
    %c0_284 = arith.constant 0 : index
    %c0_285 = arith.constant 0 : index
    %459 = vector.load %arg3[%c6_283, %c0_284, %c0_285] : memref<7x1x256xf32, #tpu.memory_space<vmem>>, vector<1x1x256xf32>
    %460 = vector.shape_cast %459 : vector<1x1x256xf32> to vector<1x256xf32>
    %461 = arith.mulf %408, %460 : vector<1x256xf32>
    %462 = vector.broadcast %461 : vector<1x256xf32> to vector<8x256xf32>
    %463 = arith.mulf %458, %462 : vector<8x256xf32>
    %464 = arith.addf %456, %463 : vector<8x256xf32>
    %c6_286 = arith.constant 6 : index
    %c0_287 = arith.constant 0 : index
    %c0_288 = arith.constant 0 : index
    %465 = vector.load %arg2[%c6_286, %c0_287, %c0_288] : memref<7x1x256xf32, #tpu.memory_space<vmem>>, vector<1x1x256xf32>
    %466 = vector.shape_cast %465 : vector<1x1x256xf32> to vector<1x256xf32>
    %c336_289 = arith.constant 336 : index
    %c0_290 = arith.constant 0 : index
    %467 = vector.load %arg7[%c336_289, %c0_290] : memref<392x256xf32, #tpu.memory_space<vmem>>, vector<8x256xf32>
    %c211_i32 = arith.constant 211 : i32
    %468 = tpu.dynamic_rotate %467 by %c211_i32 dim 1 : vector<8x256xf32>, i32 -> vector<8x256xf32>
    %c0_291 = arith.constant 0 : index
    %c0_292 = arith.constant 0 : index
    %c0_293 = arith.constant 0 : index
    %469 = vector.load %arg3[%c0_291, %c0_292, %c0_293] : memref<7x1x256xf32, #tpu.memory_space<vmem>>, vector<1x1x256xf32>
    %470 = vector.shape_cast %469 : vector<1x1x256xf32> to vector<1x256xf32>
    %471 = arith.mulf %466, %470 : vector<1x256xf32>
    %472 = vector.broadcast %471 : vector<1x256xf32> to vector<8x256xf32>
    %473 = arith.mulf %468, %472 : vector<8x256xf32>
    %474 = arith.addf %464, %473 : vector<8x256xf32>
    %c344 = arith.constant 344 : index
    %c0_294 = arith.constant 0 : index
    %475 = vector.load %arg7[%c344, %c0_294] : memref<392x256xf32, #tpu.memory_space<vmem>>, vector<8x256xf32>
    %c210_i32 = arith.constant 210 : i32
    %476 = tpu.dynamic_rotate %475 by %c210_i32 dim 1 : vector<8x256xf32>, i32 -> vector<8x256xf32>
    %c1_295 = arith.constant 1 : index
    %c0_296 = arith.constant 0 : index
    %c0_297 = arith.constant 0 : index
    %477 = vector.load %arg3[%c1_295, %c0_296, %c0_297] : memref<7x1x256xf32, #tpu.memory_space<vmem>>, vector<1x1x256xf32>
    %478 = vector.shape_cast %477 : vector<1x1x256xf32> to vector<1x256xf32>
    %479 = arith.mulf %466, %478 : vector<1x256xf32>
    %480 = vector.broadcast %479 : vector<1x256xf32> to vector<8x256xf32>
    %481 = arith.mulf %476, %480 : vector<8x256xf32>
    %482 = arith.addf %474, %481 : vector<8x256xf32>
    %c352 = arith.constant 352 : index
    %c0_298 = arith.constant 0 : index
    %483 = vector.load %arg7[%c352, %c0_298] : memref<392x256xf32, #tpu.memory_space<vmem>>, vector<8x256xf32>
    %c209_i32 = arith.constant 209 : i32
    %484 = tpu.dynamic_rotate %483 by %c209_i32 dim 1 : vector<8x256xf32>, i32 -> vector<8x256xf32>
    %c2_299 = arith.constant 2 : index
    %c0_300 = arith.constant 0 : index
    %c0_301 = arith.constant 0 : index
    %485 = vector.load %arg3[%c2_299, %c0_300, %c0_301] : memref<7x1x256xf32, #tpu.memory_space<vmem>>, vector<1x1x256xf32>
    %486 = vector.shape_cast %485 : vector<1x1x256xf32> to vector<1x256xf32>
    %487 = arith.mulf %466, %486 : vector<1x256xf32>
    %488 = vector.broadcast %487 : vector<1x256xf32> to vector<8x256xf32>
    %489 = arith.mulf %484, %488 : vector<8x256xf32>
    %490 = arith.addf %482, %489 : vector<8x256xf32>
    %c360 = arith.constant 360 : index
    %c0_302 = arith.constant 0 : index
    %491 = vector.load %arg7[%c360, %c0_302] : memref<392x256xf32, #tpu.memory_space<vmem>>, vector<8x256xf32>
    %c208_i32 = arith.constant 208 : i32
    %492 = tpu.dynamic_rotate %491 by %c208_i32 dim 1 : vector<8x256xf32>, i32 -> vector<8x256xf32>
    %c3_303 = arith.constant 3 : index
    %c0_304 = arith.constant 0 : index
    %c0_305 = arith.constant 0 : index
    %493 = vector.load %arg3[%c3_303, %c0_304, %c0_305] : memref<7x1x256xf32, #tpu.memory_space<vmem>>, vector<1x1x256xf32>
    %494 = vector.shape_cast %493 : vector<1x1x256xf32> to vector<1x256xf32>
    %495 = arith.mulf %466, %494 : vector<1x256xf32>
    %496 = vector.broadcast %495 : vector<1x256xf32> to vector<8x256xf32>
    %497 = arith.mulf %492, %496 : vector<8x256xf32>
    %498 = arith.addf %490, %497 : vector<8x256xf32>
    %c368 = arith.constant 368 : index
    %c0_306 = arith.constant 0 : index
    %499 = vector.load %arg7[%c368, %c0_306] : memref<392x256xf32, #tpu.memory_space<vmem>>, vector<8x256xf32>
    %c207_i32 = arith.constant 207 : i32
    %500 = tpu.dynamic_rotate %499 by %c207_i32 dim 1 : vector<8x256xf32>, i32 -> vector<8x256xf32>
    %c4_307 = arith.constant 4 : index
    %c0_308 = arith.constant 0 : index
    %c0_309 = arith.constant 0 : index
    %501 = vector.load %arg3[%c4_307, %c0_308, %c0_309] : memref<7x1x256xf32, #tpu.memory_space<vmem>>, vector<1x1x256xf32>
    %502 = vector.shape_cast %501 : vector<1x1x256xf32> to vector<1x256xf32>
    %503 = arith.mulf %466, %502 : vector<1x256xf32>
    %504 = vector.broadcast %503 : vector<1x256xf32> to vector<8x256xf32>
    %505 = arith.mulf %500, %504 : vector<8x256xf32>
    %506 = arith.addf %498, %505 : vector<8x256xf32>
    %c376 = arith.constant 376 : index
    %c0_310 = arith.constant 0 : index
    %507 = vector.load %arg7[%c376, %c0_310] : memref<392x256xf32, #tpu.memory_space<vmem>>, vector<8x256xf32>
    %c206_i32 = arith.constant 206 : i32
    %508 = tpu.dynamic_rotate %507 by %c206_i32 dim 1 : vector<8x256xf32>, i32 -> vector<8x256xf32>
    %c5_311 = arith.constant 5 : index
    %c0_312 = arith.constant 0 : index
    %c0_313 = arith.constant 0 : index
    %509 = vector.load %arg3[%c5_311, %c0_312, %c0_313] : memref<7x1x256xf32, #tpu.memory_space<vmem>>, vector<1x1x256xf32>
    %510 = vector.shape_cast %509 : vector<1x1x256xf32> to vector<1x256xf32>
    %511 = arith.mulf %466, %510 : vector<1x256xf32>
    %512 = vector.broadcast %511 : vector<1x256xf32> to vector<8x256xf32>
    %513 = arith.mulf %508, %512 : vector<8x256xf32>
    %514 = arith.addf %506, %513 : vector<8x256xf32>
    %c384 = arith.constant 384 : index
    %c0_314 = arith.constant 0 : index
    %515 = vector.load %arg7[%c384, %c0_314] : memref<392x256xf32, #tpu.memory_space<vmem>>, vector<8x256xf32>
    %c205_i32 = arith.constant 205 : i32
    %516 = tpu.dynamic_rotate %515 by %c205_i32 dim 1 : vector<8x256xf32>, i32 -> vector<8x256xf32>
    %c6_315 = arith.constant 6 : index
    %c0_316 = arith.constant 0 : index
    %c0_317 = arith.constant 0 : index
    %517 = vector.load %arg3[%c6_315, %c0_316, %c0_317] : memref<7x1x256xf32, #tpu.memory_space<vmem>>, vector<1x1x256xf32>
    %518 = vector.shape_cast %517 : vector<1x1x256xf32> to vector<1x256xf32>
    %519 = arith.mulf %466, %518 : vector<1x256xf32>
    %520 = vector.broadcast %519 : vector<1x256xf32> to vector<8x256xf32>
    %521 = arith.mulf %516, %520 : vector<8x256xf32>
    %522 = arith.addf %514, %521 : vector<8x256xf32>
    %cst_318 = arith.constant 5.000000e-01 : f32
    %523 = vector.broadcast %cst_318 : f32 to vector<8x256xf32>
    %524 = arith.mulf %523, %522 : vector<8x256xf32>
    %525 = math.tanh %524 : vector<8x256xf32>
    %cst_319 = arith.constant 5.000000e-01 : f32
    %526 = vector.broadcast %cst_319 : f32 to vector<8x256xf32>
    %527 = arith.mulf %526, %525 : vector<8x256xf32>
    %cst_320 = arith.constant 5.000000e-01 : f32
    %528 = vector.broadcast %cst_320 : f32 to vector<8x256xf32>
    %529 = arith.addf %527, %528 : vector<8x256xf32>
    %530 = vector.shape_cast %529 : vector<8x256xf32> to vector<1x8x256xf32>
    %531 = vector.broadcast %530 : vector<1x8x256xf32> to vector<4x8x256xf32>
    %532 = arith.mulf %531, %1 : vector<4x8x256xf32>
    %c0_321 = arith.constant 0 : index
    %c0_322 = arith.constant 0 : index
    %c0_323 = arith.constant 0 : index
    %c0_324 = arith.constant 0 : index
    %533 = vector.load %arg5[%c0_321, %c0_322, %c0_323, %c0_324] : memref<1x4x8x256xf32, #tpu.memory_space<vmem>>, vector<1x4x8x256xf32>
    %534 = vector.shape_cast %533 : vector<1x4x8x256xf32> to vector<4x8x256xf32>
    %535 = vector.shape_cast %532 : vector<4x8x256xf32> to vector<1x4x8x256xf32>
    tpu.vector_store %arg5[%c0_321, %c0_322, %c0_323, %c0_324], %535 {strides = array<i32>} : memref<1x4x8x256xf32, #tpu.memory_space<vmem>>, vector<1x4x8x256xf32>,
    return
  }
  func.func @transform_0(%arg0: i32) -> (i32, i32) {
    %c0_i32 = arith.constant 0 : i32
    %c0_i32_0 = arith.constant 0 : i32
    %c0_i32_1 = arith.constant 0 : i32
    return %c0_i32, %c0_i32_0 : i32, i32
  }
  func.func @transform_1(%arg0: i32) -> (i32, i32, i32) {
    %c0_i32 = arith.constant 0 : i32
    %c0_i32_0 = arith.constant 0 : i32
    %c0_i32_1 = arith.constant 0 : i32
    %c0_i32_2 = arith.constant 0 : i32
    return %c0_i32, %c0_i32_0, %c0_i32_1 : i32, i32, i32
  }
  func.func @transform_2(%arg0: i32) -> (i32, i32, i32) {
    %c0_i32 = arith.constant 0 : i32
    %c0_i32_0 = arith.constant 0 : i32
    %c0_i32_1 = arith.constant 0 : i32
    %c0_i32_2 = arith.constant 0 : i32
    return %c0_i32, %c0_i32_0, %c0_i32_1 : i32, i32, i32
  }
  func.func @transform_3(%arg0: i32) -> (i32, i32, i32, i32) {
    %c0_i32 = arith.constant 0 : i32
    %c0_i32_0 = arith.constant 0 : i32
    %c0_i32_1 = arith.constant 0 : i32
    %c0_i32_2 = arith.constant 0 : i32
    return %arg0, %c0_i32, %c0_i32_0, %c0_i32_1 : i32, i32, i32, i32
  }
  func.func @transform_4(%arg0: i32) -> (i32, i32, i32, i32) {
    %c0_i32 = arith.constant 0 : i32
    %c0_i32_0 = arith.constant 0 : i32
    %c0_i32_1 = arith.constant 0 : i32
    %c0_i32_2 = arith.constant 0 : i32
    return %arg0, %c0_i32, %c0_i32_0, %c0_i32_1 : i32, i32, i32, i32
  }
}

</mosaic_0001>

<llo_original>
// kernel: tpu_custom_call.1
$region0: #{tpu_custom_call.1}
  #allocation0 [shape = 'u32[]', space=smem, size = 0x4, offset = 0x4, fixed_abs, tag = 'smem constant byte address 0x4 - core index']
  #allocation1 [shape = 'u32[144,128]{1,0:T(1,128)}', space=vmem, size = 0x12000, scoped, tag = 'internal scratch']
  #allocation2 [shape = 'bf16[384,256]{1,0:T(8,128)(2,1)}', space=vmem, size = 0x30000, scoped, tag = 'scratch operand']
  #allocation3 [shape = 'f32[392,256]{1,0:T(8,128)}', space=vmem, size = 0x62000, scoped, tag = 'scratch operand']
  %s0 = inlined_call_operand.hbm [shape: bf16[392,384], index: 0, kind: input, shape index: {}]
  %s1 = inlined_call_operand.hbm [shape: f32[7,1,256], index: 1, kind: input, shape index: {}]
  %s2 = inlined_call_operand.hbm [shape: f32[7,1,256], index: 2, kind: input, shape index: {}]
  %s3 = inlined_call_operand.hbm [shape: f32[2,4,8,256], index: 3, kind: input, shape index: {}]
  %s4 = inlined_call_operand.hbm [shape: f32[2,4,8,256], index: 4, kind: output, shape index: {}]
  %s5 = sld [smem:[#allocation0]]
  $region65: #{tpu_custom_call.1} parent=0
    _
  %s7 = ssub.s32 1, %s5
  %s8 = scalar_select 0, %s7, %s5
  $region1: #{tpu_custom_call.1} parent=0
    #allocation4 [shape = 'u8[301056]{0}', space=vmem, size = 0x49800, scoped, tag = 'input window, operand 0, single buffered']
    #allocation5 [shape = 's32[2]{0}', space=sflag, size = 0x8, scoped, tag = 'scoped memory for tpu_custom_call.1']
    #allocation6 [shape = 's32[2]{0}', space=sflag, size = 0x8, scoped, tag = 'scoped memory for tpu_custom_call.1']
    #allocation7 [shape = 'u8[7168]{0}', space=vmem, size = 0x1c00, scoped, tag = 'input window, operand 1, single buffered']
    #allocation8 [shape = 's32[1]{0}', space=sflag, size = 0x4, scoped, tag = 'scoped memory for tpu_custom_call.1']
    #allocation9 [shape = 'u8[7168]{0}', space=vmem, size = 0x1c00, scoped, tag = 'input window, operand 2, single buffered']
    #allocation10 [shape = 'u8[65536]{0}', space=vmem, size = 0x10000, scoped, tag = 'input window, operand 3']
    #allocation11 [shape = 's32[2]{0}', space=sflag, size = 0x8, scoped, tag = 'scoped memory for tpu_custom_call.1']
    #allocation12 [shape = 'u8[65536]{0}', space=vmem, size = 0x10000, scoped, tag = 'output window, operand 0']
    %9 = vsyncpa [#allocation5], 0
    %10 = vsyncpa [#allocation8], 0
    %11 = vsyncpa [#allocation11], 0
    %s12 = scalar_lea.sflag [#allocation11], 1
    %13 = vsyncpa %s12, 0
    %14 = vsyncpa [#allocation6], 0
    %s15 = scalar_lea.sflag [#allocation6], 1
    %16 = vsyncpa %s15, 0
    loop: start=0, step=1, limit=4
    $region2: #{tpu_custom_call.1} parent=1 // loop_pre_header
      _
    $region3: #{tpu_custom_call.1} parent=1 // loop_header
      %s18 = sphi 0, %s22
      %p19 = scmp.ge.s32.totalorder %s18, 4
      %s26 = sphi 0, %s26
      %s28 = sphi 0, %s26
      %s29 = sphi 0, %s28
      %s43 = sphi 0, %s29
      %s47 = sphi 0, %s47
      %s49 = sphi 0, %s47
      %s50 = sphi 0, %s49
      %s64 = sphi 0, %s50
      %s68 = sphi 0, %s68
      %s70 = sphi 0, %s68
      %s71 = sphi 0, %s70
      %s85 = sphi 0, %s71
      %s91 = sphi 0, %s93
      %s94 = sphi 0, %s91
      %s95 = sphi 0, %s94
      %s111 = sphi 0, %s95
      %s117 = sphi 0, %s119
      %s120 = sphi 0, %s117
      %s121 = sphi 0, %s120
      %s137 = sphi 0, %s121
    $region4: #{tpu_custom_call.1} parent=1 // loop_header_branch
      %21 = sbr.rel (%p19) target = $region8
    $region5: #{tpu_custom_call.1} parent=1 // loop_body
      %s23 = ssub.s32 %s18, 1
      %s24 = ssub.s32 %s18, 2
      %s25 = sadd.s32 %s18, 1
      %s27 = sadd.s32 %s26, 1
      %p30 = scmp.eq.s32.totalorder %s18, 1
      %p31 = scmp.ne.s32.totalorder %s26, %s28
      %p32 = scmp.eq.s32.totalorder %s18, 0
      %p33 = por %p31, %p32
      %p34 = scmp.ne.s32.totalorder %s26, %s28
      %p35 = scmp.eq.s32.totalorder %s23, 1
      %p36 = por %p34, %p35
      %p37 = scmp.ne.s32.totalorder %s28, %s29
      %p38 = scmp.eq.s32.totalorder %s23, 0
      %p39 = por %p37, %p38
      %p40 = scmp.ne.s32.totalorder %s28, %s29
      %p41 = scmp.eq.s32.totalorder %s24, 1
      %p42 = por %p40, %p41
      %p44 = scmp.ne.s32.totalorder %s29, %s43
      %p45 = scmp.eq.s32.totalorder %s24, 0
      %p46 = por %p44, %p45
      %s48 = sadd.s32 %s47, 1
      %p51 = scmp.eq.s32.totalorder %s18, 1
      %p52 = scmp.ne.s32.totalorder %s47, %s49
      %p53 = scmp.eq.s32.totalorder %s18, 0
      %p54 = por %p52, %p53
      %p55 = scmp.ne.s32.totalorder %s47, %s49
      %p56 = scmp.eq.s32.totalorder %s23, 1
      %p57 = por %p55, %p56
      %p58 = scmp.ne.s32.totalorder %s49, %s50
      %p59 = scmp.eq.s32.totalorder %s23, 0
      %p60 = por %p58, %p59
      %p61 = scmp.ne.s32.totalorder %s49, %s50
      %p62 = scmp.eq.s32.totalorder %s24, 1
      %p63 = por %p61, %p62
      %p65 = scmp.ne.s32.totalorder %s50, %s64
      %p66 = scmp.eq.s32.totalorder %s24, 0
      %p67 = por %p65, %p66
      %s69 = sadd.s32 %s68, 1
      %p72 = scmp.eq.s32.totalorder %s18, 1
      %p73 = scmp.ne.s32.totalorder %s68, %s70
      %p74 = scmp.eq.s32.totalorder %s18, 0
      %p75 = por %p73, %p74
      %p76 = scmp.ne.s32.totalorder %s68, %s70
      %p77 = scmp.eq.s32.totalorder %s23, 1
      %p78 = por %p76, %p77
      %p79 = scmp.ne.s32.totalorder %s70, %s71
      %p80 = scmp.eq.s32.totalorder %s23, 0
      %p81 = por %p79, %p80
      %p82 = scmp.ne.s32.totalorder %s70, %s71
      %p83 = scmp.eq.s32.totalorder %s24, 1
      %p84 = por %p82, %p83
      %p86 = scmp.ne.s32.totalorder %s71, %s85
      %p87 = scmp.eq.s32.totalorder %s24, 0
      %p88 = por %p86, %p87
      %s89 = ssub.s32 %s18, %s25
      %p90 = scmp.eq.s32.totalorder %s89, 0
      %s92 = sadd.s32 %s91, 1
      %s93 = scalar_select %p90, %s91, %s92
      %p96 = pneg %p90
      %p97 = scmp.eq.s32.totalorder %s18, 1
      %p98 = por %p96, %p97
      %p99 = scmp.ne.s32.totalorder %s91, %s94
      %p100 = scmp.eq.s32.totalorder %s18, 0
      %p101 = por %p99, %p100
      %p102 = scmp.ne.s32.totalorder %s91, %s94
      %p103 = scmp.eq.s32.totalorder %s23, 1
      %p104 = por %p102, %p103
      %p105 = scmp.ne.s32.totalorder %s94, %s95
      %p106 = scmp.eq.s32.totalorder %s23, 0
      %p107 = por %p105, %p106
      %p108 = scmp.ne.s32.totalorder %s94, %s95
      %p109 = scmp.eq.s32.totalorder %s24, 1
      %p110 = por %p108, %p109
      %p112 = scmp.ne.s32.totalorder %s95, %s111
      %p113 = scmp.eq.s32.totalorder %s24, 0
      %p114 = por %p112, %p113
      %s115 = ssub.s32 %s18, %s25
      %p116 = scmp.eq.s32.totalorder %s115, 0
      %s118 = sadd.s32 %s117, 1
      %s119 = scalar_select %p116, %s117, %s118
      %p122 = pneg %p116
      %p123 = scmp.eq.s32.totalorder %s18, 1
      %p124 = por %p122, %p123
      %p125 = scmp.ne.s32.totalorder %s117, %s120
      %p126 = scmp.eq.s32.totalorder %s18, 0
      %p127 = por %p125, %p126
      %p128 = scmp.ne.s32.totalorder %s117, %s120
      %p129 = scmp.eq.s32.totalorder %s23, 1
      %p130 = por %p128, %p129
      %p131 = scmp.ne.s32.totalorder %s120, %s121
      %p132 = scmp.eq.s32.totalorder %s23, 0
      %p133 = por %p131, %p132
      %p134 = scmp.ne.s32.totalorder %s120, %s121
      %p135 = scmp.eq.s32.totalorder %s24, 1
      %p136 = por %p134, %p135
      %p138 = scmp.ne.s32.totalorder %s121, %s137
      %p139 = scmp.eq.s32.totalorder %s24, 0
      %p140 = por %p138, %p139
      %p141 = scmp.le.s32.totalorder 1, %s18
      %p142 = scmp.lt.s32.totalorder %s18, 3
      %p143 = pnand %p141, %p142
      %p144 = pneg %p143
      // Predicated region
      $region9: #{tpu_custom_call.1} parent=5 // pred_check
        _
      $region10: #{tpu_custom_call.1} parent=5 // pred_check_branch
        %146 = sbr.rel (%p143) target = $region12
      $region11: #{tpu_custom_call.1} parent=5 // pred_region
        %s147 = ssub.s32 %s18, 1
        // Predicated region
        $region13: #{tpu_custom_call.1} parent=11 // pred_check
          %p148 = pneg %p39
        $region14: #{tpu_custom_call.1} parent=11 // pred_check_branch
          %150 = sbr.rel (%p148) target = $region16
        $region15: #{tpu_custom_call.1} parent=11 // pred_region
          %s152 = ssub.s32 9408, 9408
          %153 = vsyncadd [#allocation5], %s152
          %s154 = sshll.u32 [#allocation4], 4
          %s155 = int_to_ptr.vmem [resolvable:$true] %s154
          %160 = dma.hbm_to_vmem [thread:$0]  %s0, 9408, %s155, [#allocation5], 192, 192, 12
        $region16: #{tpu_custom_call.1} parent=11 // pred_fallthru
          _
        // Predicated region
        $region17: #{tpu_custom_call.1} parent=11 // pred_check
          %p161 = pneg %p60
        $region18: #{tpu_custom_call.1} parent=11 // pred_check_branch
          %163 = sbr.rel (%p161) target = $region20
        $region19: #{tpu_custom_call.1} parent=11 // pred_region
          %s165 = ssub.s32 224, 224
          %166 = vsyncadd [#allocation8], %s165
          %s167 = sshll.u32 [#allocation7], 4
          %s168 = int_to_ptr.vmem [resolvable:$true] %s167
          %173 = dma.hbm_to_vmem [thread:$0]  %s1, 224, %s168, [#allocation8], 32, 32, 2
        $region20: #{tpu_custom_call.1} parent=11 // pred_fallthru
          _
        // Predicated region
        $region21: #{tpu_custom_call.1} parent=11 // pred_check
          %p174 = pneg %p81
        $region22: #{tpu_custom_call.1} parent=11 // pred_check_branch
          %176 = sbr.rel (%p174) target = $region24
        $region23: #{tpu_custom_call.1} parent=11 // pred_region
          %s178 = ssub.s32 224, 224
          %179 = vsyncadd [#allocation8], %s178
          %s180 = sshll.u32 [#allocation9], 4
          %s181 = int_to_ptr.vmem [resolvable:$true] %s180
          %186 = dma.hbm_to_vmem [thread:$0]  %s2, 224, %s181, [#allocation8], 32, 32, 2
        $region24: #{tpu_custom_call.1} parent=11 // pred_fallthru
          _
      $region12: #{tpu_custom_call.1} parent=5 // pred_fallthru
        _
      %p187 = scmp.lt.s32.totalorder %s18, 2
      // Predicated region
      $region25: #{tpu_custom_call.1} parent=5 // pred_check
        %p188 = pneg %p187
      $region26: #{tpu_custom_call.1} parent=5 // pred_check_branch
        %190 = sbr.rel (%p188) target = $region28
      $region27: #{tpu_custom_call.1} parent=5 // pred_region
        // Predicated region
        $region29: #{tpu_custom_call.1} parent=27 // pred_check
          %p191 = pneg %p101
        $region30: #{tpu_custom_call.1} parent=27 // pred_check_branch
          %193 = sbr.rel (%p191) target = $region32
        $region31: #{tpu_custom_call.1} parent=27 // pred_region
          %s194 = sand.u32 %s91, 1
          %s195 = scalar_lea.sflag [#allocation11], %s194
          %s196 = sand.u32 %s91, 1
          %s197 = smul.addr %s196, 64
          %s198 = scalar_lea.vmem [#allocation10], %s197
          %s200 = ssub.s32 1024, 1024
          %201 = vsyncadd %s195, %s200
          %s202 = smul.addr %s18, 8
          %s203 = smul.addr %s202, 128
          %s204 = scalar_lea.hbm %s3, %s203
          %s205 = sshll.u32 %s198, 4
          %s206 = int_to_ptr.vmem [resolvable:$true] %s205
          %211 = dma.hbm_to_vmem [thread:$0]  %s204, 1024, %s206, %s195, 256, 256, 16
        $region32: #{tpu_custom_call.1} parent=27 // pred_fallthru
          _
      $region28: #{tpu_custom_call.1} parent=5 // pred_fallthru
        _
      %p212 = scmp.le.s32.totalorder 1, %s18
      %p213 = scmp.lt.s32.totalorder %s18, 3
      %p214 = pnand %p212, %p213
      %p215 = pneg %p214
      // Predicated region
      $region33: #{tpu_custom_call.1} parent=5 // pred_check
        _
      $region34: #{tpu_custom_call.1} parent=5 // pred_check_branch
        %217 = sbr.rel (%p214) target = $region36
      $region35: #{tpu_custom_call.1} parent=5 // pred_region
        %s218 = ssub.s32 %s18, 1
        // Predicated region
        $region37: #{tpu_custom_call.1} parent=35 // pred_check
          %p219 = pneg %p39
        $region38: #{tpu_custom_call.1} parent=35 // pred_check_branch
          %221 = sbr.rel (%p219) target = $region40
        $region39: #{tpu_custom_call.1} parent=35 // pred_region
          %222 = dma.done [#allocation5], 9408
        $region40: #{tpu_custom_call.1} parent=35 // pred_fallthru
          _
        // Predicated region
        $region41: #{tpu_custom_call.1} parent=35 // pred_check
          %p223 = pneg %p60
        $region42: #{tpu_custom_call.1} parent=35 // pred_check_branch
          %225 = sbr.rel (%p223) target = $region44
        $region43: #{tpu_custom_call.1} parent=35 // pred_region
          %226 = dma.done [#allocation8], 224
        $region44: #{tpu_custom_call.1} parent=35 // pred_fallthru
          _
        // Predicated region
        $region45: #{tpu_custom_call.1} parent=35 // pred_check
          %p227 = pneg %p81
        $region46: #{tpu_custom_call.1} parent=35 // pred_check_branch
          %229 = sbr.rel (%p227) target = $region48
        $region47: #{tpu_custom_call.1} parent=35 // pred_region
          %230 = dma.done [#allocation8], 224
        $region48: #{tpu_custom_call.1} parent=35 // pred_fallthru
          _
        %s231 = sand.u32 %s94, 1
        %s232 = scalar_lea.sflag [#allocation11], %s231
        %s233 = sand.u32 %s94, 1
        %s234 = smul.addr %s233, 64
        %s235 = scalar_lea.vmem [#allocation10], %s234
        // Predicated region
        $region49: #{tpu_custom_call.1} parent=35 // pred_check
          %p236 = pneg %p107
        $region50: #{tpu_custom_call.1} parent=35 // pred_check_branch
          %238 = sbr.rel (%p236) target = $region52
        $region51: #{tpu_custom_call.1} parent=35 // pred_region
          %239 = dma.done %s232, 1024
        $region52: #{tpu_custom_call.1} parent=35 // pred_fallthru
          _
        %p240 = pneg %p39
        %p241 = pneg %p36
        %p242 = pneg %p60
        %p243 = pneg %p57
        %p244 = pneg %p81
        %p245 = pneg %p78
        %s246 = sand.u32 %s94, 1
        %s247 = scalar_lea.sflag [#allocation11], %s246
        %s248 = sand.u32 %s94, 1
        %s249 = smul.addr %s248, 64
        %s250 = scalar_lea.vmem [#allocation10], %s249
        %p251 = pneg %p107
        %p252 = pneg %p104
        %p253 = pneg %p133
        %p254 = pneg %p130
        %s255 = sand.u32 %s120, 1
        %s256 = scalar_lea.sflag [#allocation6], %s255
        %s257 = sand.u32 %s120, 1
        %s258 = smul.addr %s257, 64
        %s259 = scalar_lea.vmem [#allocation12], %s258
        %v261 = vld [vmem:[%s235] sm:$0xff]
        %v262 = vld [vmem:[%s235 + $0x8] sm:$0xff]
        %v263 = vld [vmem:[%s235 + $0x10] sm:$0xff]
        %v264 = vld [vmem:[%s235 + $0x18] sm:$0xff]
        %v265 = vld [vmem:[%s235 + $0x20] sm:$0xff]
        %v266 = vld [vmem:[%s235 + $0x28] sm:$0xff]
        %v267 = vld [vmem:[%s235 + $0x30] sm:$0xff]
        %v268 = vld [vmem:[%s235 + $0x38] sm:$0xff]
        %v269 = vmax.f32 %v261, %v265
        %v270 = vmax.f32 %v263, %v267
        %v271 = vmax.f32 %v269, %v270
        %v272 = vmax.f32 %v262, %v266
        %v273 = vmax.f32 %v264, %v268
        %v274 = vmax.f32 %v272, %v273
        %v275 = vadd.f32 %v261, %v263
        %v276 = vadd.f32 %v275, %v265
        %v277 = vadd.f32 %v276, %v267
        %v278 = vadd.f32 %v262, %v264
        %v279 = vadd.f32 %v278, %v266
        %v280 = vadd.f32 %v279, %v268
        %v281 = vmul.f32 %v277, 0.25
        %v282 = vmul.f32 %v280, 0.25
        %v283 = vrot.slane %v271, 5
        %v284 = vrot.slane %v274, 5
        %v285 = vpack.c.bf16 %v283, %v283
        %v286 = vpack.c.bf16 %v284, %v284
        %v287 = vunpack.c.l.bf16 %v285
        %v288 = vunpack.c.l.bf16 %v286
        %v289 = vsub.f32 %v283, %v287
        %v290 = vsub.f32 %v284, %v288
        %v291 = vpack.c.bf16 %v289, %v289
        %v292 = vpack.c.bf16 %v290, %v290
        %v295 = vunpack.c.l.b16 %v285
        %v296 = vunpack.c.l.b16 %v286
        %v297 = vpack.c.b16 %v296, %v295
        %299 = vst [vmem:[#allocation2] sm:$0xff] %v297
        %300 = vst [vmem:[#allocation2 + $0x70] sm:$0xff] %v297
        %v303 = vunpack.c.l.b16 %v291
        %v304 = vunpack.c.l.b16 %v292
        %v305 = vpack.c.b16 %v304, %v303
        %307 = vst [vmem:[#allocation2 + $0xe0] sm:$0xff] %v305
        %v308 = vrot.slane %v271, 6
        %v309 = vrot.slane %v274, 6
        %v310 = vpack.c.bf16 %v308, %v308
        %v311 = vpack.c.bf16 %v309, %v309
        %v312 = vunpack.c.l.bf16 %v310
        %v313 = vunpack.c.l.bf16 %v311
        %v314 = vsub.f32 %v308, %v312
        %v315 = vsub.f32 %v309, %v313
        %v316 = vpack.c.bf16 %v314, %v314
        %v317 = vpack.c.bf16 %v315, %v315
        %v320 = vunpack.c.l.b16 %v310
        %v321 = vunpack.c.l.b16 %v311
        %v322 = vpack.c.b16 %v321, %v320
        %324 = vst [vmem:[#allocation2 + $0x8] sm:$0xff] %v322
        %325 = vst [vmem:[#allocation2 + $0x78] sm:$0xff] %v322
        %v328 = vunpack.c.l.b16 %v316
        %v329 = vunpack.c.l.b16 %v317
        %v330 = vpack.c.b16 %v329, %v328
        %332 = vst [vmem:[#allocation2 + $0xe8] sm:$0xff] %v330
        %v333 = vrot.slane %v271, 7
        %v334 = vrot.slane %v274, 7
        %v335 = vpack.c.bf16 %v333, %v333
        %v336 = vpack.c.bf16 %v334, %v334
        %v337 = vunpack.c.l.bf16 %v335
        %v338 = vunpack.c.l.bf16 %v336
        %v339 = vsub.f32 %v333, %v337
        %v340 = vsub.f32 %v334, %v338
        %v341 = vpack.c.bf16 %v339, %v339
        %v342 = vpack.c.bf16 %v340, %v340
        %v345 = vunpack.c.l.b16 %v335
        %v346 = vunpack.c.l.b16 %v336
        %v347 = vpack.c.b16 %v346, %v345
        %349 = vst [vmem:[#allocation2 + $0x10] sm:$0xff] %v347
        %350 = vst [vmem:[#allocation2 + $0x80] sm:$0xff] %v347
        %v353 = vunpack.c.l.b16 %v341
        %v354 = vunpack.c.l.b16 %v342
        %v355 = vpack.c.b16 %v354, %v353
        %357 = vst [vmem:[#allocation2 + $0xf0] sm:$0xff] %v355
        %v358 = vpack.c.bf16 %v271, %v271
        %v359 = vpack.c.bf16 %v274, %v274
        %v360 = vunpack.c.l.bf16 %v358
        %v361 = vunpack.c.l.bf16 %v359
        %v362 = vsub.f32 %v271, %v360
        %v363 = vsub.f32 %v274, %v361
        %v364 = vpack.c.bf16 %v362, %v362
        %v365 = vpack.c.bf16 %v363, %v363
        %v368 = vunpack.c.l.b16 %v358
        %v369 = vunpack.c.l.b16 %v359
        %v370 = vpack.c.b16 %v369, %v368
        %372 = vst [vmem:[#allocation2 + $0x18] sm:$0xff] %v370
        %373 = vst [vmem:[#allocation2 + $0x88] sm:$0xff] %v370
        %v376 = vunpack.c.l.b16 %v364
        %v377 = vunpack.c.l.b16 %v365
        %v378 = vpack.c.b16 %v377, %v376
        %380 = vst [vmem:[#allocation2 + $0xf8] sm:$0xff] %v378
        %v381 = vrot.slane %v271, 1
        %v382 = vrot.slane %v274, 1
        %v383 = vpack.c.bf16 %v381, %v381
        %v384 = vpack.c.bf16 %v382, %v382
        %v385 = vunpack.c.l.bf16 %v383
        %v386 = vunpack.c.l.bf16 %v384
        %v387 = vsub.f32 %v381, %v385
        %v388 = vsub.f32 %v382, %v386
        %v389 = vpack.c.bf16 %v387, %v387
        %v390 = vpack.c.bf16 %v388, %v388
        %v393 = vunpack.c.l.b16 %v383
        %v394 = vunpack.c.l.b16 %v384
        %v395 = vpack.c.b16 %v394, %v393
        %397 = vst [vmem:[#allocation2 + $0x20] sm:$0xff] %v395
        %398 = vst [vmem:[#allocation2 + $0x90] sm:$0xff] %v395
        %v401 = vunpack.c.l.b16 %v389
        %v402 = vunpack.c.l.b16 %v390
        %v403 = vpack.c.b16 %v402, %v401
        %405 = vst [vmem:[#allocation2 + $0x100] sm:$0xff] %v403
        %v406 = vrot.slane %v271, 2
        %v407 = vrot.slane %v274, 2
        %v408 = vpack.c.bf16 %v406, %v406
        %v409 = vpack.c.bf16 %v407, %v407
        %v410 = vunpack.c.l.bf16 %v408
        %v411 = vunpack.c.l.bf16 %v409
        %v412 = vsub.f32 %v406, %v410
        %v413 = vsub.f32 %v407, %v411
        %v414 = vpack.c.bf16 %v412, %v412
        %v415 = vpack.c.bf16 %v413, %v413
        %v418 = vunpack.c.l.b16 %v408
        %v419 = vunpack.c.l.b16 %v409
        %v420 = vpack.c.b16 %v419, %v418
        %422 = vst [vmem:[#allocation2 + $0x28] sm:$0xff] %v420
        %423 = vst [vmem:[#allocation2 + $0x98] sm:$0xff] %v420
        %v426 = vunpack.c.l.b16 %v414
        %v427 = vunpack.c.l.b16 %v415
        %v428 = vpack.c.b16 %v427, %v426
        %430 = vst [vmem:[#allocation2 + $0x108] sm:$0xff] %v428
        %v431 = vrot.slane %v271, 3
        %v432 = vrot.slane %v274, 3
        %v433 = vpack.c.bf16 %v431, %v431
        %v434 = vpack.c.bf16 %v432, %v432
        %v435 = vunpack.c.l.bf16 %v433
        %v436 = vunpack.c.l.bf16 %v434
        %v437 = vsub.f32 %v431, %v435
        %v438 = vsub.f32 %v432, %v436
        %v439 = vpack.c.bf16 %v437, %v437
        %v440 = vpack.c.bf16 %v438, %v438
        %v443 = vunpack.c.l.b16 %v433
        %v444 = vunpack.c.l.b16 %v434
        %v445 = vpack.c.b16 %v444, %v443
        %447 = vst [vmem:[#allocation2 + $0x30] sm:$0xff] %v445
        %448 = vst [vmem:[#allocation2 + $0xa0] sm:$0xff] %v445
        %v451 = vunpack.c.l.b16 %v439
        %v452 = vunpack.c.l.b16 %v440
        %v453 = vpack.c.b16 %v452, %v451
        %455 = vst [vmem:[#allocation2 + $0x110] sm:$0xff] %v453
        %v456 = vrot.slane %v281, 5
        %v457 = vrot.slane %v282, 5
        %v458 = vpack.c.bf16 %v456, %v456
        %v459 = vpack.c.bf16 %v457, %v457
        %v460 = vunpack.c.l.bf16 %v458
        %v461 = vunpack.c.l.bf16 %v459
        %v462 = vsub.f32 %v456, %v460
        %v463 = vsub.f32 %v457, %v461
        %v464 = vpack.c.bf16 %v462, %v462
        %v465 = vpack.c.bf16 %v463, %v463
        %v468 = vunpack.c.l.b16 %v458
        %v469 = vunpack.c.l.b16 %v459
        %v470 = vpack.c.b16 %v469, %v468
        %472 = vst [vmem:[#allocation2 + $0x38] sm:$0xff] %v470
        %473 = vst [vmem:[#allocation2 + $0xa8] sm:$0xff] %v470
        %v476 = vunpack.c.l.b16 %v464
        %v477 = vunpack.c.l.b16 %v465
        %v478 = vpack.c.b16 %v477, %v476
        %480 = vst [vmem:[#allocation2 + $0x118] sm:$0xff] %v478
        %v481 = vrot.slane %v281, 6
        %v482 = vrot.slane %v282, 6
        %v483 = vpack.c.bf16 %v481, %v481
        %v484 = vpack.c.bf16 %v482, %v482
        %v485 = vunpack.c.l.bf16 %v483
        %v486 = vunpack.c.l.bf16 %v484
        %v487 = vsub.f32 %v481, %v485
        %v488 = vsub.f32 %v482, %v486
        %v489 = vpack.c.bf16 %v487, %v487
        %v490 = vpack.c.bf16 %v488, %v488
        %v493 = vunpack.c.l.b16 %v483
        %v494 = vunpack.c.l.b16 %v484
        %v495 = vpack.c.b16 %v494, %v493
        %497 = vst [vmem:[#allocation2 + $0x40] sm:$0xff] %v495
        %498 = vst [vmem:[#allocation2 + $0xb0] sm:$0xff] %v495
        %v501 = vunpack.c.l.b16 %v489
        %v502 = vunpack.c.l.b16 %v490
        %v503 = vpack.c.b16 %v502, %v501
        %505 = vst [vmem:[#allocation2 + $0x120] sm:$0xff] %v503
        %v506 = vrot.slane %v281, 7
        %v507 = vrot.slane %v282, 7
        %v508 = vpack.c.bf16 %v506, %v506
        %v509 = vpack.c.bf16 %v507, %v507
        %v510 = vunpack.c.l.bf16 %v508
        %v511 = vunpack.c.l.bf16 %v509
        %v512 = vsub.f32 %v506, %v510
        %v513 = vsub.f32 %v507, %v511
        %v514 = vpack.c.bf16 %v512, %v512
        %v515 = vpack.c.bf16 %v513, %v513
        %v518 = vunpack.c.l.b16 %v508
        %v519 = vunpack.c.l.b16 %v509
        %v520 = vpack.c.b16 %v519, %v518
        %522 = vst [vmem:[#allocation2 + $0x48] sm:$0xff] %v520
        %523 = vst [vmem:[#allocation2 + $0xb8] sm:$0xff] %v520
        %v526 = vunpack.c.l.b16 %v514
        %v527 = vunpack.c.l.b16 %v515
        %v528 = vpack.c.b16 %v527, %v526
        %530 = vst [vmem:[#allocation2 + $0x128] sm:$0xff] %v528
        %v531 = vpack.c.bf16 %v281, %v281
        %v532 = vpack.c.bf16 %v282, %v282
        %v533 = vunpack.c.l.bf16 %v531
        %v534 = vunpack.c.l.bf16 %v532
        %v535 = vsub.f32 %v281, %v533
        %v536 = vsub.f32 %v282, %v534
        %v537 = vpack.c.bf16 %v535, %v535
        %v538 = vpack.c.bf16 %v536, %v536
        %v541 = vunpack.c.l.b16 %v531
        %v542 = vunpack.c.l.b16 %v532
        %v543 = vpack.c.b16 %v542, %v541
        %545 = vst [vmem:[#allocation2 + $0x50] sm:$0xff] %v543
        %546 = vst [vmem:[#allocation2 + $0xc0] sm:$0xff] %v543
        %v549 = vunpack.c.l.b16 %v537
        %v550 = vunpack.c.l.b16 %v538
        %v551 = vpack.c.b16 %v550, %v549
        %553 = vst [vmem:[#allocation2 + $0x130] sm:$0xff] %v551
        %v554 = vrot.slane %v281, 1
        %v555 = vrot.slane %v282, 1
        %v556 = vpack.c.bf16 %v554, %v554
        %v557 = vpack.c.bf16 %v555, %v555
        %v558 = vunpack.c.l.bf16 %v556
        %v559 = vunpack.c.l.bf16 %v557
        %v560 = vsub.f32 %v554, %v558
        %v561 = vsub.f32 %v555, %v559
        %v562 = vpack.c.bf16 %v560, %v560
        %v563 = vpack.c.bf16 %v561, %v561
        %v566 = vunpack.c.l.b16 %v556
        %v567 = vunpack.c.l.b16 %v557
        %v568 = vpack.c.b16 %v567, %v566
        %570 = vst [vmem:[#allocation2 + $0x58] sm:$0xff] %v568
        %571 = vst [vmem:[#allocation2 + $0xc8] sm:$0xff] %v568
        %v574 = vunpack.c.l.b16 %v562
        %v575 = vunpack.c.l.b16 %v563
        %v576 = vpack.c.b16 %v575, %v574
        %578 = vst [vmem:[#allocation2 + $0x138] sm:$0xff] %v576
        %v579 = vrot.slane %v281, 2
        %v580 = vrot.slane %v282, 2
        %v581 = vpack.c.bf16 %v579, %v579
        %v582 = vpack.c.bf16 %v580, %v580
        %v583 = vunpack.c.l.bf16 %v581
        %v584 = vunpack.c.l.bf16 %v582
        %v585 = vsub.f32 %v579, %v583
        %v586 = vsub.f32 %v580, %v584
        %v587 = vpack.c.bf16 %v585, %v585
        %v588 = vpack.c.bf16 %v586, %v586
        %v591 = vunpack.c.l.b16 %v581
        %v592 = vunpack.c.l.b16 %v582
        %v593 = vpack.c.b16 %v592, %v591
        %595 = vst [vmem:[#allocation2 + $0x60] sm:$0xff] %v593
        %596 = vst [vmem:[#allocation2 + $0xd0] sm:$0xff] %v593
        %v599 = vunpack.c.l.b16 %v587
        %v600 = vunpack.c.l.b16 %v588
        %v601 = vpack.c.b16 %v600, %v599
        %603 = vst [vmem:[#allocation2 + $0x140] sm:$0xff] %v601
        %v604 = vrot.slane %v281, 3
        %v605 = vrot.slane %v282, 3
        %v606 = vpack.c.bf16 %v604, %v604
        %v607 = vpack.c.bf16 %v605, %v605
        %v608 = vunpack.c.l.bf16 %v606
        %v609 = vunpack.c.l.bf16 %v607
        %v610 = vsub.f32 %v604, %v608
        %v611 = vsub.f32 %v605, %v609
        %v612 = vpack.c.bf16 %v610, %v610
        %v613 = vpack.c.bf16 %v611, %v611
        %v616 = vunpack.c.l.b16 %v606
        %v617 = vunpack.c.l.b16 %v607
        %v618 = vpack.c.b16 %v617, %v616
        %620 = vst [vmem:[#allocation2 + $0x68] sm:$0xff] %v618
        %621 = vst [vmem:[#allocation2 + $0xd8] sm:$0xff] %v618
        %v624 = vunpack.c.l.b16 %v612
        %v625 = vunpack.c.l.b16 %v613
        %v626 = vpack.c.b16 %v625, %v624
        %628 = vst [vmem:[#allocation2 + $0x148] sm:$0xff] %v626
        %629 = vst [vmem:[#allocation2 + $0x150] sm:$0xff] 0
        %630 = vst [vmem:[#allocation2 + $0x158] sm:$0xff] 0
        %631 = vst [vmem:[#allocation2 + $0x160] sm:$0xff] 0
        %632 = vst [vmem:[#allocation2 + $0x168] sm:$0xff] 0
        %633 = vst [vmem:[#allocation2 + $0x170] sm:$0xff] 0
        %634 = vst [vmem:[#allocation2 + $0x178] sm:$0xff] 0
        %v635 = vld [vmem:[#allocation4] sm:$0xff]
        %v636 = vld [vmem:[#allocation4 + $0x8] sm:$0xf]
        %v637 = vld [vmem:[#allocation4 + $0xc] sm:$0xff]
        %v638 = vld [vmem:[#allocation4 + $0x14] sm:$0xf]
        %v639 = vld [vmem:[#allocation4 + $0x18] sm:$0xff]
        %v640 = vld [vmem:[#allocation4 + $0x20] sm:$0xf]
        %v641 = vld [vmem:[#allocation4 + $0x24] sm:$0xff]
        %v642 = vld [vmem:[#allocation4 + $0x2c] sm:$0xf]
        %v643 = vld [vmem:[#allocation4 + $0x30] sm:$0xff]
        %v644 = vld [vmem:[#allocation4 + $0x38] sm:$0xf]
        %v645 = vld [vmem:[#allocation4 + $0x3c] sm:$0xff]
        %v646 = vld [vmem:[#allocation4 + $0x44] sm:$0xf]
        %v647 = vld [vmem:[#allocation4 + $0x48] sm:$0xff]
        %v648 = vld [vmem:[#allocation4 + $0x50] sm:$0xf]
        %v649 = vld [vmem:[#allocation4 + $0x54] sm:$0xff]
        %v650 = vld [vmem:[#allocation4 + $0x5c] sm:$0xf]
        %v651 = vld [vmem:[#allocation4 + $0x60] sm:$0xff]
        %v652 = vld [vmem:[#allocation4 + $0x68] sm:$0xf]
        %v653 = vld [vmem:[#allocation4 + $0x6c] sm:$0xff]
        %v654 = vld [vmem:[#allocation4 + $0x74] sm:$0xf]
        %v655 = vld [vmem:[#allocation4 + $0x78] sm:$0xff]
        %v656 = vld [vmem:[#allocation4 + $0x80] sm:$0xf]
        %v657 = vld [vmem:[#allocation4 + $0x84] sm:$0xff]
        %v658 = vld [vmem:[#allocation4 + $0x8c] sm:$0xf]
        %v659 = vld [vmem:[#allocation4 + $0x90] sm:$0xff]
        %v660 = vld [vmem:[#allocation4 + $0x98] sm:$0xf]
        %v661 = vld [vmem:[#allocation4 + $0x9c] sm:$0xff]
        %v662 = vld [vmem:[#allocation4 + $0xa4] sm:$0xf]
        %v663 = vld [vmem:[#allocation4 + $0xa8] sm:$0xff]
        %v664 = vld [vmem:[#allocation4 + $0xb0] sm:$0xf]
        %v665 = vld [vmem:[#allocation4 + $0xb4] sm:$0xff]
        %v666 = vld [vmem:[#allocation4 + $0xbc] sm:$0xf]
        %v667 = vld [vmem:[#allocation4 + $0xc0] sm:$0xff]
        %v668 = vld [vmem:[#allocation4 + $0xc8] sm:$0xf]
        %v669 = vld [vmem:[#allocation4 + $0xcc] sm:$0xff]
        %v670 = vld [vmem:[#allocation4 + $0xd4] sm:$0xf]
        %v671 = vld [vmem:[#allocation4 + $0xd8] sm:$0xff]
        %v672 = vld [vmem:[#allocation4 + $0xe0] sm:$0xf]
        %v673 = vld [vmem:[#allocation4 + $0xe4] sm:$0xff]
        %v674 = vld [vmem:[#allocation4 + $0xec] sm:$0xf]
        %v675 = vld [vmem:[#allocation4 + $0xf0] sm:$0xff]
        %v676 = vld [vmem:[#allocation4 + $0xf8] sm:$0xf]
        %v677 = vld [vmem:[#allocation4 + $0xfc] sm:$0xff]
        %v678 = vld [vmem:[#allocation4 + $0x104] sm:$0xf]
        %v679 = vld [vmem:[#allocation4 + $0x108] sm:$0xff]
        %v680 = vld [vmem:[#allocation4 + $0x110] sm:$0xf]
        %v681 = vld [vmem:[#allocation4 + $0x114] sm:$0xff]
        %v682 = vld [vmem:[#allocation4 + $0x11c] sm:$0xf]
        %v683 = vld [vmem:[#allocation4 + $0x120] sm:$0xff]
        %v684 = vld [vmem:[#allocation4 + $0x128] sm:$0xf]
        %v685 = vld [vmem:[#allocation4 + $0x12c] sm:$0xff]
        %v686 = vld [vmem:[#allocation4 + $0x134] sm:$0xf]
        %v687 = vld [vmem:[#allocation4 + $0x138] sm:$0xff]
        %v688 = vld [vmem:[#allocation4 + $0x140] sm:$0xf]
        %v689 = vld [vmem:[#allocation4 + $0x144] sm:$0xff]
        %v690 = vld [vmem:[#allocation4 + $0x14c] sm:$0xf]
        %v691 = vld [vmem:[#allocation4 + $0x150] sm:$0xff]
        %v692 = vld [vmem:[#allocation4 + $0x158] sm:$0xf]
        %v693 = vld [vmem:[#allocation4 + $0x15c] sm:$0xff]
        %v694 = vld [vmem:[#allocation4 + $0x164] sm:$0xf]
        %v695 = vld [vmem:[#allocation4 + $0x168] sm:$0xff]
        %v696 = vld [vmem:[#allocation4 + $0x170] sm:$0xf]
        %v697 = vld [vmem:[#allocation4 + $0x174] sm:$0xff]
        %v698 = vld [vmem:[#allocation4 + $0x17c] sm:$0xf]
        %v699 = vld [vmem:[#allocation4 + $0x180] sm:$0xff]
        %v700 = vld [vmem:[#allocation4 + $0x188] sm:$0xf]
        %v701 = vld [vmem:[#allocation4 + $0x18c] sm:$0xff]
        %v702 = vld [vmem:[#allocation4 + $0x194] sm:$0xf]
        %v703 = vld [vmem:[#allocation4 + $0x198] sm:$0xff]
        %v704 = vld [vmem:[#allocation4 + $0x1a0] sm:$0xf]
        %v705 = vld [vmem:[#allocation4 + $0x1a4] sm:$0xff]
        %v706 = vld [vmem:[#allocation4 + $0x1ac] sm:$0xf]
        %v707 = vld [vmem:[#allocation4 + $0x1b0] sm:$0xff]
        %v708 = vld [vmem:[#allocation4 + $0x1b8] sm:$0xf]
        %v709 = vld [vmem:[#allocation4 + $0x1bc] sm:$0xff]
        %v710 = vld [vmem:[#allocation4 + $0x1c4] sm:$0xf]
        %v711 = vld [vmem:[#allocation4 + $0x1c8] sm:$0xff]
        %v712 = vld [vmem:[#allocation4 + $0x1d0] sm:$0xf]
        %v713 = vld [vmem:[#allocation4 + $0x1d4] sm:$0xff]
        %v714 = vld [vmem:[#allocation4 + $0x1dc] sm:$0xf]
        %v715 = vld [vmem:[#allocation4 + $0x1e0] sm:$0xff]
        %v716 = vld [vmem:[#allocation4 + $0x1e8] sm:$0xf]
        %v717 = vld [vmem:[#allocation4 + $0x1ec] sm:$0xff]
        %v718 = vld [vmem:[#allocation4 + $0x1f4] sm:$0xf]
        %v719 = vld [vmem:[#allocation4 + $0x1f8] sm:$0xff]
        %v720 = vld [vmem:[#allocation4 + $0x200] sm:$0xf]
        %v721 = vld [vmem:[#allocation4 + $0x204] sm:$0xff]
        %v722 = vld [vmem:[#allocation4 + $0x20c] sm:$0xf]
        %v723 = vld [vmem:[#allocation4 + $0x210] sm:$0xff]
        %v724 = vld [vmem:[#allocation4 + $0x218] sm:$0xf]
        %v725 = vld [vmem:[#allocation4 + $0x21c] sm:$0xff]
        %v726 = vld [vmem:[#allocation4 + $0x224] sm:$0xf]
        %v727 = vld [vmem:[#allocation4 + $0x228] sm:$0xff]
        %v728 = vld [vmem:[#allocation4 + $0x230] sm:$0xf]
        %v729 = vld [vmem:[#allocation4 + $0x234] sm:$0xff]
        %v730 = vld [vmem:[#allocation4 + $0x23c] sm:$0xf]
        %v731 = vld [vmem:[#allocation4 + $0x240] sm:$0xff]
        %v732 = vld [vmem:[#allocation4 + $0x248] sm:$0xf]
        %v733 = vld [vmem:[#allocation2] sm:$0xff]
        %v734 = vld [vmem:[#allocation2 + $0x8] sm:$0xff]
        %v735 = vld [vmem:[#allocation2 + $0x10] sm:$0xff]
        %v736 = vld [vmem:[#allocation2 + $0x18] sm:$0xff]
        %v737 = vld [vmem:[#allocation2 + $0x20] sm:$0xff]
        %v738 = vld [vmem:[#allocation2 + $0x28] sm:$0xff]
        %v739 = vld [vmem:[#allocation2 + $0x30] sm:$0xff]
        %v740 = vld [vmem:[#allocation2 + $0x38] sm:$0xff]
        %v741 = vld [vmem:[#allocation2 + $0x40] sm:$0xff]
        %v742 = vld [vmem:[#allocation2 + $0x48] sm:$0xff]
        %v743 = vld [vmem:[#allocation2 + $0x50] sm:$0xff]
        %v744 = vld [vmem:[#allocation2 + $0x58] sm:$0xff]
        %v745 = vld [vmem:[#allocation2 + $0x60] sm:$0xff]
        %v746 = vld [vmem:[#allocation2 + $0x68] sm:$0xff]
        %v747 = vld [vmem:[#allocation2 + $0x70] sm:$0xff]
        %v748 = vld [vmem:[#allocation2 + $0x78] sm:$0xff]
        %v749 = vld [vmem:[#allocation2 + $0x80] sm:$0xff]
        %v750 = vld [vmem:[#allocation2 + $0x88] sm:$0xff]
        %v751 = vld [vmem:[#allocation2 + $0x90] sm:$0xff]
        %v752 = vld [vmem:[#allocation2 + $0x98] sm:$0xff]
        %v753 = vld [vmem:[#allocation2 + $0xa0] sm:$0xff]
        %v754 = vld [vmem:[#allocation2 + $0xa8] sm:$0xff]
        %v755 = vld [vmem:[#allocation2 + $0xb0] sm:$0xff]
        %v756 = vld [vmem:[#allocation2 + $0xb8] sm:$0xff]
        %v757 = vld [vmem:[#allocation2 + $0xc0] sm:$0xff]
        %v758 = vld [vmem:[#allocation2 + $0xc8] sm:$0xff]
        %v759 = vld [vmem:[#allocation2 + $0xd0] sm:$0xff]
        %v760 = vld [vmem:[#allocation2 + $0xd8] sm:$0xff]
        %v761 = vld [vmem:[#allocation2 + $0xe0] sm:$0xff]
        %v762 = vld [vmem:[#allocation2 + $0xe8] sm:$0xff]
        %v763 = vld [vmem:[#allocation2 + $0xf0] sm:$0xff]
        %v764 = vld [vmem:[#allocation2 + $0xf8] sm:$0xff]
        %v765 = vld [vmem:[#allocation2 + $0x100] sm:$0xff]
        %v766 = vld [vmem:[#allocation2 + $0x108] sm:$0xff]
        %v767 = vld [vmem:[#allocation2 + $0x110] sm:$0xff]
        %v768 = vld [vmem:[#allocation2 + $0x118] sm:$0xff]
        %v769 = vld [vmem:[#allocation2 + $0x120] sm:$0xff]
        %v770 = vld [vmem:[#allocation2 + $0x128] sm:$0xff]
        %v771 = vld [vmem:[#allocation2 + $0x130] sm:$0xff]
        %v772 = vld [vmem:[#allocation2 + $0x138] sm:$0xff]
        %v773 = vld [vmem:[#allocation2 + $0x140] sm:$0xff]
        %v774 = vld [vmem:[#allocation2 + $0x148] sm:$0xff]
        %v775 = vld [vmem:[#allocation2 + $0x150] sm:$0xff]
        %v776 = vld [vmem:[#allocation2 + $0x158] sm:$0xff]
        %v777 = vld [vmem:[#allocation2 + $0x160] sm:$0xff]
        %v778 = vld [vmem:[#allocation2 + $0x168] sm:$0xff]
        %v779 = vld [vmem:[#allocation2 + $0x170] sm:$0xff]
        %v780 = vld [vmem:[#allocation2 + $0x178] sm:$0xff]
        %v879 = vunpack.c.l.b16 %v635
        %v880 = vunpack.c.h.b16 %v635
        %v881 = vunpack.c.l.b16 %v636
        %v882 = vunpack.c.l.b16 %v637
        %v883 = vunpack.c.h.b16 %v637
        %v884 = vunpack.c.l.b16 %v638
        %v885 = vunpack.c.l.b16 %v639
        %v886 = vunpack.c.h.b16 %v639
        %v887 = vunpack.c.l.b16 %v640
        %v888 = vunpack.c.l.b16 %v641
        %v889 = vunpack.c.h.b16 %v641
        %v890 = vunpack.c.l.b16 %v642
        %v891 = vunpack.c.l.b16 %v643
        %v892 = vunpack.c.h.b16 %v643
        %v893 = vunpack.c.l.b16 %v644
        %v894 = vunpack.c.l.b16 %v645
        %v895 = vunpack.c.h.b16 %v645
        %v896 = vunpack.c.l.b16 %v646
        %v897 = vunpack.c.l.b16 %v647
        %v898 = vunpack.c.h.b16 %v647
        %v899 = vunpack.c.l.b16 %v648
        %v900 = vunpack.c.l.b16 %v649
        %v901 = vunpack.c.h.b16 %v649
        %v902 = vunpack.c.l.b16 %v650
        %v903 = vunpack.c.l.b16 %v651
        %v904 = vunpack.c.h.b16 %v651
        %v905 = vunpack.c.l.b16 %v652
        %v906 = vunpack.c.l.b16 %v653
        %v907 = vunpack.c.h.b16 %v653
        %v908 = vunpack.c.l.b16 %v654
        %v909 = vunpack.c.l.b16 %v655
        %v910 = vunpack.c.h.b16 %v655
        %v911 = vunpack.c.l.b16 %v656
        %v912 = vunpack.c.l.b16 %v657
        %v913 = vunpack.c.h.b16 %v657
        %v914 = vunpack.c.l.b16 %v658
        %v915 = vunpack.c.l.b16 %v659
        %v916 = vunpack.c.h.b16 %v659
        %v917 = vunpack.c.l.b16 %v660
        %v918 = vunpack.c.l.b16 %v661
        %v919 = vunpack.c.h.b16 %v661
        %v920 = vunpack.c.l.b16 %v662
        %v921 = vunpack.c.l.b16 %v663
        %v922 = vunpack.c.h.b16 %v663
        %v923 = vunpack.c.l.b16 %v664
        %v924 = vunpack.c.l.b16 %v665
        %v925 = vunpack.c.h.b16 %v665
        %v926 = vunpack.c.l.b16 %v666
        %v927 = vunpack.c.l.b16 %v667
        %v928 = vunpack.c.h.b16 %v667
        %v929 = vunpack.c.l.b16 %v668
        %v930 = vunpack.c.l.b16 %v669
        %v931 = vunpack.c.h.b16 %v669
        %v932 = vunpack.c.l.b16 %v670
        %v933 = vunpack.c.l.b16 %v671
        %v934 = vunpack.c.h.b16 %v671
        %v935 = vunpack.c.l.b16 %v672
        %v936 = vunpack.c.l.b16 %v673
        %v937 = vunpack.c.h.b16 %v673
        %v938 = vunpack.c.l.b16 %v674
        %v939 = vunpack.c.l.b16 %v675
        %v940 = vunpack.c.h.b16 %v675
        %v941 = vunpack.c.l.b16 %v676
        %v942 = vunpack.c.l.b16 %v677
        %v943 = vunpack.c.h.b16 %v677
        %v944 = vunpack.c.l.b16 %v678
        %v945 = vunpack.c.l.b16 %v679
        %v946 = vunpack.c.h.b16 %v679
        %v947 = vunpack.c.l.b16 %v680
        %v948 = vunpack.c.l.b16 %v681
        %v949 = vunpack.c.h.b16 %v681
        %v950 = vunpack.c.l.b16 %v682
        %v951 = vunpack.c.l.b16 %v683
        %v952 = vunpack.c.h.b16 %v683
        %v953 = vunpack.c.l.b16 %v684
        %v954 = vunpack.c.l.b16 %v685
        %v955 = vunpack.c.h.b16 %v685
        %v956 = vunpack.c.l.b16 %v686
        %v957 = vunpack.c.l.b16 %v687
        %v958 = vunpack.c.h.b16 %v687
        %v959 = vunpack.c.l.b16 %v688
        %v960 = vunpack.c.l.b16 %v689
        %v961 = vunpack.c.h.b16 %v689
        %v962 = vunpack.c.l.b16 %v690
        %v963 = vunpack.c.l.b16 %v691
        %v964 = vunpack.c.h.b16 %v691
        %v965 = vunpack.c.l.b16 %v692
        %v966 = vunpack.c.l.b16 %v693
        %v967 = vunpack.c.h.b16 %v693
        %v968 = vunpack.c.l.b16 %v694
        %v969 = vunpack.c.l.b16 %v695
        %v970 = vunpack.c.h.b16 %v695
        %v971 = vunpack.c.l.b16 %v696
        %v972 = vunpack.c.l.b16 %v697
        %v973 = vunpack.c.h.b16 %v697
        %v974 = vunpack.c.l.b16 %v698
        %v975 = vunpack.c.l.b16 %v699
        %v976 = vunpack.c.h.b16 %v699
        %v977 = vunpack.c.l.b16 %v700
        %v978 = vunpack.c.l.b16 %v701
        %v979 = vunpack.c.h.b16 %v701
        %v980 = vunpack.c.l.b16 %v702
        %v981 = vunpack.c.l.b16 %v703
        %v982 = vunpack.c.h.b16 %v703
        %v983 = vunpack.c.l.b16 %v704
        %v984 = vunpack.c.l.b16 %v705
        %v985 = vunpack.c.h.b16 %v705
        %v986 = vunpack.c.l.b16 %v706
        %v987 = vunpack.c.l.b16 %v707
        %v988 = vunpack.c.h.b16 %v707
        %v989 = vunpack.c.l.b16 %v708
        %v990 = vunpack.c.l.b16 %v709
        %v991 = vunpack.c.h.b16 %v709
        %v992 = vunpack.c.l.b16 %v710
        %v993 = vunpack.c.l.b16 %v711
        %v994 = vunpack.c.h.b16 %v711
        %v995 = vunpack.c.l.b16 %v712
        %v996 = vunpack.c.l.b16 %v713
        %v997 = vunpack.c.h.b16 %v713
        %v998 = vunpack.c.l.b16 %v714
        %v999 = vunpack.c.l.b16 %v715
        %v1000 = vunpack.c.h.b16 %v715
        %v1001 = vunpack.c.l.b16 %v716
        %v1002 = vunpack.c.l.b16 %v717
        %v1003 = vunpack.c.h.b16 %v717
        %v1004 = vunpack.c.l.b16 %v718
        %v1005 = vunpack.c.l.b16 %v719
        %v1006 = vunpack.c.h.b16 %v719
        %v1007 = vunpack.c.l.b16 %v720
        %v1008 = vunpack.c.l.b16 %v721
        %v1009 = vunpack.c.h.b16 %v721
        %v1010 = vunpack.c.l.b16 %v722
        %v1011 = vunpack.c.l.b16 %v723
        %v1012 = vunpack.c.h.b16 %v723
        %v1013 = vunpack.c.l.b16 %v724
        %v1014 = vunpack.c.l.b16 %v725
        %v1015 = vunpack.c.h.b16 %v725
        %v1016 = vunpack.c.l.b16 %v726
        %v1017 = vunpack.c.l.b16 %v727
        %v1018 = vunpack.c.h.b16 %v727
        %v1019 = vunpack.c.l.b16 %v728
        %v1020 = vunpack.c.l.b16 %v729
        %v1021 = vunpack.c.h.b16 %v729
        %v1022 = vunpack.c.l.b16 %v730
        %v1023 = vunpack.c.l.b16 %v731
        %v1024 = vunpack.c.h.b16 %v731
        %v1025 = vunpack.c.l.b16 %v732
        %v1026 = vpack.c.b16 %v882, %v879
        %v1027 = vpack.c.b16 %v883, %v880
        %v1028 = vpack.c.b16 %v884, %v881
        %v1029 = vpack.c.b16 %v888, %v885
        %v1030 = vpack.c.b16 %v889, %v886
        %v1031 = vpack.c.b16 %v890, %v887
        %v1032 = vpack.c.b16 %v894, %v891
        %v1033 = vpack.c.b16 %v895, %v892
        %v1034 = vpack.c.b16 %v896, %v893
        %v1035 = vpack.c.b16 %v900, %v897
        %v1036 = vpack.c.b16 %v901, %v898
        %v1037 = vpack.c.b16 %v902, %v899
        %v1038 = vpack.c.b16 %v906, %v903
        %v1039 = vpack.c.b16 %v907, %v904
        %v1040 = vpack.c.b16 %v908, %v905
        %v1041 = vpack.c.b16 %v912, %v909
        %v1042 = vpack.c.b16 %v913, %v910
        %v1043 = vpack.c.b16 %v914, %v911
        %v1044 = vpack.c.b16 %v918, %v915
        %v1045 = vpack.c.b16 %v919, %v916
        %v1046 = vpack.c.b16 %v920, %v917
        %v1047 = vpack.c.b16 %v924, %v921
        %v1048 = vpack.c.b16 %v925, %v922
        %v1049 = vpack.c.b16 %v926, %v923
        %v1050 = vpack.c.b16 %v930, %v927
        %v1051 = vpack.c.b16 %v931, %v928
        %v1052 = vpack.c.b16 %v932, %v929
        %v1053 = vpack.c.b16 %v936, %v933
        %v1054 = vpack.c.b16 %v937, %v934
        %v1055 = vpack.c.b16 %v938, %v935
        %v1056 = vpack.c.b16 %v942, %v939
        %v1057 = vpack.c.b16 %v943, %v940
        %v1058 = vpack.c.b16 %v944, %v941
        %v1059 = vpack.c.b16 %v948, %v945
        %v1060 = vpack.c.b16 %v949, %v946
        %v1061 = vpack.c.b16 %v950, %v947
        %v1062 = vpack.c.b16 %v954, %v951
        %v1063 = vpack.c.b16 %v955, %v952
        %v1064 = vpack.c.b16 %v956, %v953
        %v1065 = vpack.c.b16 %v960, %v957
        %v1066 = vpack.c.b16 %v961, %v958
        %v1067 = vpack.c.b16 %v962, %v959
        %v1068 = vpack.c.b16 %v966, %v963
        %v1069 = vpack.c.b16 %v967, %v964
        %v1070 = vpack.c.b16 %v968, %v965
        %v1071 = vpack.c.b16 %v972, %v969
        %v1072 = vpack.c.b16 %v973, %v970
        %v1073 = vpack.c.b16 %v974, %v971
        %v1074 = vpack.c.b16 %v978, %v975
        %v1075 = vpack.c.b16 %v979, %v976
        %v1076 = vpack.c.b16 %v980, %v977
        %v1077 = vpack.c.b16 %v984, %v981
        %v1078 = vpack.c.b16 %v985, %v982
        %v1079 = vpack.c.b16 %v986, %v983
        %v1080 = vpack.c.b16 %v990, %v987
        %v1081 = vpack.c.b16 %v991, %v988
        %v1082 = vpack.c.b16 %v992, %v989
        %v1083 = vpack.c.b16 %v996, %v993
        %v1084 = vpack.c.b16 %v997, %v994
        %v1085 = vpack.c.b16 %v998, %v995
        %v1086 = vpack.c.b16 %v1002, %v999
        %v1087 = vpack.c.b16 %v1003, %v1000
        %v1088 = vpack.c.b16 %v1004, %v1001
        %v1089 = vpack.c.b16 %v1008, %v1005
        %v1090 = vpack.c.b16 %v1009, %v1006
        %v1091 = vpack.c.b16 %v1010, %v1007
        %v1092 = vpack.c.b16 %v1014, %v1011
        %v1093 = vpack.c.b16 %v1015, %v1012
        %v1094 = vpack.c.b16 %v1016, %v1013
        %v1095 = vpack.c.b16 %v1020, %v1017
        %v1096 = vpack.c.b16 %v1021, %v1018
        %v1097 = vpack.c.b16 %v1022, %v1019
        %v1098 = vpack.c.b16 %v1023, %v1023
        %v1099 = vpack.c.b16 %v1024, %v1024
        %v1100 = vpack.c.b16 %v1025, %v1025
        %v1224 = vunpack.c.l.b16 %v733
        %v1225 = vunpack.c.h.b16 %v733
        %v1226 = vunpack.c.l.b16 %v734
        %v1227 = vunpack.c.h.b16 %v734
        %v1228 = vunpack.c.l.b16 %v735
        %v1229 = vunpack.c.h.b16 %v735
        %v1230 = vunpack.c.l.b16 %v736
        %v1231 = vunpack.c.h.b16 %v736
        %v1232 = vunpack.c.l.b16 %v737
        %v1233 = vunpack.c.h.b16 %v737
        %v1234 = vunpack.c.l.b16 %v738
        %v1235 = vunpack.c.h.b16 %v738
        %v1236 = vunpack.c.l.b16 %v739
        %v1237 = vunpack.c.h.b16 %v739
        %v1238 = vunpack.c.l.b16 %v740
        %v1239 = vunpack.c.h.b16 %v740
        %v1240 = vunpack.c.l.b16 %v741
        %v1241 = vunpack.c.h.b16 %v741
        %v1242 = vunpack.c.l.b16 %v742
        %v1243 = vunpack.c.h.b16 %v742
        %v1244 = vunpack.c.l.b16 %v743
        %v1245 = vunpack.c.h.b16 %v743
        %v1246 = vunpack.c.l.b16 %v744
        %v1247 = vunpack.c.h.b16 %v744
        %v1248 = vunpack.c.l.b16 %v745
        %v1249 = vunpack.c.h.b16 %v745
        %v1250 = vunpack.c.l.b16 %v746
        %v1251 = vunpack.c.h.b16 %v746
        %v1252 = vunpack.c.l.b16 %v747
        %v1253 = vunpack.c.h.b16 %v747
        %v1254 = vunpack.c.l.b16 %v748
        %v1255 = vunpack.c.h.b16 %v748
        %v1256 = vunpack.c.l.b16 %v749
        %v1257 = vunpack.c.h.b16 %v749
        %v1258 = vunpack.c.l.b16 %v750
        %v1259 = vunpack.c.h.b16 %v750
        %v1260 = vunpack.c.l.b16 %v751
        %v1261 = vunpack.c.h.b16 %v751
        %v1262 = vunpack.c.l.b16 %v752
        %v1263 = vunpack.c.h.b16 %v752
        %v1264 = vunpack.c.l.b16 %v753
        %v1265 = vunpack.c.h.b16 %v753
        %v1266 = vunpack.c.l.b16 %v754
        %v1267 = vunpack.c.h.b16 %v754
        %v1268 = vunpack.c.l.b16 %v755
        %v1269 = vunpack.c.h.b16 %v755
        %v1270 = vunpack.c.l.b16 %v756
        %v1271 = vunpack.c.h.b16 %v756
        %v1272 = vunpack.c.l.b16 %v757
        %v1273 = vunpack.c.h.b16 %v757
        %v1274 = vunpack.c.l.b16 %v758
        %v1275 = vunpack.c.h.b16 %v758
        %v1276 = vunpack.c.l.b16 %v759
        %v1277 = vunpack.c.h.b16 %v759
        %v1278 = vunpack.c.l.b16 %v760
        %v1279 = vunpack.c.h.b16 %v760
        %v1280 = vunpack.c.l.b16 %v761
        %v1281 = vunpack.c.h.b16 %v761
        %v1282 = vunpack.c.l.b16 %v762
        %v1283 = vunpack.c.h.b16 %v762
        %v1284 = vunpack.c.l.b16 %v763
        %v1285 = vunpack.c.h.b16 %v763
        %v1286 = vunpack.c.l.b16 %v764
        %v1287 = vunpack.c.h.b16 %v764
        %v1288 = vunpack.c.l.b16 %v765
        %v1289 = vunpack.c.h.b16 %v765
        %v1290 = vunpack.c.l.b16 %v766
        %v1291 = vunpack.c.h.b16 %v766
        %v1292 = vunpack.c.l.b16 %v767
        %v1293 = vunpack.c.h.b16 %v767
        %v1294 = vunpack.c.l.b16 %v768
        %v1295 = vunpack.c.h.b16 %v768
        %v1296 = vunpack.c.l.b16 %v769
        %v1297 = vunpack.c.h.b16 %v769
        %v1298 = vunpack.c.l.b16 %v770
        %v1299 = vunpack.c.h.b16 %v770
        %v1300 = vunpack.c.l.b16 %v771
        %v1301 = vunpack.c.h.b16 %v771
        %v1302 = vunpack.c.l.b16 %v772
        %v1303 = vunpack.c.h.b16 %v772
        %v1304 = vunpack.c.l.b16 %v773
        %v1305 = vunpack.c.h.b16 %v773
        %v1306 = vunpack.c.l.b16 %v774
        %v1307 = vunpack.c.h.b16 %v774
        %v1308 = vunpack.c.l.b16 %v775
        %v1309 = vunpack.c.h.b16 %v775
        %v1310 = vunpack.c.l.b16 %v776
        %v1311 = vunpack.c.h.b16 %v776
        %v1312 = vunpack.c.l.b16 %v777
        %v1313 = vunpack.c.h.b16 %v777
        %v1314 = vunpack.c.l.b16 %v778
        %v1315 = vunpack.c.h.b16 %v778
        %v1316 = vunpack.c.l.b16 %v779
        %v1317 = vunpack.c.h.b16 %v779
        %v1318 = vunpack.c.l.b16 %v780
        %v1319 = vunpack.c.h.b16 %v780
        %v1320 = vpack.c.b16 %v1226, %v1224
        %v1321 = vpack.c.b16 %v1227, %v1225
        %v1322 = vpack.c.b16 %v1230, %v1228
        %v1323 = vpack.c.b16 %v1231, %v1229
        %v1324 = vpack.c.b16 %v1234, %v1232
        %v1325 = vpack.c.b16 %v1235, %v1233
        %v1326 = vpack.c.b16 %v1238, %v1236
        %v1327 = vpack.c.b16 %v1239, %v1237
        %v1328 = vpack.c.b16 %v1242, %v1240
        %v1329 = vpack.c.b16 %v1243, %v1241
        %v1330 = vpack.c.b16 %v1246, %v1244
        %v1331 = vpack.c.b16 %v1247, %v1245
        %v1332 = vpack.c.b16 %v1250, %v1248
        %v1333 = vpack.c.b16 %v1251, %v1249
        %v1334 = vpack.c.b16 %v1254, %v1252
        %v1335 = vpack.c.b16 %v1255, %v1253
        %v1336 = vpack.c.b16 %v1258, %v1256
        %v1337 = vpack.c.b16 %v1259, %v1257
        %v1338 = vpack.c.b16 %v1262, %v1260
        %v1339 = vpack.c.b16 %v1263, %v1261
        %v1340 = vpack.c.b16 %v1266, %v1264
        %v1341 = vpack.c.b16 %v1267, %v1265
        %v1342 = vpack.c.b16 %v1270, %v1268
        %v1343 = vpack.c.b16 %v1271, %v1269
        %v1344 = vpack.c.b16 %v1274, %v1272
        %v1345 = vpack.c.b16 %v1275, %v1273
        %v1346 = vpack.c.b16 %v1278, %v1276
        %v1347 = vpack.c.b16 %v1279, %v1277
        %v1348 = vpack.c.b16 %v1282, %v1280
        %v1349 = vpack.c.b16 %v1283, %v1281
        %v1350 = vpack.c.b16 %v1286, %v1284
        %v1351 = vpack.c.b16 %v1287, %v1285
        %v1352 = vpack.c.b16 %v1290, %v1288
        %v1353 = vpack.c.b16 %v1291, %v1289
        %v1354 = vpack.c.b16 %v1294, %v1292
        %v1355 = vpack.c.b16 %v1295, %v1293
        %v1356 = vpack.c.b16 %v1298, %v1296
        %v1357 = vpack.c.b16 %v1299, %v1297
        %v1358 = vpack.c.b16 %v1302, %v1300
        %v1359 = vpack.c.b16 %v1303, %v1301
        %v1360 = vpack.c.b16 %v1306, %v1304
        %v1361 = vpack.c.b16 %v1307, %v1305
        %v1362 = vpack.c.b16 %v1310, %v1308
        %v1363 = vpack.c.b16 %v1311, %v1309
        %v1364 = vpack.c.b16 %v1314, %v1312
        %v1365 = vpack.c.b16 %v1315, %v1313
        %v1366 = vpack.c.b16 %v1318, %v1316
        %v1367 = vpack.c.b16 %v1319, %v1317
        %1416 = vmatprep.subr.bf16.mxu0 %v1335
        %1417 = vmatpush1.bf16.msra.mxu0 %v1334
        %1418 = vmatprep.subr.bf16.mxu0 %v1333
        %1419 = vmatpush1.bf16.msra.mxu0 %v1332
        %1420 = vmatprep.subr.bf16.mxu0 %v1331
        %1421 = vmatpush1.bf16.msra.mxu0 %v1330
        %1422 = vmatprep.subr.bf16.mxu0 %v1329
        %1423 = vmatpush1.bf16.msra.mxu0 %v1328
        %1424 = vmatprep.subr.bf16.mxu0 %v1327
        %1425 = vmatpush1.bf16.msra.mxu0 %v1326
        %1426 = vmatprep.subr.bf16.mxu0 %v1325
        %1427 = vmatpush1.bf16.msra.mxu0 %v1324
        %1428 = vmatprep.subr.bf16.mxu0 %v1323
        %1429 = vmatpush1.bf16.msra.mxu0 %v1322
        %1430 = vmatprep.subr.bf16.mxu0 %v1321
        %1431 = vmatpush1.bf16.msra.mxu0 %v1320
        %1432 = vmatprep.subr.bf16.mxu0 %v1351
        %1433 = vmatpush2.bf16.msra.mxu0 %v1350
        %1434 = vmatprep.subr.bf16.mxu0 %v1349
        %1435 = vmatpush2.bf16.msra.mxu0 %v1348
        %1436 = vmatprep.subr.bf16.mxu0 %v1347
        %1437 = vmatpush2.bf16.msra.mxu0 %v1346
        %1438 = vmatprep.subr.bf16.mxu0 %v1345
        %1439 = vmatpush2.bf16.msra.mxu0 %v1344
        %1440 = vmatprep.subr.bf16.mxu0 %v1343
        %1441 = vmatpush2.bf16.msra.mxu0 %v1342
        %1442 = vmatprep.subr.bf16.mxu0 %v1341
        %1443 = vmatpush2.bf16.msra.mxu0 %v1340
        %1444 = vmatprep.subr.bf16.mxu0 %v1339
        %1445 = vmatpush2.bf16.msra.mxu0 %v1338
        %1446 = vmatprep.subr.bf16.mxu0 %v1337
        %1447 = vmatpush2.bf16.msra.mxu0 %v1336
        %1448 = vmatprep.mubr.bf16.mxu0 %v1027
        %1449 = vmatmul.mubr.bf16.gmra.mxu0 %v1026
        %v1450 = vpop.f32.mrf.mxu0
        %v1451 = vadd.f32 0.0, %v1450
        %v1452 = vpop.f32.mrf.mxu0
        %v1453 = vadd.f32 0.0, %v1452
        %v1454 = vpop.f32.mrf.mxu0
        %v1455 = vadd.f32 0.0, %v1454
        %v1456 = vpop.f32.mrf.mxu0
        %v1457 = vadd.f32 0.0, %v1456
        %1458 = vmatprep.mubr.bf16.mxu0 %v1030
        %1459 = vmatmul.mubr.bf16.gmra.mxu0 %v1029
        %v1460 = vpop.f32.mrf.mxu0
        %v1461 = vadd.f32 0.0, %v1460
        %v1462 = vpop.f32.mrf.mxu0
        %v1463 = vadd.f32 0.0, %v1462
        %v1464 = vpop.f32.mrf.mxu0
        %v1465 = vadd.f32 0.0, %v1464
        %v1466 = vpop.f32.mrf.mxu0
        %v1467 = vadd.f32 0.0, %v1466
        %1468 = vmatprep.mubr.bf16.mxu0 %v1033
        %1469 = vmatmul.mubr.bf16.gmra.mxu0 %v1032
        %v1470 = vpop.f32.mrf.mxu0
        %v1471 = vadd.f32 0.0, %v1470
        %v1472 = vpop.f32.mrf.mxu0
        %v1473 = vadd.f32 0.0, %v1472
        %v1474 = vpop.f32.mrf.mxu0
        %v1475 = vadd.f32 0.0, %v1474
        %v1476 = vpop.f32.mrf.mxu0
        %v1477 = vadd.f32 0.0, %v1476
        %1478 = vmatprep.mubr.bf16.mxu0 %v1036
        %1479 = vmatmul.mubr.bf16.gmra.mxu0 %v1035
        %v1480 = vpop.f32.mrf.mxu0
        %v1481 = vadd.f32 0.0, %v1480
        %v1482 = vpop.f32.mrf.mxu0
        %v1483 = vadd.f32 0.0, %v1482
        %v1484 = vpop.f32.mrf.mxu0
        %v1485 = vadd.f32 0.0, %v1484
        %v1486 = vpop.f32.mrf.mxu0
        %v1487 = vadd.f32 0.0, %v1486
        %1488 = vmatprep.mubr.bf16.mxu0 %v1039
        %1489 = vmatmul.mubr.bf16.gmra.mxu0 %v1038
        %v1490 = vpop.f32.mrf.mxu0
        %v1491 = vadd.f32 0.0, %v1490
        %v1492 = vpop.f32.mrf.mxu0
        %v1493 = vadd.f32 0.0, %v1492
        %v1494 = vpop.f32.mrf.mxu0
        %v1495 = vadd.f32 0.0, %v1494
        %v1496 = vpop.f32.mrf.mxu0
        %v1497 = vadd.f32 0.0, %v1496
        %1498 = vmatprep.mubr.bf16.mxu0 %v1042
        %1499 = vmatmul.mubr.bf16.gmra.mxu0 %v1041
        %v1500 = vpop.f32.mrf.mxu0
        %v1501 = vadd.f32 0.0, %v1500
        %v1502 = vpop.f32.mrf.mxu0
        %v1503 = vadd.f32 0.0, %v1502
        %v1504 = vpop.f32.mrf.mxu0
        %v1505 = vadd.f32 0.0, %v1504
        %v1506 = vpop.f32.mrf.mxu0
        %v1507 = vadd.f32 0.0, %v1506
        %1508 = vmatprep.mubr.bf16.mxu0 %v1045
        %1509 = vmatmul.mubr.bf16.gmra.mxu0 %v1044
        %v1510 = vpop.f32.mrf.mxu0
        %v1511 = vadd.f32 0.0, %v1510
        %v1512 = vpop.f32.mrf.mxu0
        %v1513 = vadd.f32 0.0, %v1512
        %v1514 = vpop.f32.mrf.mxu0
        %v1515 = vadd.f32 0.0, %v1514
        %v1516 = vpop.f32.mrf.mxu0
        %v1517 = vadd.f32 0.0, %v1516
        %1518 = vmatprep.mubr.bf16.mxu0 %v1048
        %1519 = vmatmul.mubr.bf16.gmra.mxu0 %v1047
        %v1520 = vpop.f32.mrf.mxu0
        %v1521 = vadd.f32 0.0, %v1520
        %v1522 = vpop.f32.mrf.mxu0
        %v1523 = vadd.f32 0.0, %v1522
        %v1524 = vpop.f32.mrf.mxu0
        %v1525 = vadd.f32 0.0, %v1524
        %v1526 = vpop.f32.mrf.mxu0
        %v1527 = vadd.f32 0.0, %v1526
        %1528 = vmatprep.mubr.bf16.mxu0 %v1051
        %1529 = vmatmul.mubr.bf16.gmra.mxu0 %v1050
        %v1530 = vpop.f32.mrf.mxu0
        %v1531 = vadd.f32 0.0, %v1530
        %v1532 = vpop.f32.mrf.mxu0
        %v1533 = vadd.f32 0.0, %v1532
        %v1534 = vpop.f32.mrf.mxu0
        %v1535 = vadd.f32 0.0, %v1534
        %v1536 = vpop.f32.mrf.mxu0
        %v1537 = vadd.f32 0.0, %v1536
        %1538 = vmatprep.mubr.bf16.mxu0 %v1054
        %1539 = vmatmul.mubr.bf16.gmra.mxu0 %v1053
        %v1540 = vpop.f32.mrf.mxu0
        %v1541 = vadd.f32 0.0, %v1540
        %v1542 = vpop.f32.mrf.mxu0
        %v1543 = vadd.f32 0.0, %v1542
        %v1544 = vpop.f32.mrf.mxu0
        %v1545 = vadd.f32 0.0, %v1544
        %v1546 = vpop.f32.mrf.mxu0
        %v1547 = vadd.f32 0.0, %v1546
        %1548 = vmatprep.mubr.bf16.mxu0 %v1057
        %1549 = vmatmul.mubr.bf16.gmra.mxu0 %v1056
        %v1550 = vpop.f32.mrf.mxu0
        %v1551 = vadd.f32 0.0, %v1550
        %v1552 = vpop.f32.mrf.mxu0
        %v1553 = vadd.f32 0.0, %v1552
        %v1554 = vpop.f32.mrf.mxu0
        %v1555 = vadd.f32 0.0, %v1554
        %v1556 = vpop.f32.mrf.mxu0
        %v1557 = vadd.f32 0.0, %v1556
        %1558 = vmatprep.mubr.bf16.mxu0 %v1060
        %1559 = vmatmul.mubr.bf16.gmra.mxu0 %v1059
        %v1560 = vpop.f32.mrf.mxu0
        %v1561 = vadd.f32 0.0, %v1560
        %v1562 = vpop.f32.mrf.mxu0
        %v1563 = vadd.f32 0.0, %v1562
        %v1564 = vpop.f32.mrf.mxu0
        %v1565 = vadd.f32 0.0, %v1564
        %v1566 = vpop.f32.mrf.mxu0
        %v1567 = vadd.f32 0.0, %v1566
        %1568 = vmatprep.mubr.bf16.mxu0 %v1063
        %1569 = vmatmul.mubr.bf16.gmra.mxu0 %v1062
        %v1570 = vpop.f32.mrf.mxu0
        %v1571 = vadd.f32 0.0, %v1570
        %v1572 = vpop.f32.mrf.mxu0
        %v1573 = vadd.f32 0.0, %v1572
        %v1574 = vpop.f32.mrf.mxu0
        %v1575 = vadd.f32 0.0, %v1574
        %v1576 = vpop.f32.mrf.mxu0
        %v1577 = vadd.f32 0.0, %v1576
        %1578 = vmatprep.mubr.bf16.mxu0 %v1066
        %1579 = vmatmul.mubr.bf16.gmra.mxu0 %v1065
        %v1580 = vpop.f32.mrf.mxu0
        %v1581 = vadd.f32 0.0, %v1580
        %v1582 = vpop.f32.mrf.mxu0
        %v1583 = vadd.f32 0.0, %v1582
        %v1584 = vpop.f32.mrf.mxu0
        %v1585 = vadd.f32 0.0, %v1584
        %v1586 = vpop.f32.mrf.mxu0
        %v1587 = vadd.f32 0.0, %v1586
        %1588 = vmatprep.mubr.bf16.mxu0 %v1069
        %1589 = vmatmul.mubr.bf16.gmra.mxu0 %v1068
        %v1590 = vpop.f32.mrf.mxu0
        %v1591 = vadd.f32 0.0, %v1590
        %v1592 = vpop.f32.mrf.mxu0
        %v1593 = vadd.f32 0.0, %v1592
        %v1594 = vpop.f32.mrf.mxu0
        %v1595 = vadd.f32 0.0, %v1594
        %v1596 = vpop.f32.mrf.mxu0
        %v1597 = vadd.f32 0.0, %v1596
        %1598 = vmatprep.mubr.bf16.mxu0 %v1072
        %1599 = vmatmul.mubr.bf16.gmra.mxu0 %v1071
        %v1600 = vpop.f32.mrf.mxu0
        %v1601 = vadd.f32 0.0, %v1600
        %v1602 = vpop.f32.mrf.mxu0
        %v1603 = vadd.f32 0.0, %v1602
        %v1604 = vpop.f32.mrf.mxu0
        %v1605 = vadd.f32 0.0, %v1604
        %v1606 = vpop.f32.mrf.mxu0
        %v1607 = vadd.f32 0.0, %v1606
        %1608 = vmatprep.mubr.bf16.mxu0 %v1075
        %1609 = vmatmul.mubr.bf16.gmra.mxu0 %v1074
        %v1610 = vpop.f32.mrf.mxu0
        %v1611 = vadd.f32 0.0, %v1610
        %v1612 = vpop.f32.mrf.mxu0
        %v1613 = vadd.f32 0.0, %v1612
        %v1614 = vpop.f32.mrf.mxu0
        %v1615 = vadd.f32 0.0, %v1614
        %v1616 = vpop.f32.mrf.mxu0
        %v1617 = vadd.f32 0.0, %v1616
        %1618 = vmatprep.mubr.bf16.mxu0 %v1078
        %1619 = vmatmul.mubr.bf16.gmra.mxu0 %v1077
        %v1620 = vpop.f32.mrf.mxu0
        %v1621 = vadd.f32 0.0, %v1620
        %v1622 = vpop.f32.mrf.mxu0
        %v1623 = vadd.f32 0.0, %v1622
        %v1624 = vpop.f32.mrf.mxu0
        %v1625 = vadd.f32 0.0, %v1624
        %v1626 = vpop.f32.mrf.mxu0
        %v1627 = vadd.f32 0.0, %v1626
        %1628 = vmatprep.mubr.bf16.mxu0 %v1081
        %1629 = vmatmul.mubr.bf16.gmra.mxu0 %v1080
        %v1630 = vpop.f32.mrf.mxu0
        %v1631 = vadd.f32 0.0, %v1630
        %v1632 = vpop.f32.mrf.mxu0
        %v1633 = vadd.f32 0.0, %v1632
        %v1634 = vpop.f32.mrf.mxu0
        %v1635 = vadd.f32 0.0, %v1634
        %v1636 = vpop.f32.mrf.mxu0
        %v1637 = vadd.f32 0.0, %v1636
        %1638 = vmatprep.mubr.bf16.mxu0 %v1084
        %1639 = vmatmul.mubr.bf16.gmra.mxu0 %v1083
        %v1640 = vpop.f32.mrf.mxu0
        %v1641 = vadd.f32 0.0, %v1640
        %v1642 = vpop.f32.mrf.mxu0
        %v1643 = vadd.f32 0.0, %v1642
        %v1644 = vpop.f32.mrf.mxu0
        %v1645 = vadd.f32 0.0, %v1644
        %v1646 = vpop.f32.mrf.mxu0
        %v1647 = vadd.f32 0.0, %v1646
        %1648 = vmatprep.mubr.bf16.mxu0 %v1087
        %1649 = vmatmul.mubr.bf16.gmra.mxu0 %v1086
        %v1650 = vpop.f32.mrf.mxu0
        %v1651 = vadd.f32 0.0, %v1650
        %v1652 = vpop.f32.mrf.mxu0
        %v1653 = vadd.f32 0.0, %v1652
        %v1654 = vpop.f32.mrf.mxu0
        %v1655 = vadd.f32 0.0, %v1654
        %v1656 = vpop.f32.mrf.mxu0
        %v1657 = vadd.f32 0.0, %v1656
        %1658 = vmatprep.mubr.bf16.mxu0 %v1090
        %1659 = vmatmul.mubr.bf16.gmra.mxu0 %v1089
        %v1660 = vpop.f32.mrf.mxu0
        %v1661 = vadd.f32 0.0, %v1660
        %v1662 = vpop.f32.mrf.mxu0
        %v1663 = vadd.f32 0.0, %v1662
        %v1664 = vpop.f32.mrf.mxu0
        %v1665 = vadd.f32 0.0, %v1664
        %v1666 = vpop.f32.mrf.mxu0
        %v1667 = vadd.f32 0.0, %v1666
        %1668 = vmatprep.mubr.bf16.mxu0 %v1093
        %1669 = vmatmul.mubr.bf16.gmra.mxu0 %v1092
        %v1670 = vpop.f32.mrf.mxu0
        %v1671 = vadd.f32 0.0, %v1670
        %v1672 = vpop.f32.mrf.mxu0
        %v1673 = vadd.f32 0.0, %v1672
        %v1674 = vpop.f32.mrf.mxu0
        %v1675 = vadd.f32 0.0, %v1674
        %v1676 = vpop.f32.mrf.mxu0
        %v1677 = vadd.f32 0.0, %v1676
        %1678 = vmatprep.mubr.bf16.mxu0 %v1096
        %1679 = vmatmul.mubr.bf16.gmra.mxu0 %v1095
        %v1680 = vpop.f32.mrf.mxu0
        %v1681 = vadd.f32 0.0, %v1680
        %v1682 = vpop.f32.mrf.mxu0
        %v1683 = vadd.f32 0.0, %v1682
        %v1684 = vpop.f32.mrf.mxu0
        %v1685 = vadd.f32 0.0, %v1684
        %v1686 = vpop.f32.mrf.mxu0
        %v1687 = vadd.f32 0.0, %v1686
        %1688 = vmatprep.mubr.bf16.mxu0 %v1099
        %1689 = vmatmul.mubr.bf16.gmra.mxu0 %v1098
        %v1690 = vpop.f32.mrf.mxu0
        %v1691 = vadd.f32 0.0, %v1690
        %v1692 = vpop.f32.mrf.mxu0
        %v1693 = vadd.f32 0.0, %v1692
        %v1694 = vpop.f32.mrf.mxu0
        %v1695 = vpop.f32.mrf.mxu0
        %1696 = vdwg.mxu0
        %1697 = vmatprep.subr.bf16.mxu0 %v1367
        %1698 = vmatpush1.bf16.msra.mxu0 %v1366
        %1699 = vmatprep.subr.bf16.mxu0 %v1365
        %1700 = vmatpush1.bf16.msra.mxu0 %v1364
        %1701 = vmatprep.subr.bf16.mxu0 %v1363
        %1702 = vmatpush1.bf16.msra.mxu0 %v1362
        %1703 = vmatprep.subr.bf16.mxu0 %v1361
        %1704 = vmatpush1.bf16.msra.mxu0 %v1360
        %1705 = vmatprep.subr.bf16.mxu0 %v1359
        %1706 = vmatpush1.bf16.msra.mxu0 %v1358
        %1707 = vmatprep.subr.bf16.mxu0 %v1357
        %1708 = vmatpush1.bf16.msra.mxu0 %v1356
        %1709 = vmatprep.subr.bf16.mxu0 %v1355
        %1710 = vmatpush1.bf16.msra.mxu0 %v1354
        %1711 = vmatprep.subr.bf16.mxu0 %v1353
        %1712 = vmatpush1.bf16.msra.mxu0 %v1352
        %1713 = vmatprep.subr.bf16.mxu0 0
        %1714 = vmatpush2.bf16.msra.mxu0 0
        %1715 = vmatprep.subr.bf16.mxu0 0
        %1716 = vmatpush2.bf16.msra.mxu0 0
        %1717 = vmatprep.subr.bf16.mxu0 0
        %1718 = vmatpush2.bf16.msra.mxu0 0
        %1719 = vmatprep.subr.bf16.mxu0 0
        %1720 = vmatpush2.bf16.msra.mxu0 0
        %1721 = vmatprep.subr.bf16.mxu0 0
        %1722 = vmatpush2.bf16.msra.mxu0 0
        %1723 = vmatprep.subr.bf16.mxu0 0
        %1724 = vmatpush2.bf16.msra.mxu0 0
        %1725 = vmatprep.subr.bf16.mxu0 0
        %1726 = vmatpush2.bf16.msra.mxu0 0
        %1727 = vmatprep.subr.bf16.mxu0 0
        %1728 = vmatpush2.bf16.msra.mxu0 0
        %1729 = vmatprep.mubr.bf16.mxu0 0
        %1730 = vmatmul.mubr.bf16.gmra.mxu0 %v1028
        %v1731 = vpop.f32.mrf.mxu0
        %v1732 = vadd.f32 %v1451, %v1731
        %v1733 = vpop.f32.mrf.mxu0
        %v1734 = vadd.f32 %v1453, %v1733
        %v1735 = vpop.f32.mrf.mxu0
        %v1736 = vadd.f32 %v1455, %v1735
        %v1737 = vpop.f32.mrf.mxu0
        %v1738 = vadd.f32 %v1457, %v1737
        %1739 = vmatprep.mubr.bf16.mxu0 0
        %1740 = vmatmul.mubr.bf16.gmra.mxu0 %v1031
        %v1741 = vpop.f32.mrf.mxu0
        %v1742 = vadd.f32 %v1461, %v1741
        %v1743 = vpop.f32.mrf.mxu0
        %v1744 = vadd.f32 %v1463, %v1743
        %v1745 = vpop.f32.mrf.mxu0
        %v1746 = vadd.f32 %v1465, %v1745
        %v1747 = vpop.f32.mrf.mxu0
        %v1748 = vadd.f32 %v1467, %v1747
        %1749 = vmatprep.mubr.bf16.mxu0 0
        %1750 = vmatmul.mubr.bf16.gmra.mxu0 %v1034
        %v1751 = vpop.f32.mrf.mxu0
        %v1752 = vadd.f32 %v1471, %v1751
        %v1753 = vpop.f32.mrf.mxu0
        %v1754 = vadd.f32 %v1473, %v1753
        %v1755 = vpop.f32.mrf.mxu0
        %v1756 = vadd.f32 %v1475, %v1755
        %v1757 = vpop.f32.mrf.mxu0
        %v1758 = vadd.f32 %v1477, %v1757
        %1759 = vmatprep.mubr.bf16.mxu0 0
        %1760 = vmatmul.mubr.bf16.gmra.mxu0 %v1037
        %v1761 = vpop.f32.mrf.mxu0
        %v1762 = vadd.f32 %v1481, %v1761
        %v1763 = vpop.f32.mrf.mxu0
        %v1764 = vadd.f32 %v1483, %v1763
        %v1765 = vpop.f32.mrf.mxu0
        %v1766 = vadd.f32 %v1485, %v1765
        %v1767 = vpop.f32.mrf.mxu0
        %v1768 = vadd.f32 %v1487, %v1767
        %1769 = vmatprep.mubr.bf16.mxu0 0
        %1770 = vmatmul.mubr.bf16.gmra.mxu0 %v1040
        %v1771 = vpop.f32.mrf.mxu0
        %v1772 = vadd.f32 %v1491, %v1771
        %v1773 = vpop.f32.mrf.mxu0
        %v1774 = vadd.f32 %v1493, %v1773
        %v1775 = vpop.f32.mrf.mxu0
        %v1776 = vadd.f32 %v1495, %v1775
        %v1777 = vpop.f32.mrf.mxu0
        %v1778 = vadd.f32 %v1497, %v1777
        %1779 = vmatprep.mubr.bf16.mxu0 0
        %1780 = vmatmul.mubr.bf16.gmra.mxu0 %v1043
        %v1781 = vpop.f32.mrf.mxu0
        %v1782 = vadd.f32 %v1501, %v1781
        %v1783 = vpop.f32.mrf.mxu0
        %v1784 = vadd.f32 %v1503, %v1783
        %v1785 = vpop.f32.mrf.mxu0
        %v1786 = vadd.f32 %v1505, %v1785
        %v1787 = vpop.f32.mrf.mxu0
        %v1788 = vadd.f32 %v1507, %v1787
        %1789 = vmatprep.mubr.bf16.mxu0 0
        %1790 = vmatmul.mubr.bf16.gmra.mxu0 %v1046
        %v1791 = vpop.f32.mrf.mxu0
        %v1792 = vadd.f32 %v1511, %v1791
        %v1793 = vpop.f32.mrf.mxu0
        %v1794 = vadd.f32 %v1513, %v1793
        %v1795 = vpop.f32.mrf.mxu0
        %v1796 = vadd.f32 %v1515, %v1795
        %v1797 = vpop.f32.mrf.mxu0
        %v1798 = vadd.f32 %v1517, %v1797
        %1799 = vmatprep.mubr.bf16.mxu0 0
        %1800 = vmatmul.mubr.bf16.gmra.mxu0 %v1049
        %v1801 = vpop.f32.mrf.mxu0
        %v1802 = vadd.f32 %v1521, %v1801
        %v1803 = vpop.f32.mrf.mxu0
        %v1804 = vadd.f32 %v1523, %v1803
        %v1805 = vpop.f32.mrf.mxu0
        %v1806 = vadd.f32 %v1525, %v1805
        %v1807 = vpop.f32.mrf.mxu0
        %v1808 = vadd.f32 %v1527, %v1807
        %1809 = vmatprep.mubr.bf16.mxu0 0
        %1810 = vmatmul.mubr.bf16.gmra.mxu0 %v1052
        %v1811 = vpop.f32.mrf.mxu0
        %v1812 = vadd.f32 %v1531, %v1811
        %v1813 = vpop.f32.mrf.mxu0
        %v1814 = vadd.f32 %v1533, %v1813
        %v1815 = vpop.f32.mrf.mxu0
        %v1816 = vadd.f32 %v1535, %v1815
        %v1817 = vpop.f32.mrf.mxu0
        %v1818 = vadd.f32 %v1537, %v1817
        %1819 = vmatprep.mubr.bf16.mxu0 0
        %1820 = vmatmul.mubr.bf16.gmra.mxu0 %v1055
        %v1821 = vpop.f32.mrf.mxu0
        %v1822 = vadd.f32 %v1541, %v1821
        %v1823 = vpop.f32.mrf.mxu0
        %v1824 = vadd.f32 %v1543, %v1823
        %v1825 = vpop.f32.mrf.mxu0
        %v1826 = vadd.f32 %v1545, %v1825
        %v1827 = vpop.f32.mrf.mxu0
        %v1828 = vadd.f32 %v1547, %v1827
        %1829 = vmatprep.mubr.bf16.mxu0 0
        %1830 = vmatmul.mubr.bf16.gmra.mxu0 %v1058
        %v1831 = vpop.f32.mrf.mxu0
        %v1832 = vadd.f32 %v1551, %v1831
        %v1833 = vpop.f32.mrf.mxu0
        %v1834 = vadd.f32 %v1553, %v1833
        %v1835 = vpop.f32.mrf.mxu0
        %v1836 = vadd.f32 %v1555, %v1835
        %v1837 = vpop.f32.mrf.mxu0
        %v1838 = vadd.f32 %v1557, %v1837
        %1839 = vmatprep.mubr.bf16.mxu0 0
        %1840 = vmatmul.mubr.bf16.gmra.mxu0 %v1061
        %v1841 = vpop.f32.mrf.mxu0
        %v1842 = vadd.f32 %v1561, %v1841
        %v1843 = vpop.f32.mrf.mxu0
        %v1844 = vadd.f32 %v1563, %v1843
        %v1845 = vpop.f32.mrf.mxu0
        %v1846 = vadd.f32 %v1565, %v1845
        %v1847 = vpop.f32.mrf.mxu0
        %v1848 = vadd.f32 %v1567, %v1847
        %1849 = vmatprep.mubr.bf16.mxu0 0
        %1850 = vmatmul.mubr.bf16.gmra.mxu0 %v1064
        %v1851 = vpop.f32.mrf.mxu0
        %v1852 = vadd.f32 %v1571, %v1851
        %v1853 = vpop.f32.mrf.mxu0
        %v1854 = vadd.f32 %v1573, %v1853
        %v1855 = vpop.f32.mrf.mxu0
        %v1856 = vadd.f32 %v1575, %v1855
        %v1857 = vpop.f32.mrf.mxu0
        %v1858 = vadd.f32 %v1577, %v1857
        %1859 = vmatprep.mubr.bf16.mxu0 0
        %1860 = vmatmul.mubr.bf16.gmra.mxu0 %v1067
        %v1861 = vpop.f32.mrf.mxu0
        %v1862 = vadd.f32 %v1581, %v1861
        %v1863 = vpop.f32.mrf.mxu0
        %v1864 = vadd.f32 %v1583, %v1863
        %v1865 = vpop.f32.mrf.mxu0
        %v1866 = vadd.f32 %v1585, %v1865
        %v1867 = vpop.f32.mrf.mxu0
        %v1868 = vadd.f32 %v1587, %v1867
        %1869 = vmatprep.mubr.bf16.mxu0 0
        %1870 = vmatmul.mubr.bf16.gmra.mxu0 %v1070
        %v1871 = vpop.f32.mrf.mxu0
        %v1872 = vadd.f32 %v1591, %v1871
        %v1873 = vpop.f32.mrf.mxu0
        %v1874 = vadd.f32 %v1593, %v1873
        %v1875 = vpop.f32.mrf.mxu0
        %v1876 = vadd.f32 %v1595, %v1875
        %v1877 = vpop.f32.mrf.mxu0
        %v1878 = vadd.f32 %v1597, %v1877
        %1879 = vmatprep.mubr.bf16.mxu0 0
        %1880 = vmatmul.mubr.bf16.gmra.mxu0 %v1073
        %v1881 = vpop.f32.mrf.mxu0
        %v1882 = vadd.f32 %v1601, %v1881
        %v1883 = vpop.f32.mrf.mxu0
        %v1884 = vadd.f32 %v1603, %v1883
        %v1885 = vpop.f32.mrf.mxu0
        %v1886 = vadd.f32 %v1605, %v1885
        %v1887 = vpop.f32.mrf.mxu0
        %v1888 = vadd.f32 %v1607, %v1887
        %1889 = vmatprep.mubr.bf16.mxu0 0
        %1890 = vmatmul.mubr.bf16.gmra.mxu0 %v1076
        %v1891 = vpop.f32.mrf.mxu0
        %v1892 = vadd.f32 %v1611, %v1891
        %v1893 = vpop.f32.mrf.mxu0
        %v1894 = vadd.f32 %v1613, %v1893
        %v1895 = vpop.f32.mrf.mxu0
        %v1896 = vadd.f32 %v1615, %v1895
        %v1897 = vpop.f32.mrf.mxu0
        %v1898 = vadd.f32 %v1617, %v1897
        %1899 = vmatprep.mubr.bf16.mxu0 0
        %1900 = vmatmul.mubr.bf16.gmra.mxu0 %v1079
        %v1901 = vpop.f32.mrf.mxu0
        %v1902 = vadd.f32 %v1621, %v1901
        %v1903 = vpop.f32.mrf.mxu0
        %v1904 = vadd.f32 %v1623, %v1903
        %v1905 = vpop.f32.mrf.mxu0
        %v1906 = vadd.f32 %v1625, %v1905
        %v1907 = vpop.f32.mrf.mxu0
        %v1908 = vadd.f32 %v1627, %v1907
        %1909 = vmatprep.mubr.bf16.mxu0 0
        %1910 = vmatmul.mubr.bf16.gmra.mxu0 %v1082
        %v1911 = vpop.f32.mrf.mxu0
        %v1912 = vadd.f32 %v1631, %v1911
        %v1913 = vpop.f32.mrf.mxu0
        %v1914 = vadd.f32 %v1633, %v1913
        %v1915 = vpop.f32.mrf.mxu0
        %v1916 = vadd.f32 %v1635, %v1915
        %v1917 = vpop.f32.mrf.mxu0
        %v1918 = vadd.f32 %v1637, %v1917
        %1919 = vmatprep.mubr.bf16.mxu0 0
        %1920 = vmatmul.mubr.bf16.gmra.mxu0 %v1085
        %v1921 = vpop.f32.mrf.mxu0
        %v1922 = vadd.f32 %v1641, %v1921
        %v1923 = vpop.f32.mrf.mxu0
        %v1924 = vadd.f32 %v1643, %v1923
        %v1925 = vpop.f32.mrf.mxu0
        %v1926 = vadd.f32 %v1645, %v1925
        %v1927 = vpop.f32.mrf.mxu0
        %v1928 = vadd.f32 %v1647, %v1927
        %1929 = vmatprep.mubr.bf16.mxu0 0
        %1930 = vmatmul.mubr.bf16.gmra.mxu0 %v1088
        %v1931 = vpop.f32.mrf.mxu0
        %v1932 = vadd.f32 %v1651, %v1931
        %v1933 = vpop.f32.mrf.mxu0
        %v1934 = vadd.f32 %v1653, %v1933
        %v1935 = vpop.f32.mrf.mxu0
        %v1936 = vadd.f32 %v1655, %v1935
        %v1937 = vpop.f32.mrf.mxu0
        %v1938 = vadd.f32 %v1657, %v1937
        %1939 = vmatprep.mubr.bf16.mxu0 0
        %1940 = vmatmul.mubr.bf16.gmra.mxu0 %v1091
        %v1941 = vpop.f32.mrf.mxu0
        %v1942 = vadd.f32 %v1661, %v1941
        %v1943 = vpop.f32.mrf.mxu0
        %v1944 = vadd.f32 %v1663, %v1943
        %v1945 = vpop.f32.mrf.mxu0
        %v1946 = vadd.f32 %v1665, %v1945
        %v1947 = vpop.f32.mrf.mxu0
        %v1948 = vadd.f32 %v1667, %v1947
        %1949 = vmatprep.mubr.bf16.mxu0 0
        %1950 = vmatmul.mubr.bf16.gmra.mxu0 %v1094
        %v1951 = vpop.f32.mrf.mxu0
        %v1952 = vadd.f32 %v1671, %v1951
        %v1953 = vpop.f32.mrf.mxu0
        %v1954 = vadd.f32 %v1673, %v1953
        %v1955 = vpop.f32.mrf.mxu0
        %v1956 = vadd.f32 %v1675, %v1955
        %v1957 = vpop.f32.mrf.mxu0
        %v1958 = vadd.f32 %v1677, %v1957
        %1959 = vmatprep.mubr.bf16.mxu0 0
        %1960 = vmatmul.mubr.bf16.gmra.mxu0 %v1097
        %v1961 = vpop.f32.mrf.mxu0
        %v1962 = vadd.f32 %v1681, %v1961
        %v1963 = vpop.f32.mrf.mxu0
        %v1964 = vadd.f32 %v1683, %v1963
        %v1965 = vpop.f32.mrf.mxu0
        %v1966 = vadd.f32 %v1685, %v1965
        %v1967 = vpop.f32.mrf.mxu0
        %v1968 = vadd.f32 %v1687, %v1967
        %1969 = vmatprep.mubr.bf16.mxu0 0
        %1970 = vmatmul.mubr.bf16.gmra.mxu0 %v1100
        %v1971 = vpop.f32.mrf.mxu0
        %v1972 = vadd.f32 %v1691, %v1971
        %v1973 = vpop.f32.mrf.mxu0
        %v1974 = vadd.f32 %v1693, %v1973
        %v1975 = vpop.f32.mrf.mxu0
        %v1976 = vpop.f32.mrf.mxu0
        %1977 = vdwg.mxu0
        %1978 = vst [vmem:[#allocation3] sm:$0xff] %v1732
        %1979 = vst [vmem:[#allocation3 + $0x8] sm:$0xff] %v1734
        %1980 = vst [vmem:[#allocation3 + $0x10] sm:$0xff] %v1736
        %1981 = vst [vmem:[#allocation3 + $0x18] sm:$0xff] %v1738
        %1982 = vst [vmem:[#allocation3 + $0x20] sm:$0xff] %v1742
        %1983 = vst [vmem:[#allocation3 + $0x28] sm:$0xff] %v1744
        %1984 = vst [vmem:[#allocation3 + $0x30] sm:$0xff] %v1746
        %1985 = vst [vmem:[#allocation3 + $0x38] sm:$0xff] %v1748
        %1986 = vst [vmem:[#allocation3 + $0x40] sm:$0xff] %v1752
        %1987 = vst [vmem:[#allocation3 + $0x48] sm:$0xff] %v1754
        %1988 = vst [vmem:[#allocation3 + $0x50] sm:$0xff] %v1756
        %1989 = vst [vmem:[#allocation3 + $0x58] sm:$0xff] %v1758
        %1990 = vst [vmem:[#allocation3 + $0x60] sm:$0xff] %v1762
        %1991 = vst [vmem:[#allocation3 + $0x68] sm:$0xff] %v1764
        %1992 = vst [vmem:[#allocation3 + $0x70] sm:$0xff] %v1766
        %1993 = vst [vmem:[#allocation3 + $0x78] sm:$0xff] %v1768
        %1994 = vst [vmem:[#allocation3 + $0x80] sm:$0xff] %v1772
        %1995 = vst [vmem:[#allocation3 + $0x88] sm:$0xff] %v1774
        %1996 = vst [vmem:[#allocation3 + $0x90] sm:$0xff] %v1776
        %1997 = vst [vmem:[#allocation3 + $0x98] sm:$0xff] %v1778
        %1998 = vst [vmem:[#allocation3 + $0xa0] sm:$0xff] %v1782
        %1999 = vst [vmem:[#allocation3 + $0xa8] sm:$0xff] %v1784
        %2000 = vst [vmem:[#allocation3 + $0xb0] sm:$0xff] %v1786
        %2001 = vst [vmem:[#allocation3 + $0xb8] sm:$0xff] %v1788
        %2002 = vst [vmem:[#allocation3 + $0xc0] sm:$0xff] %v1792
        %2003 = vst [vmem:[#allocation3 + $0xc8] sm:$0xff] %v1794
        %2004 = vst [vmem:[#allocation3 + $0xd0] sm:$0xff] %v1796
        %2005 = vst [vmem:[#allocation3 + $0xd8] sm:$0xff] %v1798
        %2006 = vst [vmem:[#allocation3 + $0xe0] sm:$0xff] %v1802
        %2007 = vst [vmem:[#allocation3 + $0xe8] sm:$0xff] %v1804
        %2008 = vst [vmem:[#allocation3 + $0xf0] sm:$0xff] %v1806
        %2009 = vst [vmem:[#allocation3 + $0xf8] sm:$0xff] %v1808
        %2010 = vst [vmem:[#allocation3 + $0x100] sm:$0xff] %v1812
        %2011 = vst [vmem:[#allocation3 + $0x108] sm:$0xff] %v1814
        %2012 = vst [vmem:[#allocation3 + $0x110] sm:$0xff] %v1816
        %2013 = vst [vmem:[#allocation3 + $0x118] sm:$0xff] %v1818
        %2014 = vst [vmem:[#allocation3 + $0x120] sm:$0xff] %v1822
        %2015 = vst [vmem:[#allocation3 + $0x128] sm:$0xff] %v1824
        %2016 = vst [vmem:[#allocation3 + $0x130] sm:$0xff] %v1826
        %2017 = vst [vmem:[#allocation3 + $0x138] sm:$0xff] %v1828
        %2018 = vst [vmem:[#allocation3 + $0x140] sm:$0xff] %v1832
        %2019 = vst [vmem:[#allocation3 + $0x148] sm:$0xff] %v1834
        %2020 = vst [vmem:[#allocation3 + $0x150] sm:$0xff] %v1836
        %2021 = vst [vmem:[#allocation3 + $0x158] sm:$0xff] %v1838
        %2022 = vst [vmem:[#allocation3 + $0x160] sm:$0xff] %v1842
        %2023 = vst [vmem:[#allocation3 + $0x168] sm:$0xff] %v1844
        %2024 = vst [vmem:[#allocation3 + $0x170] sm:$0xff] %v1846
        %2025 = vst [vmem:[#allocation3 + $0x178] sm:$0xff] %v1848
        %2026 = vst [vmem:[#allocation3 + $0x180] sm:$0xff] %v1852
        %2027 = vst [vmem:[#allocation3 + $0x188] sm:$0xff] %v1854
        %2028 = vst [vmem:[#allocation3 + $0x190] sm:$0xff] %v1856
        %2029 = vst [vmem:[#allocation3 + $0x198] sm:$0xff] %v1858
        %2030 = vst [vmem:[#allocation3 + $0x1a0] sm:$0xff] %v1862
        %2031 = vst [vmem:[#allocation3 + $0x1a8] sm:$0xff] %v1864
        %2032 = vst [vmem:[#allocation3 + $0x1b0] sm:$0xff] %v1866
        %2033 = vst [vmem:[#allocation3 + $0x1b8] sm:$0xff] %v1868
        %2034 = vst [vmem:[#allocation3 + $0x1c0] sm:$0xff] %v1872
        %2035 = vst [vmem:[#allocation3 + $0x1c8] sm:$0xff] %v1874
        %2036 = vst [vmem:[#allocation3 + $0x1d0] sm:$0xff] %v1876
        %2037 = vst [vmem:[#allocation3 + $0x1d8] sm:$0xff] %v1878
        %2038 = vst [vmem:[#allocation3 + $0x1e0] sm:$0xff] %v1882
        %2039 = vst [vmem:[#allocation3 + $0x1e8] sm:$0xff] %v1884
        %2040 = vst [vmem:[#allocation3 + $0x1f0] sm:$0xff] %v1886
        %2041 = vst [vmem:[#allocation3 + $0x1f8] sm:$0xff] %v1888
        %2042 = vst [vmem:[#allocation3 + $0x200] sm:$0xff] %v1892
        %2043 = vst [vmem:[#allocation3 + $0x208] sm:$0xff] %v1894
        %2044 = vst [vmem:[#allocation3 + $0x210] sm:$0xff] %v1896
        %2045 = vst [vmem:[#allocation3 + $0x218] sm:$0xff] %v1898
        %2046 = vst [vmem:[#allocation3 + $0x220] sm:$0xff] %v1902
        %2047 = vst [vmem:[#allocation3 + $0x228] sm:$0xff] %v1904
        %2048 = vst [vmem:[#allocation3 + $0x230] sm:$0xff] %v1906
        %2049 = vst [vmem:[#allocation3 + $0x238] sm:$0xff] %v1908
        %2050 = vst [vmem:[#allocation3 + $0x240] sm:$0xff] %v1912
        %2051 = vst [vmem:[#allocation3 + $0x248] sm:$0xff] %v1914
        %2052 = vst [vmem:[#allocation3 + $0x250] sm:$0xff] %v1916
        %2053 = vst [vmem:[#allocation3 + $0x258] sm:$0xff] %v1918
        %2054 = vst [vmem:[#allocation3 + $0x260] sm:$0xff] %v1922
        %2055 = vst [vmem:[#allocation3 + $0x268] sm:$0xff] %v1924
        %2056 = vst [vmem:[#allocation3 + $0x270] sm:$0xff] %v1926
        %2057 = vst [vmem:[#allocation3 + $0x278] sm:$0xff] %v1928
        %2058 = vst [vmem:[#allocation3 + $0x280] sm:$0xff] %v1932
        %2059 = vst [vmem:[#allocation3 + $0x288] sm:$0xff] %v1934
        %2060 = vst [vmem:[#allocation3 + $0x290] sm:$0xff] %v1936
        %2061 = vst [vmem:[#allocation3 + $0x298] sm:$0xff] %v1938
        %2062 = vst [vmem:[#allocation3 + $0x2a0] sm:$0xff] %v1942
        %2063 = vst [vmem:[#allocation3 + $0x2a8] sm:$0xff] %v1944
        %2064 = vst [vmem:[#allocation3 + $0x2b0] sm:$0xff] %v1946
        %2065 = vst [vmem:[#allocation3 + $0x2b8] sm:$0xff] %v1948
        %2066 = vst [vmem:[#allocation3 + $0x2c0] sm:$0xff] %v1952
        %2067 = vst [vmem:[#allocation3 + $0x2c8] sm:$0xff] %v1954
        %2068 = vst [vmem:[#allocation3 + $0x2d0] sm:$0xff] %v1956
        %2069 = vst [vmem:[#allocation3 + $0x2d8] sm:$0xff] %v1958
        %2070 = vst [vmem:[#allocation3 + $0x2e0] sm:$0xff] %v1962
        %2071 = vst [vmem:[#allocation3 + $0x2e8] sm:$0xff] %v1964
        %2072 = vst [vmem:[#allocation3 + $0x2f0] sm:$0xff] %v1966
        %2073 = vst [vmem:[#allocation3 + $0x2f8] sm:$0xff] %v1968
        %2074 = vst [vmem:[#allocation3 + $0x300] sm:$0xff] %v1972
        %2075 = vst [vmem:[#allocation3 + $0x308] sm:$0xff] %v1974
        %v2076 = vld [vmem:[#allocation7] sm:$0x3]
        %v2077 = vld [vmem:[#allocation3] sm:$0xff]
        %v2078 = vld [vmem:[#allocation3 + $0x8] sm:$0xff]
        %2079 = vrot.lane.b32.xlu0 %v2077, 51
        %v2080 = vpop.permute.xlu0 %2079
        %2081 = vrot.lane.b32.xlu0 %v2078, 51
        %v2082 = vpop.permute.xlu0 %2081
        %v2083 = vlaneseq
        %v2084 = vand.u32 %v2083, 127
        %vm2085 = vcmp.lt.s32.totalorder %v2084, 51
        %v2086 = vsel %vm2085, %v2080, %v2082
        %v2087 = vsel %vm2085, %v2082, %v2080
        %v2088 = vld [vmem:[#allocation9] sm:$0x3]
        %v2089 = vmul.f32 %v2076, %v2088
        %v2091 = vlaneseq
        %v2092 = vshrl.u32 %v2091, 7
        %v2093 = vsub.s32 0, %v2092
        %v2094 = vrot.slane %v2089, %v2093
        %v2095 = vlaneseq
        %v2096 = vshrl.u32 %v2095, 7
        %v2097 = vsub.s32 1, %v2096
        %v2098 = vrot.slane %v2089, %v2097
        %v2101 = vmul.f32 %v2087, %v2094
        %v2102 = vmul.f32 %v2086, %v2098
        %v2103 = vadd.f32 %v2101, 0.0
        %v2104 = vadd.f32 %v2102, 0.0
        %v2105 = vld [vmem:[#allocation3 + $0x10] sm:$0xff]
        %v2106 = vld [vmem:[#allocation3 + $0x18] sm:$0xff]
        %2107 = vrot.lane.b32.xlu0 %v2105, 50
        %v2108 = vpop.permute.xlu0 %2107
        %2109 = vrot.lane.b32.xlu0 %v2106, 50
        %v2110 = vpop.permute.xlu0 %2109
        %vm2111 = vcmp.lt.s32.totalorder %v2084, 50
        %v2112 = vsel %vm2111, %v2108, %v2110
        %v2113 = vsel %vm2111, %v2110, %v2108
        %s2114 = scalar_lea.vmem [#allocation9], 2
        %v2115 = vld [vmem:[%s2114] sm:$0x3]
        %v2116 = vmul.f32 %v2076, %v2115
        %v2118 = vlaneseq
        %v2119 = vshrl.u32 %v2118, 7
        %v2120 = vsub.s32 0, %v2119
        %v2121 = vrot.slane %v2116, %v2120
        %v2122 = vlaneseq
        %v2123 = vshrl.u32 %v2122, 7
        %v2124 = vsub.s32 1, %v2123
        %v2125 = vrot.slane %v2116, %v2124
        %v2128 = vmul.f32 %v2113, %v2121
        %v2129 = vmul.f32 %v2112, %v2125
        %v2130 = vadd.f32 %v2103, %v2128
        %v2131 = vadd.f32 %v2104, %v2129
        %v2132 = vld [vmem:[#allocation3 + $0x20] sm:$0xff]
        %v2133 = vld [vmem:[#allocation3 + $0x28] sm:$0xff]
        %2134 = vrot.lane.b32.xlu0 %v2132, 49
        %v2135 = vpop.permute.xlu0 %2134
        %2136 = vrot.lane.b32.xlu0 %v2133, 49
        %v2137 = vpop.permute.xlu0 %2136
        %vm2138 = vcmp.lt.s32.totalorder %v2084, 49
        %v2139 = vsel %vm2138, %v2135, %v2137
        %v2140 = vsel %vm2138, %v2137, %v2135
        %s2141 = scalar_lea.vmem [#allocation9], 4
        %v2142 = vld [vmem:[%s2141] sm:$0x3]
        %v2143 = vmul.f32 %v2076, %v2142
        %v2145 = vlaneseq
        %v2146 = vshrl.u32 %v2145, 7
        %v2147 = vsub.s32 0, %v2146
        %v2148 = vrot.slane %v2143, %v2147
        %v2149 = vlaneseq
        %v2150 = vshrl.u32 %v2149, 7
        %v2151 = vsub.s32 1, %v2150
        %v2152 = vrot.slane %v2143, %v2151
        %v2155 = vmul.f32 %v2140, %v2148
        %v2156 = vmul.f32 %v2139, %v2152
        %v2157 = vadd.f32 %v2130, %v2155
        %v2158 = vadd.f32 %v2131, %v2156
        %v2159 = vld [vmem:[#allocation3 + $0x30] sm:$0xff]
        %v2160 = vld [vmem:[#allocation3 + $0x38] sm:$0xff]
        %2161 = vrot.lane.b32.xlu0 %v2159, 48
        %v2162 = vpop.permute.xlu0 %2161
        %2163 = vrot.lane.b32.xlu0 %v2160, 48
        %v2164 = vpop.permute.xlu0 %2163
        %vm2165 = vcmp.lt.s32.totalorder %v2084, 48
        %v2166 = vsel %vm2165, %v2162, %v2164
        %v2167 = vsel %vm2165, %v2164, %v2162
        %s2168 = scalar_lea.vmem [#allocation9], 6
        %v2169 = vld [vmem:[%s2168] sm:$0x3]
        %v2170 = vmul.f32 %v2076, %v2169
        %v2172 = vlaneseq
        %v2173 = vshrl.u32 %v2172, 7
        %v2174 = vsub.s32 0, %v2173
        %v2175 = vrot.slane %v2170, %v2174
        %v2176 = vlaneseq
        %v2177 = vshrl.u32 %v2176, 7
        %v2178 = vsub.s32 1, %v2177
        %v2179 = vrot.slane %v2170, %v2178
        %v2182 = vmul.f32 %v2167, %v2175
        %v2183 = vmul.f32 %v2166, %v2179
        %v2184 = vadd.f32 %v2157, %v2182
        %v2185 = vadd.f32 %v2158, %v2183
        %v2186 = vld [vmem:[#allocation3 + $0x40] sm:$0xff]
        %v2187 = vld [vmem:[#allocation3 + $0x48] sm:$0xff]
        %2188 = vrot.lane.b32.xlu0 %v2186, 47
        %v2189 = vpop.permute.xlu0 %2188
        %2190 = vrot.lane.b32.xlu0 %v2187, 47
        %v2191 = vpop.permute.xlu0 %2190
        %vm2192 = vcmp.lt.s32.totalorder %v2084, 47
        %v2193 = vsel %vm2192, %v2189, %v2191
        %v2194 = vsel %vm2192, %v2191, %v2189
        %s2195 = scalar_lea.vmem [#allocation9], 8
        %v2196 = vld [vmem:[%s2195] sm:$0x3]
        %v2197 = vmul.f32 %v2076, %v2196
        %v2199 = vlaneseq
        %v2200 = vshrl.u32 %v2199, 7
        %v2201 = vsub.s32 0, %v2200
        %v2202 = vrot.slane %v2197, %v2201
        %v2203 = vlaneseq
        %v2204 = vshrl.u32 %v2203, 7
        %v2205 = vsub.s32 1, %v2204
        %v2206 = vrot.slane %v2197, %v2205
        %v2209 = vmul.f32 %v2194, %v2202
        %v2210 = vmul.f32 %v2193, %v2206
        %v2211 = vadd.f32 %v2184, %v2209
        %v2212 = vadd.f32 %v2185, %v2210
        %v2213 = vld [vmem:[#allocation3 + $0x50] sm:$0xff]
        %v2214 = vld [vmem:[#allocation3 + $0x58] sm:$0xff]
        %2215 = vrot.lane.b32.xlu0 %v2213, 46
        %v2216 = vpop.permute.xlu0 %2215
        %2217 = vrot.lane.b32.xlu0 %v2214, 46
        %v2218 = vpop.permute.xlu0 %2217
        %vm2219 = vcmp.lt.s32.totalorder %v2084, 46
        %v2220 = vsel %vm2219, %v2216, %v2218
        %v2221 = vsel %vm2219, %v2218, %v2216
        %s2222 = scalar_lea.vmem [#allocation9], 10
        %v2223 = vld [vmem:[%s2222] sm:$0x3]
        %v2224 = vmul.f32 %v2076, %v2223
        %v2226 = vlaneseq
        %v2227 = vshrl.u32 %v2226, 7
        %v2228 = vsub.s32 0, %v2227
        %v2229 = vrot.slane %v2224, %v2228
        %v2230 = vlaneseq
        %v2231 = vshrl.u32 %v2230, 7
        %v2232 = vsub.s32 1, %v2231
        %v2233 = vrot.slane %v2224, %v2232
        %v2236 = vmul.f32 %v2221, %v2229
        %v2237 = vmul.f32 %v2220, %v2233
        %v2238 = vadd.f32 %v2211, %v2236
        %v2239 = vadd.f32 %v2212, %v2237
        %v2240 = vld [vmem:[#allocation3 + $0x60] sm:$0xff]
        %v2241 = vld [vmem:[#allocation3 + $0x68] sm:$0xff]
        %2242 = vrot.lane.b32.xlu0 %v2240, 45
        %v2243 = vpop.permute.xlu0 %2242
        %2244 = vrot.lane.b32.xlu0 %v2241, 45
        %v2245 = vpop.permute.xlu0 %2244
        %vm2246 = vcmp.lt.s32.totalorder %v2084, 45
        %v2247 = vsel %vm2246, %v2243, %v2245
        %v2248 = vsel %vm2246, %v2245, %v2243
        %s2249 = scalar_lea.vmem [#allocation9], 12
        %v2250 = vld [vmem:[%s2249] sm:$0x3]
        %v2251 = vmul.f32 %v2076, %v2250
        %v2253 = vlaneseq
        %v2254 = vshrl.u32 %v2253, 7
        %v2255 = vsub.s32 0, %v2254
        %v2256 = vrot.slane %v2251, %v2255
        %v2257 = vlaneseq
        %v2258 = vshrl.u32 %v2257, 7
        %v2259 = vsub.s32 1, %v2258
        %v2260 = vrot.slane %v2251, %v2259
        %v2263 = vmul.f32 %v2248, %v2256
        %v2264 = vmul.f32 %v2247, %v2260
        %v2265 = vadd.f32 %v2238, %v2263
        %v2266 = vadd.f32 %v2239, %v2264
        %s2267 = scalar_lea.vmem [#allocation7], 2
        %v2268 = vld [vmem:[%s2267] sm:$0x3]
        %v2269 = vld [vmem:[#allocation3 + $0x70] sm:$0xff]
        %v2270 = vld [vmem:[#allocation3 + $0x78] sm:$0xff]
        %2271 = vrot.lane.b32.xlu0 %v2269, 35
        %v2272 = vpop.permute.xlu0 %2271
        %2273 = vrot.lane.b32.xlu0 %v2270, 35
        %v2274 = vpop.permute.xlu0 %2273
        %vm2275 = vcmp.lt.s32.totalorder %v2084, 35
        %v2276 = vsel %vm2275, %v2272, %v2274
        %v2277 = vsel %vm2275, %v2274, %v2272
        %v2278 = vmul.f32 %v2268, %v2088
        %v2280 = vlaneseq
        %v2281 = vshrl.u32 %v2280, 7
        %v2282 = vsub.s32 0, %v2281
        %v2283 = vrot.slane %v2278, %v2282
        %v2284 = vlaneseq
        %v2285 = vshrl.u32 %v2284, 7
        %v2286 = vsub.s32 1, %v2285
        %v2287 = vrot.slane %v2278, %v2286
        %v2290 = vmul.f32 %v2277, %v2283
        %v2291 = vmul.f32 %v2276, %v2287
        %v2292 = vadd.f32 %v2265, %v2290
        %v2293 = vadd.f32 %v2266, %v2291
        %v2294 = vld [vmem:[#allocation3 + $0x80] sm:$0xff]
        %v2295 = vld [vmem:[#allocation3 + $0x88] sm:$0xff]
        %2296 = vrot.lane.b32.xlu0 %v2294, 34
        %v2297 = vpop.permute.xlu0 %2296
        %2298 = vrot.lane.b32.xlu0 %v2295, 34
        %v2299 = vpop.permute.xlu0 %2298
        %vm2300 = vcmp.lt.s32.totalorder %v2084, 34
        %v2301 = vsel %vm2300, %v2297, %v2299
        %v2302 = vsel %vm2300, %v2299, %v2297
        %v2303 = vmul.f32 %v2268, %v2115
        %v2305 = vlaneseq
        %v2306 = vshrl.u32 %v2305, 7
        %v2307 = vsub.s32 0, %v2306
        %v2308 = vrot.slane %v2303, %v2307
        %v2309 = vlaneseq
        %v2310 = vshrl.u32 %v2309, 7
        %v2311 = vsub.s32 1, %v2310
        %v2312 = vrot.slane %v2303, %v2311
        %v2315 = vmul.f32 %v2302, %v2308
        %v2316 = vmul.f32 %v2301, %v2312
        %v2317 = vadd.f32 %v2292, %v2315
        %v2318 = vadd.f32 %v2293, %v2316
        %v2319 = vld [vmem:[#allocation3 + $0x90] sm:$0xff]
        %v2320 = vld [vmem:[#allocation3 + $0x98] sm:$0xff]
        %2321 = vrot.lane.b32.xlu0 %v2319, 33
        %v2322 = vpop.permute.xlu0 %2321
        %2323 = vrot.lane.b32.xlu0 %v2320, 33
        %v2324 = vpop.permute.xlu0 %2323
        %vm2325 = vcmp.lt.s32.totalorder %v2084, 33
        %v2326 = vsel %vm2325, %v2322, %v2324
        %v2327 = vsel %vm2325, %v2324, %v2322
        %v2328 = vmul.f32 %v2268, %v2142
        %v2330 = vlaneseq
        %v2331 = vshrl.u32 %v2330, 7
        %v2332 = vsub.s32 0, %v2331
        %v2333 = vrot.slane %v2328, %v2332
        %v2334 = vlaneseq
        %v2335 = vshrl.u32 %v2334, 7
        %v2336 = vsub.s32 1, %v2335
        %v2337 = vrot.slane %v2328, %v2336
        %v2340 = vmul.f32 %v2327, %v2333
        %v2341 = vmul.f32 %v2326, %v2337
        %v2342 = vadd.f32 %v2317, %v2340
        %v2343 = vadd.f32 %v2318, %v2341
        %v2344 = vld [vmem:[#allocation3 + $0xa0] sm:$0xff]
        %v2345 = vld [vmem:[#allocation3 + $0xa8] sm:$0xff]
        %2346 = vrot.lane.b32.xlu0 %v2344, 32
        %v2347 = vpop.permute.xlu0 %2346
        %2348 = vrot.lane.b32.xlu0 %v2345, 32
        %v2349 = vpop.permute.xlu0 %2348
        %vm2350 = vcmp.lt.s32.totalorder %v2084, 32
        %v2351 = vsel %vm2350, %v2347, %v2349
        %v2352 = vsel %vm2350, %v2349, %v2347
        %v2353 = vmul.f32 %v2268, %v2169
        %v2355 = vlaneseq
        %v2356 = vshrl.u32 %v2355, 7
        %v2357 = vsub.s32 0, %v2356
        %v2358 = vrot.slane %v2353, %v2357
        %v2359 = vlaneseq
        %v2360 = vshrl.u32 %v2359, 7
        %v2361 = vsub.s32 1, %v2360
        %v2362 = vrot.slane %v2353, %v2361
        %v2365 = vmul.f32 %v2352, %v2358
        %v2366 = vmul.f32 %v2351, %v2362
        %v2367 = vadd.f32 %v2342, %v2365
        %v2368 = vadd.f32 %v2343, %v2366
        %v2369 = vld [vmem:[#allocation3 + $0xb0] sm:$0xff]
        %v2370 = vld [vmem:[#allocation3 + $0xb8] sm:$0xff]
        %2371 = vrot.lane.b32.xlu0 %v2369, 31
        %v2372 = vpop.permute.xlu0 %2371
        %2373 = vrot.lane.b32.xlu0 %v2370, 31
        %v2374 = vpop.permute.xlu0 %2373
        %vm2375 = vcmp.lt.s32.totalorder %v2084, 31
        %v2376 = vsel %vm2375, %v2372, %v2374
        %v2377 = vsel %vm2375, %v2374, %v2372
        %v2378 = vmul.f32 %v2268, %v2196
        %v2380 = vlaneseq
        %v2381 = vshrl.u32 %v2380, 7
        %v2382 = vsub.s32 0, %v2381
        %v2383 = vrot.slane %v2378, %v2382
        %v2384 = vlaneseq
        %v2385 = vshrl.u32 %v2384, 7
        %v2386 = vsub.s32 1, %v2385
        %v2387 = vrot.slane %v2378, %v2386
        %v2390 = vmul.f32 %v2377, %v2383
        %v2391 = vmul.f32 %v2376, %v2387
        %v2392 = vadd.f32 %v2367, %v2390
        %v2393 = vadd.f32 %v2368, %v2391
        %v2394 = vld [vmem:[#allocation3 + $0xc0] sm:$0xff]
        %v2395 = vld [vmem:[#allocation3 + $0xc8] sm:$0xff]
        %2396 = vrot.lane.b32.xlu0 %v2394, 30
        %v2397 = vpop.permute.xlu0 %2396
        %2398 = vrot.lane.b32.xlu0 %v2395, 30
        %v2399 = vpop.permute.xlu0 %2398
        %vm2400 = vcmp.lt.s32.totalorder %v2084, 30
        %v2401 = vsel %vm2400, %v2397, %v2399
        %v2402 = vsel %vm2400, %v2399, %v2397
        %v2403 = vmul.f32 %v2268, %v2223
        %v2405 = vlaneseq
        %v2406 = vshrl.u32 %v2405, 7
        %v2407 = vsub.s32 0, %v2406
        %v2408 = vrot.slane %v2403, %v2407
        %v2409 = vlaneseq
        %v2410 = vshrl.u32 %v2409, 7
        %v2411 = vsub.s32 1, %v2410
        %v2412 = vrot.slane %v2403, %v2411
        %v2415 = vmul.f32 %v2402, %v2408
        %v2416 = vmul.f32 %v2401, %v2412
        %v2417 = vadd.f32 %v2392, %v2415
        %v2418 = vadd.f32 %v2393, %v2416
        %v2419 = vld [vmem:[#allocation3 + $0xd0] sm:$0xff]
        %v2420 = vld [vmem:[#allocation3 + $0xd8] sm:$0xff]
        %2421 = vrot.lane.b32.xlu0 %v2419, 29
        %v2422 = vpop.permute.xlu0 %2421
        %2423 = vrot.lane.b32.xlu0 %v2420, 29
        %v2424 = vpop.permute.xlu0 %2423
        %vm2425 = vcmp.lt.s32.totalorder %v2084, 29
        %v2426 = vsel %vm2425, %v2422, %v2424
        %v2427 = vsel %vm2425, %v2424, %v2422
        %v2428 = vmul.f32 %v2268, %v2250
        %v2430 = vlaneseq
        %v2431 = vshrl.u32 %v2430, 7
        %v2432 = vsub.s32 0, %v2431
        %v2433 = vrot.slane %v2428, %v2432
        %v2434 = vlaneseq
        %v2435 = vshrl.u32 %v2434, 7
        %v2436 = vsub.s32 1, %v2435
        %v2437 = vrot.slane %v2428, %v2436
        %v2440 = vmul.f32 %v2427, %v2433
        %v2441 = vmul.f32 %v2426, %v2437
        %v2442 = vadd.f32 %v2417, %v2440
        %v2443 = vadd.f32 %v2418, %v2441
        %s2444 = scalar_lea.vmem [#allocation7], 4
        %v2445 = vld [vmem:[%s2444] sm:$0x3]
        %v2446 = vld [vmem:[#allocation3 + $0xe0] sm:$0xff]
        %v2447 = vld [vmem:[#allocation3 + $0xe8] sm:$0xff]
        %2448 = vrot.lane.b32.xlu0 %v2446, 19
        %v2449 = vpop.permute.xlu0 %2448
        %2450 = vrot.lane.b32.xlu0 %v2447, 19
        %v2451 = vpop.permute.xlu0 %2450
        %vm2452 = vcmp.lt.s32.totalorder %v2084, 19
        %v2453 = vsel %vm2452, %v2449, %v2451
        %v2454 = vsel %vm2452, %v2451, %v2449
        %v2455 = vmul.f32 %v2445, %v2088
        %v2457 = vlaneseq
        %v2458 = vshrl.u32 %v2457, 7
        %v2459 = vsub.s32 0, %v2458
        %v2460 = vrot.slane %v2455, %v2459
        %v2461 = vlaneseq
        %v2462 = vshrl.u32 %v2461, 7
        %v2463 = vsub.s32 1, %v2462
        %v2464 = vrot.slane %v2455, %v2463
        %v2467 = vmul.f32 %v2454, %v2460
        %v2468 = vmul.f32 %v2453, %v2464
        %v2469 = vadd.f32 %v2442, %v2467
        %v2470 = vadd.f32 %v2443, %v2468
        %v2471 = vld [vmem:[#allocation3 + $0xf0] sm:$0xff]
        %v2472 = vld [vmem:[#allocation3 + $0xf8] sm:$0xff]
        %2473 = vrot.lane.b32.xlu0 %v2471, 18
        %v2474 = vpop.permute.xlu0 %2473
        %2475 = vrot.lane.b32.xlu0 %v2472, 18
        %v2476 = vpop.permute.xlu0 %2475
        %vm2477 = vcmp.lt.s32.totalorder %v2084, 18
        %v2478 = vsel %vm2477, %v2474, %v2476
        %v2479 = vsel %vm2477, %v2476, %v2474
        %v2480 = vmul.f32 %v2445, %v2115
        %v2482 = vlaneseq
        %v2483 = vshrl.u32 %v2482, 7
        %v2484 = vsub.s32 0, %v2483
        %v2485 = vrot.slane %v2480, %v2484
        %v2486 = vlaneseq
        %v2487 = vshrl.u32 %v2486, 7
        %v2488 = vsub.s32 1, %v2487
        %v2489 = vrot.slane %v2480, %v2488
        %v2492 = vmul.f32 %v2479, %v2485
        %v2493 = vmul.f32 %v2478, %v2489
        %v2494 = vadd.f32 %v2469, %v2492
        %v2495 = vadd.f32 %v2470, %v2493
        %v2496 = vld [vmem:[#allocation3 + $0x100] sm:$0xff]
        %v2497 = vld [vmem:[#allocation3 + $0x108] sm:$0xff]
        %2498 = vrot.lane.b32.xlu0 %v2496, 17
        %v2499 = vpop.permute.xlu0 %2498
        %2500 = vrot.lane.b32.xlu0 %v2497, 17
        %v2501 = vpop.permute.xlu0 %2500
        %vm2502 = vcmp.lt.s32.totalorder %v2084, 17
        %v2503 = vsel %vm2502, %v2499, %v2501
        %v2504 = vsel %vm2502, %v2501, %v2499
        %v2505 = vmul.f32 %v2445, %v2142
        %v2507 = vlaneseq
        %v2508 = vshrl.u32 %v2507, 7
        %v2509 = vsub.s32 0, %v2508
        %v2510 = vrot.slane %v2505, %v2509
        %v2511 = vlaneseq
        %v2512 = vshrl.u32 %v2511, 7
        %v2513 = vsub.s32 1, %v2512
        %v2514 = vrot.slane %v2505, %v2513
        %v2517 = vmul.f32 %v2504, %v2510
        %v2518 = vmul.f32 %v2503, %v2514
        %v2519 = vadd.f32 %v2494, %v2517
        %v2520 = vadd.f32 %v2495, %v2518
        %v2521 = vld [vmem:[#allocation3 + $0x110] sm:$0xff]
        %v2522 = vld [vmem:[#allocation3 + $0x118] sm:$0xff]
        %2523 = vrot.lane.b32.xlu0 %v2521, 16
        %v2524 = vpop.permute.xlu0 %2523
        %2525 = vrot.lane.b32.xlu0 %v2522, 16
        %v2526 = vpop.permute.xlu0 %2525
        %vm2527 = vcmp.lt.s32.totalorder %v2084, 16
        %v2528 = vsel %vm2527, %v2524, %v2526
        %v2529 = vsel %vm2527, %v2526, %v2524
        %v2530 = vmul.f32 %v2445, %v2169
        %v2532 = vlaneseq
        %v2533 = vshrl.u32 %v2532, 7
        %v2534 = vsub.s32 0, %v2533
        %v2535 = vrot.slane %v2530, %v2534
        %v2536 = vlaneseq
        %v2537 = vshrl.u32 %v2536, 7
        %v2538 = vsub.s32 1, %v2537
        %v2539 = vrot.slane %v2530, %v2538
        %v2542 = vmul.f32 %v2529, %v2535
        %v2543 = vmul.f32 %v2528, %v2539
        %v2544 = vadd.f32 %v2519, %v2542
        %v2545 = vadd.f32 %v2520, %v2543
        %v2546 = vld [vmem:[#allocation3 + $0x120] sm:$0xff]
        %v2547 = vld [vmem:[#allocation3 + $0x128] sm:$0xff]
        %2548 = vrot.lane.b32.xlu0 %v2546, 15
        %v2549 = vpop.permute.xlu0 %2548
        %2550 = vrot.lane.b32.xlu0 %v2547, 15
        %v2551 = vpop.permute.xlu0 %2550
        %vm2552 = vcmp.lt.s32.totalorder %v2084, 15
        %v2553 = vsel %vm2552, %v2549, %v2551
        %v2554 = vsel %vm2552, %v2551, %v2549
        %v2555 = vmul.f32 %v2445, %v2196
        %v2557 = vlaneseq
        %v2558 = vshrl.u32 %v2557, 7
        %v2559 = vsub.s32 0, %v2558
        %v2560 = vrot.slane %v2555, %v2559
        %v2561 = vlaneseq
        %v2562 = vshrl.u32 %v2561, 7
        %v2563 = vsub.s32 1, %v2562
        %v2564 = vrot.slane %v2555, %v2563
        %v2567 = vmul.f32 %v2554, %v2560
        %v2568 = vmul.f32 %v2553, %v2564
        %v2569 = vadd.f32 %v2544, %v2567
        %v2570 = vadd.f32 %v2545, %v2568
        %v2571 = vld [vmem:[#allocation3 + $0x130] sm:$0xff]
        %v2572 = vld [vmem:[#allocation3 + $0x138] sm:$0xff]
        %2573 = vrot.lane.b32.xlu0 %v2571, 14
        %v2574 = vpop.permute.xlu0 %2573
        %2575 = vrot.lane.b32.xlu0 %v2572, 14
        %v2576 = vpop.permute.xlu0 %2575
        %vm2577 = vcmp.lt.s32.totalorder %v2084, 14
        %v2578 = vsel %vm2577, %v2574, %v2576
        %v2579 = vsel %vm2577, %v2576, %v2574
        %v2580 = vmul.f32 %v2445, %v2223
        %v2582 = vlaneseq
        %v2583 = vshrl.u32 %v2582, 7
        %v2584 = vsub.s32 0, %v2583
        %v2585 = vrot.slane %v2580, %v2584
        %v2586 = vlaneseq
        %v2587 = vshrl.u32 %v2586, 7
        %v2588 = vsub.s32 1, %v2587
        %v2589 = vrot.slane %v2580, %v2588
        %v2592 = vmul.f32 %v2579, %v2585
        %v2593 = vmul.f32 %v2578, %v2589
        %v2594 = vadd.f32 %v2569, %v2592
        %v2595 = vadd.f32 %v2570, %v2593
        %v2596 = vld [vmem:[#allocation3 + $0x140] sm:$0xff]
        %v2597 = vld [vmem:[#allocation3 + $0x148] sm:$0xff]
        %2598 = vrot.lane.b32.xlu0 %v2596, 13
        %v2599 = vpop.permute.xlu0 %2598
        %2600 = vrot.lane.b32.xlu0 %v2597, 13
        %v2601 = vpop.permute.xlu0 %2600
        %vm2602 = vcmp.lt.s32.totalorder %v2084, 13
        %v2603 = vsel %vm2602, %v2599, %v2601
        %v2604 = vsel %vm2602, %v2601, %v2599
        %v2605 = vmul.f32 %v2445, %v2250
        %v2607 = vlaneseq
        %v2608 = vshrl.u32 %v2607, 7
        %v2609 = vsub.s32 0, %v2608
        %v2610 = vrot.slane %v2605, %v2609
        %v2611 = vlaneseq
        %v2612 = vshrl.u32 %v2611, 7
        %v2613 = vsub.s32 1, %v2612
        %v2614 = vrot.slane %v2605, %v2613
        %v2617 = vmul.f32 %v2604, %v2610
        %v2618 = vmul.f32 %v2603, %v2614
        %v2619 = vadd.f32 %v2594, %v2617
        %v2620 = vadd.f32 %v2595, %v2618
        %s2621 = scalar_lea.vmem [#allocation7], 6
        %v2622 = vld [vmem:[%s2621] sm:$0x3]
        %v2623 = vld [vmem:[#allocation3 + $0x150] sm:$0xff]
        %v2624 = vld [vmem:[#allocation3 + $0x158] sm:$0xff]
        %2625 = vrot.lane.b32.xlu0 %v2623, 3
        %v2626 = vpop.permute.xlu0 %2625
        %2627 = vrot.lane.b32.xlu0 %v2624, 3
        %v2628 = vpop.permute.xlu0 %2627
        %vm2629 = vcmp.lt.s32.totalorder %v2084, 3
        %v2630 = vsel %vm2629, %v2626, %v2628
        %v2631 = vsel %vm2629, %v2628, %v2626
        %v2632 = vmul.f32 %v2622, %v2088
        %v2634 = vlaneseq
        %v2635 = vshrl.u32 %v2634, 7
        %v2636 = vsub.s32 0, %v2635
        %v2637 = vrot.slane %v2632, %v2636
        %v2638 = vlaneseq
        %v2639 = vshrl.u32 %v2638, 7
        %v2640 = vsub.s32 1, %v2639
        %v2641 = vrot.slane %v2632, %v2640
        %v2644 = vmul.f32 %v2631, %v2637
        %v2645 = vmul.f32 %v2630, %v2641
        %v2646 = vadd.f32 %v2619, %v2644
        %v2647 = vadd.f32 %v2620, %v2645
        %v2648 = vld [vmem:[#allocation3 + $0x160] sm:$0xff]
        %v2649 = vld [vmem:[#allocation3 + $0x168] sm:$0xff]
        %2650 = vrot.lane.b32.xlu0 %v2648, 2
        %v2651 = vpop.permute.xlu0 %2650
        %2652 = vrot.lane.b32.xlu0 %v2649, 2
        %v2653 = vpop.permute.xlu0 %2652
        %vm2654 = vcmp.lt.s32.totalorder %v2084, 2
        %v2655 = vsel %vm2654, %v2651, %v2653
        %v2656 = vsel %vm2654, %v2653, %v2651
        %v2657 = vmul.f32 %v2622, %v2115
        %v2659 = vlaneseq
        %v2660 = vshrl.u32 %v2659, 7
        %v2661 = vsub.s32 0, %v2660
        %v2662 = vrot.slane %v2657, %v2661
        %v2663 = vlaneseq
        %v2664 = vshrl.u32 %v2663, 7
        %v2665 = vsub.s32 1, %v2664
        %v2666 = vrot.slane %v2657, %v2665
        %v2669 = vmul.f32 %v2656, %v2662
        %v2670 = vmul.f32 %v2655, %v2666
        %v2671 = vadd.f32 %v2646, %v2669
        %v2672 = vadd.f32 %v2647, %v2670
        %v2673 = vld [vmem:[#allocation3 + $0x170] sm:$0xff]
        %v2674 = vld [vmem:[#allocation3 + $0x178] sm:$0xff]
        %2675 = vrot.lane.b32.xlu0 %v2673, 1
        %v2676 = vpop.permute.xlu0 %2675
        %2677 = vrot.lane.b32.xlu0 %v2674, 1
        %v2678 = vpop.permute.xlu0 %2677
        %vm2679 = vcmp.lt.s32.totalorder %v2084, 1
        %v2680 = vsel %vm2679, %v2676, %v2678
        %v2681 = vsel %vm2679, %v2678, %v2676
        %v2682 = vmul.f32 %v2622, %v2142
        %v2684 = vlaneseq
        %v2685 = vshrl.u32 %v2684, 7
        %v2686 = vsub.s32 0, %v2685
        %v2687 = vrot.slane %v2682, %v2686
        %v2688 = vlaneseq
        %v2689 = vshrl.u32 %v2688, 7
        %v2690 = vsub.s32 1, %v2689
        %v2691 = vrot.slane %v2682, %v2690
        %v2694 = vmul.f32 %v2681, %v2687
        %v2695 = vmul.f32 %v2680, %v2691
        %v2696 = vadd.f32 %v2671, %v2694
        %v2697 = vadd.f32 %v2672, %v2695
        %v2698 = vld [vmem:[#allocation3 + $0x180] sm:$0xff]
        %v2699 = vld [vmem:[#allocation3 + $0x188] sm:$0xff]
        %v2700 = vadd.f32 %v2696, %v2698
        %v2701 = vadd.f32 %v2697, %v2699
        %v2702 = vld [vmem:[#allocation3 + $0x190] sm:$0xff]
        %v2703 = vld [vmem:[#allocation3 + $0x198] sm:$0xff]
        %2704 = vrot.lane.b32.xlu0 %v2702, 127
        %v2705 = vpop.permute.xlu0 %2704
        %2706 = vrot.lane.b32.xlu0 %v2703, 127
        %v2707 = vpop.permute.xlu0 %2706
        %vm2708 = vcmp.lt.s32.totalorder %v2084, 127
        %v2709 = vsel %vm2708, %v2705, %v2707
        %v2710 = vsel %vm2708, %v2707, %v2705
        %v2711 = vmul.f32 %v2622, %v2196
        %v2713 = vlaneseq
        %v2714 = vshrl.u32 %v2713, 7
        %v2715 = vsub.s32 0, %v2714
        %v2716 = vrot.slane %v2711, %v2715
        %v2717 = vlaneseq
        %v2718 = vshrl.u32 %v2717, 7
        %v2719 = vsub.s32 1, %v2718
        %v2720 = vrot.slane %v2711, %v2719
        %v2723 = vmul.f32 %v2709, %v2716
        %v2724 = vmul.f32 %v2710, %v2720
        %v2725 = vadd.f32 %v2700, %v2723
        %v2726 = vadd.f32 %v2701, %v2724
        %v2727 = vld [vmem:[#allocation3 + $0x1a0] sm:$0xff]
        %v2728 = vld [vmem:[#allocation3 + $0x1a8] sm:$0xff]
        %2729 = vrot.lane.b32.xlu0 %v2727, 126
        %v2730 = vpop.permute.xlu0 %2729
        %2731 = vrot.lane.b32.xlu0 %v2728, 126
        %v2732 = vpop.permute.xlu0 %2731
        %vm2733 = vcmp.lt.s32.totalorder %v2084, 126
        %v2734 = vsel %vm2733, %v2730, %v2732
        %v2735 = vsel %vm2733, %v2732, %v2730
        %v2736 = vmul.f32 %v2622, %v2223
        %v2738 = vlaneseq
        %v2739 = vshrl.u32 %v2738, 7
        %v2740 = vsub.s32 0, %v2739
        %v2741 = vrot.slane %v2736, %v2740
        %v2742 = vlaneseq
        %v2743 = vshrl.u32 %v2742, 7
        %v2744 = vsub.s32 1, %v2743
        %v2745 = vrot.slane %v2736, %v2744
        %v2748 = vmul.f32 %v2734, %v2741
        %v2749 = vmul.f32 %v2735, %v2745
        %v2750 = vadd.f32 %v2725, %v2748
        %v2751 = vadd.f32 %v2726, %v2749
        %v2752 = vld [vmem:[#allocation3 + $0x1b0] sm:$0xff]
        %v2753 = vld [vmem:[#allocation3 + $0x1b8] sm:$0xff]
        %2754 = vrot.lane.b32.xlu0 %v2752, 125
        %v2755 = vpop.permute.xlu0 %2754
        %2756 = vrot.lane.b32.xlu0 %v2753, 125
        %v2757 = vpop.permute.xlu0 %2756
        %vm2758 = vcmp.lt.s32.totalorder %v2084, 125
        %v2759 = vsel %vm2758, %v2755, %v2757
        %v2760 = vsel %vm2758, %v2757, %v2755
        %v2761 = vmul.f32 %v2622, %v2250
        %v2763 = vlaneseq
        %v2764 = vshrl.u32 %v2763, 7
        %v2765 = vsub.s32 0, %v2764
        %v2766 = vrot.slane %v2761, %v2765
        %v2767 = vlaneseq
        %v2768 = vshrl.u32 %v2767, 7
        %v2769 = vsub.s32 1, %v2768
        %v2770 = vrot.slane %v2761, %v2769
        %v2773 = vmul.f32 %v2759, %v2766
        %v2774 = vmul.f32 %v2760, %v2770
        %v2775 = vadd.f32 %v2750, %v2773
        %v2776 = vadd.f32 %v2751, %v2774
        %s2777 = scalar_lea.vmem [#allocation7], 8
        %v2778 = vld [vmem:[%s2777] sm:$0x3]
        %v2779 = vld [vmem:[#allocation3 + $0x1c0] sm:$0xff]
        %v2780 = vld [vmem:[#allocation3 + $0x1c8] sm:$0xff]
        %2781 = vrot.lane.b32.xlu0 %v2779, 115
        %v2782 = vpop.permute.xlu0 %2781
        %2783 = vrot.lane.b32.xlu0 %v2780, 115
        %v2784 = vpop.permute.xlu0 %2783
        %vm2785 = vcmp.lt.s32.totalorder %v2084, 115
        %v2786 = vsel %vm2785, %v2782, %v2784
        %v2787 = vsel %vm2785, %v2784, %v2782
        %v2788 = vmul.f32 %v2778, %v2088
        %v2790 = vlaneseq
        %v2791 = vshrl.u32 %v2790, 7
        %v2792 = vsub.s32 0, %v2791
        %v2793 = vrot.slane %v2788, %v2792
        %v2794 = vlaneseq
        %v2795 = vshrl.u32 %v2794, 7
        %v2796 = vsub.s32 1, %v2795
        %v2797 = vrot.slane %v2788, %v2796
        %v2800 = vmul.f32 %v2786, %v2793
        %v2801 = vmul.f32 %v2787, %v2797
        %v2802 = vadd.f32 %v2775, %v2800
        %v2803 = vadd.f32 %v2776, %v2801
        %v2804 = vld [vmem:[#allocation3 + $0x1d0] sm:$0xff]
        %v2805 = vld [vmem:[#allocation3 + $0x1d8] sm:$0xff]
        %2806 = vrot.lane.b32.xlu0 %v2804, 114
        %v2807 = vpop.permute.xlu0 %2806
        %2808 = vrot.lane.b32.xlu0 %v2805, 114
        %v2809 = vpop.permute.xlu0 %2808
        %vm2810 = vcmp.lt.s32.totalorder %v2084, 114
        %v2811 = vsel %vm2810, %v2807, %v2809
        %v2812 = vsel %vm2810, %v2809, %v2807
        %v2813 = vmul.f32 %v2778, %v2115
        %v2815 = vlaneseq
        %v2816 = vshrl.u32 %v2815, 7
        %v2817 = vsub.s32 0, %v2816
        %v2818 = vrot.slane %v2813, %v2817
        %v2819 = vlaneseq
        %v2820 = vshrl.u32 %v2819, 7
        %v2821 = vsub.s32 1, %v2820
        %v2822 = vrot.slane %v2813, %v2821
        %v2825 = vmul.f32 %v2811, %v2818
        %v2826 = vmul.f32 %v2812, %v2822
        %v2827 = vadd.f32 %v2802, %v2825
        %v2828 = vadd.f32 %v2803, %v2826
        %v2829 = vld [vmem:[#allocation3 + $0x1e0] sm:$0xff]
        %v2830 = vld [vmem:[#allocation3 + $0x1e8] sm:$0xff]
        %2831 = vrot.lane.b32.xlu0 %v2829, 113
        %v2832 = vpop.permute.xlu0 %2831
        %2833 = vrot.lane.b32.xlu0 %v2830, 113
        %v2834 = vpop.permute.xlu0 %2833
        %vm2835 = vcmp.lt.s32.totalorder %v2084, 113
        %v2836 = vsel %vm2835, %v2832, %v2834
        %v2837 = vsel %vm2835, %v2834, %v2832
        %v2838 = vmul.f32 %v2778, %v2142
        %v2840 = vlaneseq
        %v2841 = vshrl.u32 %v2840, 7
        %v2842 = vsub.s32 0, %v2841
        %v2843 = vrot.slane %v2838, %v2842
        %v2844 = vlaneseq
        %v2845 = vshrl.u32 %v2844, 7
        %v2846 = vsub.s32 1, %v2845
        %v2847 = vrot.slane %v2838, %v2846
        %v2850 = vmul.f32 %v2836, %v2843
        %v2851 = vmul.f32 %v2837, %v2847
        %v2852 = vadd.f32 %v2827, %v2850
        %v2853 = vadd.f32 %v2828, %v2851
        %v2854 = vld [vmem:[#allocation3 + $0x1f0] sm:$0xff]
        %v2855 = vld [vmem:[#allocation3 + $0x1f8] sm:$0xff]
        %2856 = vrot.lane.b32.xlu0 %v2854, 112
        %v2857 = vpop.permute.xlu0 %2856
        %2858 = vrot.lane.b32.xlu0 %v2855, 112
        %v2859 = vpop.permute.xlu0 %2858
        %vm2860 = vcmp.lt.s32.totalorder %v2084, 112
        %v2861 = vsel %vm2860, %v2857, %v2859
        %v2862 = vsel %vm2860, %v2859, %v2857
        %v2863 = vmul.f32 %v2778, %v2169
        %v2865 = vlaneseq
        %v2866 = vshrl.u32 %v2865, 7
        %v2867 = vsub.s32 0, %v2866
        %v2868 = vrot.slane %v2863, %v2867
        %v2869 = vlaneseq
        %v2870 = vshrl.u32 %v2869, 7
        %v2871 = vsub.s32 1, %v2870
        %v2872 = vrot.slane %v2863, %v2871
        %v2875 = vmul.f32 %v2861, %v2868
        %v2876 = vmul.f32 %v2862, %v2872
        %v2877 = vadd.f32 %v2852, %v2875
        %v2878 = vadd.f32 %v2853, %v2876
        %v2879 = vld [vmem:[#allocation3 + $0x200] sm:$0xff]
        %v2880 = vld [vmem:[#allocation3 + $0x208] sm:$0xff]
        %2881 = vrot.lane.b32.xlu0 %v2879, 111
        %v2882 = vpop.permute.xlu0 %2881
        %2883 = vrot.lane.b32.xlu0 %v2880, 111
        %v2884 = vpop.permute.xlu0 %2883
        %vm2885 = vcmp.lt.s32.totalorder %v2084, 111
        %v2886 = vsel %vm2885, %v2882, %v2884
        %v2887 = vsel %vm2885, %v2884, %v2882
        %v2888 = vmul.f32 %v2778, %v2196
        %v2890 = vlaneseq
        %v2891 = vshrl.u32 %v2890, 7
        %v2892 = vsub.s32 0, %v2891
        %v2893 = vrot.slane %v2888, %v2892
        %v2894 = vlaneseq
        %v2895 = vshrl.u32 %v2894, 7
        %v2896 = vsub.s32 1, %v2895
        %v2897 = vrot.slane %v2888, %v2896
        %v2900 = vmul.f32 %v2886, %v2893
        %v2901 = vmul.f32 %v2887, %v2897
        %v2902 = vadd.f32 %v2877, %v2900
        %v2903 = vadd.f32 %v2878, %v2901
        %v2904 = vld [vmem:[#allocation3 + $0x210] sm:$0xff]
        %v2905 = vld [vmem:[#allocation3 + $0x218] sm:$0xff]
        %2906 = vrot.lane.b32.xlu0 %v2904, 110
        %v2907 = vpop.permute.xlu0 %2906
        %2908 = vrot.lane.b32.xlu0 %v2905, 110
        %v2909 = vpop.permute.xlu0 %2908
        %vm2910 = vcmp.lt.s32.totalorder %v2084, 110
        %v2911 = vsel %vm2910, %v2907, %v2909
        %v2912 = vsel %vm2910, %v2909, %v2907
        %v2913 = vmul.f32 %v2778, %v2223
        %v2915 = vlaneseq
        %v2916 = vshrl.u32 %v2915, 7
        %v2917 = vsub.s32 0, %v2916
        %v2918 = vrot.slane %v2913, %v2917
        %v2919 = vlaneseq
        %v2920 = vshrl.u32 %v2919, 7
        %v2921 = vsub.s32 1, %v2920
        %v2922 = vrot.slane %v2913, %v2921
        %v2925 = vmul.f32 %v2911, %v2918
        %v2926 = vmul.f32 %v2912, %v2922
        %v2927 = vadd.f32 %v2902, %v2925
        %v2928 = vadd.f32 %v2903, %v2926
        %v2929 = vld [vmem:[#allocation3 + $0x220] sm:$0xff]
        %v2930 = vld [vmem:[#allocation3 + $0x228] sm:$0xff]
        %2931 = vrot.lane.b32.xlu0 %v2929, 109
        %v2932 = vpop.permute.xlu0 %2931
        %2933 = vrot.lane.b32.xlu0 %v2930, 109
        %v2934 = vpop.permute.xlu0 %2933
        %vm2935 = vcmp.lt.s32.totalorder %v2084, 109
        %v2936 = vsel %vm2935, %v2932, %v2934
        %v2937 = vsel %vm2935, %v2934, %v2932
        %v2938 = vmul.f32 %v2778, %v2250
        %v2940 = vlaneseq
        %v2941 = vshrl.u32 %v2940, 7
        %v2942 = vsub.s32 0, %v2941
        %v2943 = vrot.slane %v2938, %v2942
        %v2944 = vlaneseq
        %v2945 = vshrl.u32 %v2944, 7
        %v2946 = vsub.s32 1, %v2945
        %v2947 = vrot.slane %v2938, %v2946
        %v2950 = vmul.f32 %v2936, %v2943
        %v2951 = vmul.f32 %v2937, %v2947
        %v2952 = vadd.f32 %v2927, %v2950
        %v2953 = vadd.f32 %v2928, %v2951
        %s2954 = scalar_lea.vmem [#allocation7], 10
        %v2955 = vld [vmem:[%s2954] sm:$0x3]
        %v2956 = vld [vmem:[#allocation3 + $0x230] sm:$0xff]
        %v2957 = vld [vmem:[#allocation3 + $0x238] sm:$0xff]
        %2958 = vrot.lane.b32.xlu0 %v2956, 99
        %v2959 = vpop.permute.xlu0 %2958
        %2960 = vrot.lane.b32.xlu0 %v2957, 99
        %v2961 = vpop.permute.xlu0 %2960
        %vm2962 = vcmp.lt.s32.totalorder %v2084, 99
        %v2963 = vsel %vm2962, %v2959, %v2961
        %v2964 = vsel %vm2962, %v2961, %v2959
        %v2965 = vmul.f32 %v2955, %v2088
        %v2967 = vlaneseq
        %v2968 = vshrl.u32 %v2967, 7
        %v2969 = vsub.s32 0, %v2968
        %v2970 = vrot.slane %v2965, %v2969
        %v2971 = vlaneseq
        %v2972 = vshrl.u32 %v2971, 7
        %v2973 = vsub.s32 1, %v2972
        %v2974 = vrot.slane %v2965, %v2973
        %v2977 = vmul.f32 %v2963, %v2970
        %v2978 = vmul.f32 %v2964, %v2974
        %v2979 = vadd.f32 %v2952, %v2977
        %v2980 = vadd.f32 %v2953, %v2978
        %v2981 = vld [vmem:[#allocation3 + $0x240] sm:$0xff]
        %v2982 = vld [vmem:[#allocation3 + $0x248] sm:$0xff]
        %2983 = vrot.lane.b32.xlu0 %v2981, 98
        %v2984 = vpop.permute.xlu0 %2983
        %2985 = vrot.lane.b32.xlu0 %v2982, 98
        %v2986 = vpop.permute.xlu0 %2985
        %vm2987 = vcmp.lt.s32.totalorder %v2084, 98
        %v2988 = vsel %vm2987, %v2984, %v2986
        %v2989 = vsel %vm2987, %v2986, %v2984
        %v2990 = vmul.f32 %v2955, %v2115
        %v2992 = vlaneseq
        %v2993 = vshrl.u32 %v2992, 7
        %v2994 = vsub.s32 0, %v2993
        %v2995 = vrot.slane %v2990, %v2994
        %v2996 = vlaneseq
        %v2997 = vshrl.u32 %v2996, 7
        %v2998 = vsub.s32 1, %v2997
        %v2999 = vrot.slane %v2990, %v2998
        %v3002 = vmul.f32 %v2988, %v2995
        %v3003 = vmul.f32 %v2989, %v2999
        %v3004 = vadd.f32 %v2979, %v3002
        %v3005 = vadd.f32 %v2980, %v3003
        %v3006 = vld [vmem:[#allocation3 + $0x250] sm:$0xff]
        %v3007 = vld [vmem:[#allocation3 + $0x258] sm:$0xff]
        %3008 = vrot.lane.b32.xlu0 %v3006, 97
        %v3009 = vpop.permute.xlu0 %3008
        %3010 = vrot.lane.b32.xlu0 %v3007, 97
        %v3011 = vpop.permute.xlu0 %3010
        %vm3012 = vcmp.lt.s32.totalorder %v2084, 97
        %v3013 = vsel %vm3012, %v3009, %v3011
        %v3014 = vsel %vm3012, %v3011, %v3009
        %v3015 = vmul.f32 %v2955, %v2142
        %v3017 = vlaneseq
        %v3018 = vshrl.u32 %v3017, 7
        %v3019 = vsub.s32 0, %v3018
        %v3020 = vrot.slane %v3015, %v3019
        %v3021 = vlaneseq
        %v3022 = vshrl.u32 %v3021, 7
        %v3023 = vsub.s32 1, %v3022
        %v3024 = vrot.slane %v3015, %v3023
        %v3027 = vmul.f32 %v3013, %v3020
        %v3028 = vmul.f32 %v3014, %v3024
        %v3029 = vadd.f32 %v3004, %v3027
        %v3030 = vadd.f32 %v3005, %v3028
        %v3031 = vld [vmem:[#allocation3 + $0x260] sm:$0xff]
        %v3032 = vld [vmem:[#allocation3 + $0x268] sm:$0xff]
        %3033 = vrot.lane.b32.xlu0 %v3031, 96
        %v3034 = vpop.permute.xlu0 %3033
        %3035 = vrot.lane.b32.xlu0 %v3032, 96
        %v3036 = vpop.permute.xlu0 %3035
        %vm3037 = vcmp.lt.s32.totalorder %v2084, 96
        %v3038 = vsel %vm3037, %v3034, %v3036
        %v3039 = vsel %vm3037, %v3036, %v3034
        %v3040 = vmul.f32 %v2955, %v2169
        %v3042 = vlaneseq
        %v3043 = vshrl.u32 %v3042, 7
        %v3044 = vsub.s32 0, %v3043
        %v3045 = vrot.slane %v3040, %v3044
        %v3046 = vlaneseq
        %v3047 = vshrl.u32 %v3046, 7
        %v3048 = vsub.s32 1, %v3047
        %v3049 = vrot.slane %v3040, %v3048
        %v3052 = vmul.f32 %v3038, %v3045
        %v3053 = vmul.f32 %v3039, %v3049
        %v3054 = vadd.f32 %v3029, %v3052
        %v3055 = vadd.f32 %v3030, %v3053
        %v3056 = vld [vmem:[#allocation3 + $0x270] sm:$0xff]
        %v3057 = vld [vmem:[#allocation3 + $0x278] sm:$0xff]
        %3058 = vrot.lane.b32.xlu0 %v3056, 95
        %v3059 = vpop.permute.xlu0 %3058
        %3060 = vrot.lane.b32.xlu0 %v3057, 95
        %v3061 = vpop.permute.xlu0 %3060
        %vm3062 = vcmp.lt.s32.totalorder %v2084, 95
        %v3063 = vsel %vm3062, %v3059, %v3061
        %v3064 = vsel %vm3062, %v3061, %v3059
        %v3065 = vmul.f32 %v2955, %v2196
        %v3067 = vlaneseq
        %v3068 = vshrl.u32 %v3067, 7
        %v3069 = vsub.s32 0, %v3068
        %v3070 = vrot.slane %v3065, %v3069
        %v3071 = vlaneseq
        %v3072 = vshrl.u32 %v3071, 7
        %v3073 = vsub.s32 1, %v3072
        %v3074 = vrot.slane %v3065, %v3073
        %v3077 = vmul.f32 %v3063, %v3070
        %v3078 = vmul.f32 %v3064, %v3074
        %v3079 = vadd.f32 %v3054, %v3077
        %v3080 = vadd.f32 %v3055, %v3078
        %v3081 = vld [vmem:[#allocation3 + $0x280] sm:$0xff]
        %v3082 = vld [vmem:[#allocation3 + $0x288] sm:$0xff]
        %3083 = vrot.lane.b32.xlu0 %v3081, 94
        %v3084 = vpop.permute.xlu0 %3083
        %3085 = vrot.lane.b32.xlu0 %v3082, 94
        %v3086 = vpop.permute.xlu0 %3085
        %vm3087 = vcmp.lt.s32.totalorder %v2084, 94
        %v3088 = vsel %vm3087, %v3084, %v3086
        %v3089 = vsel %vm3087, %v3086, %v3084
        %v3090 = vmul.f32 %v2955, %v2223
        %v3092 = vlaneseq
        %v3093 = vshrl.u32 %v3092, 7
        %v3094 = vsub.s32 0, %v3093
        %v3095 = vrot.slane %v3090, %v3094
        %v3096 = vlaneseq
        %v3097 = vshrl.u32 %v3096, 7
        %v3098 = vsub.s32 1, %v3097
        %v3099 = vrot.slane %v3090, %v3098
        %v3102 = vmul.f32 %v3088, %v3095
        %v3103 = vmul.f32 %v3089, %v3099
        %v3104 = vadd.f32 %v3079, %v3102
        %v3105 = vadd.f32 %v3080, %v3103
        %v3106 = vld [vmem:[#allocation3 + $0x290] sm:$0xff]
        %v3107 = vld [vmem:[#allocation3 + $0x298] sm:$0xff]
        %3108 = vrot.lane.b32.xlu0 %v3106, 93
        %v3109 = vpop.permute.xlu0 %3108
        %3110 = vrot.lane.b32.xlu0 %v3107, 93
        %v3111 = vpop.permute.xlu0 %3110
        %vm3112 = vcmp.lt.s32.totalorder %v2084, 93
        %v3113 = vsel %vm3112, %v3109, %v3111
        %v3114 = vsel %vm3112, %v3111, %v3109
        %v3115 = vmul.f32 %v2955, %v2250
        %v3117 = vlaneseq
        %v3118 = vshrl.u32 %v3117, 7
        %v3119 = vsub.s32 0, %v3118
        %v3120 = vrot.slane %v3115, %v3119
        %v3121 = vlaneseq
        %v3122 = vshrl.u32 %v3121, 7
        %v3123 = vsub.s32 1, %v3122
        %v3124 = vrot.slane %v3115, %v3123
        %v3127 = vmul.f32 %v3113, %v3120
        %v3128 = vmul.f32 %v3114, %v3124
        %v3129 = vadd.f32 %v3104, %v3127
        %v3130 = vadd.f32 %v3105, %v3128
        %s3131 = scalar_lea.vmem [#allocation7], 12
        %v3132 = vld [vmem:[%s3131] sm:$0x3]
        %v3133 = vld [vmem:[#allocation3 + $0x2a0] sm:$0xff]
        %v3134 = vld [vmem:[#allocation3 + $0x2a8] sm:$0xff]
        %3135 = vrot.lane.b32.xlu0 %v3133, 83
        %v3136 = vpop.permute.xlu0 %3135
        %3137 = vrot.lane.b32.xlu0 %v3134, 83
        %v3138 = vpop.permute.xlu0 %3137
        %vm3139 = vcmp.lt.s32.totalorder %v2084, 83
        %v3140 = vsel %vm3139, %v3136, %v3138
        %v3141 = vsel %vm3139, %v3138, %v3136
        %v3142 = vmul.f32 %v3132, %v2088
        %v3144 = vlaneseq
        %v3145 = vshrl.u32 %v3144, 7
        %v3146 = vsub.s32 0, %v3145
        %v3147 = vrot.slane %v3142, %v3146
        %v3148 = vlaneseq
        %v3149 = vshrl.u32 %v3148, 7
        %v3150 = vsub.s32 1, %v3149
        %v3151 = vrot.slane %v3142, %v3150
        %v3154 = vmul.f32 %v3140, %v3147
        %v3155 = vmul.f32 %v3141, %v3151
        %v3156 = vadd.f32 %v3129, %v3154
        %v3157 = vadd.f32 %v3130, %v3155
        %v3158 = vld [vmem:[#allocation3 + $0x2b0] sm:$0xff]
        %v3159 = vld [vmem:[#allocation3 + $0x2b8] sm:$0xff]
        %3160 = vrot.lane.b32.xlu0 %v3158, 82
        %v3161 = vpop.permute.xlu0 %3160
        %3162 = vrot.lane.b32.xlu0 %v3159, 82
        %v3163 = vpop.permute.xlu0 %3162
        %vm3164 = vcmp.lt.s32.totalorder %v2084, 82
        %v3165 = vsel %vm3164, %v3161, %v3163
        %v3166 = vsel %vm3164, %v3163, %v3161
        %v3167 = vmul.f32 %v3132, %v2115
        %v3169 = vlaneseq
        %v3170 = vshrl.u32 %v3169, 7
        %v3171 = vsub.s32 0, %v3170
        %v3172 = vrot.slane %v3167, %v3171
        %v3173 = vlaneseq
        %v3174 = vshrl.u32 %v3173, 7
        %v3175 = vsub.s32 1, %v3174
        %v3176 = vrot.slane %v3167, %v3175
        %v3179 = vmul.f32 %v3165, %v3172
        %v3180 = vmul.f32 %v3166, %v3176
        %v3181 = vadd.f32 %v3156, %v3179
        %v3182 = vadd.f32 %v3157, %v3180
        %v3183 = vld [vmem:[#allocation3 + $0x2c0] sm:$0xff]
        %v3184 = vld [vmem:[#allocation3 + $0x2c8] sm:$0xff]
        %3185 = vrot.lane.b32.xlu0 %v3183, 81
        %v3186 = vpop.permute.xlu0 %3185
        %3187 = vrot.lane.b32.xlu0 %v3184, 81
        %v3188 = vpop.permute.xlu0 %3187
        %vm3189 = vcmp.lt.s32.totalorder %v2084, 81
        %v3190 = vsel %vm3189, %v3186, %v3188
        %v3191 = vsel %vm3189, %v3188, %v3186
        %v3192 = vmul.f32 %v3132, %v2142
        %v3194 = vlaneseq
        %v3195 = vshrl.u32 %v3194, 7
        %v3196 = vsub.s32 0, %v3195
        %v3197 = vrot.slane %v3192, %v3196
        %v3198 = vlaneseq
        %v3199 = vshrl.u32 %v3198, 7
        %v3200 = vsub.s32 1, %v3199
        %v3201 = vrot.slane %v3192, %v3200
        %v3204 = vmul.f32 %v3190, %v3197
        %v3205 = vmul.f32 %v3191, %v3201
        %v3206 = vadd.f32 %v3181, %v3204
        %v3207 = vadd.f32 %v3182, %v3205
        %v3208 = vld [vmem:[#allocation3 + $0x2d0] sm:$0xff]
        %v3209 = vld [vmem:[#allocation3 + $0x2d8] sm:$0xff]
        %3210 = vrot.lane.b32.xlu0 %v3208, 80
        %v3211 = vpop.permute.xlu0 %3210
        %3212 = vrot.lane.b32.xlu0 %v3209, 80
        %v3213 = vpop.permute.xlu0 %3212
        %vm3214 = vcmp.lt.s32.totalorder %v2084, 80
        %v3215 = vsel %vm3214, %v3211, %v3213
        %v3216 = vsel %vm3214, %v3213, %v3211
        %v3217 = vmul.f32 %v3132, %v2169
        %v3219 = vlaneseq
        %v3220 = vshrl.u32 %v3219, 7
        %v3221 = vsub.s32 0, %v3220
        %v3222 = vrot.slane %v3217, %v3221
        %v3223 = vlaneseq
        %v3224 = vshrl.u32 %v3223, 7
        %v3225 = vsub.s32 1, %v3224
        %v3226 = vrot.slane %v3217, %v3225
        %v3229 = vmul.f32 %v3215, %v3222
        %v3230 = vmul.f32 %v3216, %v3226
        %v3231 = vadd.f32 %v3206, %v3229
        %v3232 = vadd.f32 %v3207, %v3230
        %v3233 = vld [vmem:[#allocation3 + $0x2e0] sm:$0xff]
        %v3234 = vld [vmem:[#allocation3 + $0x2e8] sm:$0xff]
        %3235 = vrot.lane.b32.xlu0 %v3233, 79
        %v3236 = vpop.permute.xlu0 %3235
        %3237 = vrot.lane.b32.xlu0 %v3234, 79
        %v3238 = vpop.permute.xlu0 %3237
        %vm3239 = vcmp.lt.s32.totalorder %v2084, 79
        %v3240 = vsel %vm3239, %v3236, %v3238
        %v3241 = vsel %vm3239, %v3238, %v3236
        %v3242 = vmul.f32 %v3132, %v2196
        %v3244 = vlaneseq
        %v3245 = vshrl.u32 %v3244, 7
        %v3246 = vsub.s32 0, %v3245
        %v3247 = vrot.slane %v3242, %v3246
        %v3248 = vlaneseq
        %v3249 = vshrl.u32 %v3248, 7
        %v3250 = vsub.s32 1, %v3249
        %v3251 = vrot.slane %v3242, %v3250
        %v3254 = vmul.f32 %v3240, %v3247
        %v3255 = vmul.f32 %v3241, %v3251
        %v3256 = vadd.f32 %v3231, %v3254
        %v3257 = vadd.f32 %v3232, %v3255
        %v3258 = vld [vmem:[#allocation3 + $0x2f0] sm:$0xff]
        %v3259 = vld [vmem:[#allocation3 + $0x2f8] sm:$0xff]
        %3260 = vrot.lane.b32.xlu0 %v3258, 78
        %v3261 = vpop.permute.xlu0 %3260
        %3262 = vrot.lane.b32.xlu0 %v3259, 78
        %v3263 = vpop.permute.xlu0 %3262
        %vm3264 = vcmp.lt.s32.totalorder %v2084, 78
        %v3265 = vsel %vm3264, %v3261, %v3263
        %v3266 = vsel %vm3264, %v3263, %v3261
        %v3267 = vmul.f32 %v3132, %v2223
        %v3269 = vlaneseq
        %v3270 = vshrl.u32 %v3269, 7
        %v3271 = vsub.s32 0, %v3270
        %v3272 = vrot.slane %v3267, %v3271
        %v3273 = vlaneseq
        %v3274 = vshrl.u32 %v3273, 7
        %v3275 = vsub.s32 1, %v3274
        %v3276 = vrot.slane %v3267, %v3275
        %v3279 = vmul.f32 %v3265, %v3272
        %v3280 = vmul.f32 %v3266, %v3276
        %v3281 = vadd.f32 %v3256, %v3279
        %v3282 = vadd.f32 %v3257, %v3280
        %v3283 = vld [vmem:[#allocation3 + $0x300] sm:$0xff]
        %v3284 = vld [vmem:[#allocation3 + $0x308] sm:$0xff]
        %3285 = vrot.lane.b32.xlu0 %v3283, 77
        %v3286 = vpop.permute.xlu0 %3285
        %3287 = vrot.lane.b32.xlu0 %v3284, 77
        %v3288 = vpop.permute.xlu0 %3287
        %vm3289 = vcmp.lt.s32.totalorder %v2084, 77
        %v3290 = vsel %vm3289, %v3286, %v3288
        %v3291 = vsel %vm3289, %v3288, %v3286
        %v3292 = vmul.f32 %v3132, %v2250
        %v3294 = vlaneseq
        %v3295 = vshrl.u32 %v3294, 7
        %v3296 = vsub.s32 0, %v3295
        %v3297 = vrot.slane %v3292, %v3296
        %v3298 = vlaneseq
        %v3299 = vshrl.u32 %v3298, 7
        %v3300 = vsub.s32 1, %v3299
        %v3301 = vrot.slane %v3292, %v3300
        %v3304 = vmul.f32 %v3290, %v3297
        %v3305 = vmul.f32 %v3291, %v3301
        %v3306 = vadd.f32 %v3281, %v3304
        %v3307 = vadd.f32 %v3282, %v3305
        %v3308 = vmul.f32 %v3306, 0.5
        %v3309 = vmul.f32 %v3307, 0.5
        %v3310 = vtanh.pop %v3308
        %v3311 = vtanh.pop %v3309
        %v3312 = vmul.f32 %v3310, 0.5
        %v3313 = vmul.f32 %v3311, 0.5
        %v3314 = vadd.f32 %v3312, 0.5
        %v3315 = vadd.f32 %v3313, 0.5
        %v3316 = vmul.f32 %v3314, %v261
        %v3317 = vmul.f32 %v3315, %v262
        %v3318 = vmul.f32 %v3314, %v263
        %v3319 = vmul.f32 %v3315, %v264
        %v3320 = vmul.f32 %v3314, %v265
        %v3321 = vmul.f32 %v3315, %v266
        %v3322 = vmul.f32 %v3314, %v267
        %v3323 = vmul.f32 %v3315, %v268
        %3324 = vst [vmem:[%s259] sm:$0xff] %v3316
        %3325 = vst [vmem:[%s259 + $0x8] sm:$0xff] %v3317
        %3326 = vst [vmem:[%s259 + $0x10] sm:$0xff] %v3318
        %3327 = vst [vmem:[%s259 + $0x18] sm:$0xff] %v3319
        %3328 = vst [vmem:[%s259 + $0x20] sm:$0xff] %v3320
        %3329 = vst [vmem:[%s259 + $0x28] sm:$0xff] %v3321
        %3330 = vst [vmem:[%s259 + $0x30] sm:$0xff] %v3322
        %3331 = vst [vmem:[%s259 + $0x38] sm:$0xff] %v3323
        %s3332 = sand.u32 %s120, 1
        %s3333 = scalar_lea.sflag [#allocation6], %s3332
        %s3334 = sand.u32 %s120, 1
        %s3335 = smul.addr %s3334, 64
        %s3336 = scalar_lea.vmem [#allocation12], %s3335
        // Predicated region
        $region53: #{tpu_custom_call.1} parent=35 // pred_check
          %p3337 = pneg %p130
        $region54: #{tpu_custom_call.1} parent=35 // pred_check_branch
          %3339 = sbr.rel (%p3337) target = $region56
        $region55: #{tpu_custom_call.1} parent=35 // pred_region
          %s3341 = ssub.s32 1024, 1024
          %3342 = vsyncadd %s3333, %s3341
          %s3343 = smul.addr %s23, 8
          %s3344 = smul.addr %s3343, 128
          %s3345 = scalar_lea.hbm %s4, %s3344
          %s3346 = sshll.u32 %s3336, 4
          %s3347 = int_to_ptr.vmem [resolvable:$true] %s3346
          %3352 = dma.vmem_to_hbm [thread:$0]  %s3347, 1024, %s3345, %s3333, 256, 256, 16
        $region56: #{tpu_custom_call.1} parent=35 // pred_fallthru
          _
      $region36: #{tpu_custom_call.1} parent=5 // pred_fallthru
        _
      %p3353 = scmp.le.s32.totalorder 2, %s18
      // Predicated region
      $region57: #{tpu_custom_call.1} parent=5 // pred_check
        %p3354 = pneg %p3353
      $region58: #{tpu_custom_call.1} parent=5 // pred_check_branch
        %3356 = sbr.rel (%p3354) target = $region60
      $region59: #{tpu_custom_call.1} parent=5 // pred_region
        %s3357 = ssub.s32 %s18, 2
        // Predicated region
        $region61: #{tpu_custom_call.1} parent=59 // pred_check
          %p3358 = pneg %p136
        $region62: #{tpu_custom_call.1} parent=59 // pred_check_branch
          %3360 = sbr.rel (%p3358) target = $region64
        $region63: #{tpu_custom_call.1} parent=59 // pred_region
          %s3361 = sand.u32 %s121, 1
          %s3362 = scalar_lea.sflag [#allocation6], %s3361
          %s3363 = sand.u32 %s121, 1
          %s3364 = smul.addr %s3363, 64
          %s3365 = scalar_lea.vmem [#allocation12], %s3364
          %3366 = dma.done %s3362, 1024
        $region64: #{tpu_custom_call.1} parent=59 // pred_fallthru
          _
      $region60: #{tpu_custom_call.1} parent=5 // pred_fallthru
        _
    $region6: #{tpu_custom_call.1} parent=1 // loop_footer
      %s22 = sadd.s32 1, %s18
    $region7: #{tpu_custom_call.1} parent=1 // loop_footer_branch
      %17 = sbr.rel target = $region3
    $region8: #{tpu_custom_call.1} parent=1 // loop_exit
      _
    %3367 = vsyncpa [#allocation5], 1
    %s3368 = scalar_lea.sflag [#allocation5], 1
    %3369 = vsyncpa %s3368, 1
    %3370 = vsyncpa [#allocation8], 1
    %3371 = vsyncpa [#allocation11], 1
    %s3372 = scalar_lea.sflag [#allocation11], 1
    %3373 = vsyncpa %s3372, 1
    %3374 = vsyncpa [#allocation6], 1
    %s3375 = scalar_lea.sflag [#allocation6], 1
    %3376 = vsyncpa %s3375, 1

</llo_original>
